<compile_context>
chip_gen: v6e
topology: v6e:2x2x1
jax: 0.10.0
libtpu: 0.0.40
codegen_flags: <defaults>
</compile_context>

<pallas_src>
import jax
import jax.numpy as jnp
from jax.experimental import pallas as pl
from jax.experimental.pallas import tpu as pltpu

INPUT_SIZE = 28
HIDDEN = 64
NUM_CLASSES = 10

F_PAD = 32          # input feature dim padded 28 -> 32
OUT_PAD = 128       # classifier lane-dense padding 10 -> 128
TB = 8              # batch tile (f32 sublane multiple)


def lstm_kernel(x_ref, w1x_ref, whh1_ref, b1_ref, wih2_ref, whh2_ref, b2_ref,
                wout_ref, bout_ref, out_ref, gx1_ref):
    H = HIDDEN
    T = x_ref.shape[0]          # static sequence length
    B = x_ref.shape[1]          # batch tile (TB)

    # ---- Hoisted layer-1 input projection, staged into VMEM scratch ----
    # Independent of the recurrence; all T matmuls can issue/pipe up front.
    b1b = jnp.broadcast_to(b1_ref[...], (B, 4 * H))
    w1x = w1x_ref[...]                              # (F_PAD, 4H) f32
    for t in range(T):
        gx1_ref[t * B:(t + 1) * B, :] = (
            jnp.dot(x_ref[t], w1x, preferred_element_type=jnp.float32) + b1b)

    whh1 = whh1_ref[...]        # (H, 4H) bf16
    wih2 = wih2_ref[...]        # (H, 4H) bf16
    whh2 = whh2_ref[...]        # (H, 4H) bf16
    b2b = jnp.broadcast_to(b2_ref[...], (B, 4 * H))   # hoisted broadcast

    def activations(gates):
        # Full-row sigmoid (EUP slot), slices per gate; tanh only on g.
        sig = jax.nn.sigmoid(gates)
        i = sig[:, 0:H]
        f = sig[:, H:2 * H]
        o = sig[:, 3 * H:4 * H]
        g = jnp.tanh(gates[:, 2 * H:3 * H])
        return i, f, g, o

    zeros_f = jnp.zeros((B, H), jnp.float32)
    zeros_b = jnp.zeros((B, H), jnp.bfloat16)
    h1, c1, h2, c2 = zeros_f, zeros_f, zeros_f, zeros_f
    h1_b, h2_b = zeros_b, zeros_b                     # bf16 MXU operands

    # Fully unrolled time loop (T static and small).
    for t in range(T):
        # Layer-2 recurrent dot depends only on step t-1 state: issue first so
        # it overlaps layer-1's critical-path matmul + activations.
        rec2 = jnp.dot(h2_b, whh2, preferred_element_type=jnp.float32)

        # Layer 1: only the recurrent K=64 bf16 matmul is on the serial chain.
        g1 = gx1_ref[t * B:(t + 1) * B, :] + jnp.dot(
            h1_b, whh1, preferred_element_type=jnp.float32)
        i1, f1, gg1, o1 = activations(g1)
        c1 = f1 * c1 + i1 * gg1
        h1 = o1 * jnp.tanh(c1)
        h1_b = h1.astype(jnp.bfloat16)

        # Layer 2: split input/recurrent dots, no concat.
        g2 = jnp.dot(h1_b, wih2, preferred_element_type=jnp.float32) + rec2 + b2b
        i2, f2, gg2, o2 = activations(g2)
        c2 = f2 * c2 + i2 * gg2
        h2 = o2 * jnp.tanh(c2)
        h2_b = h2.astype(jnp.bfloat16)

    # Final Linear(64 -> 10), lane-dense padded to 128 output columns (f32).
    out = jnp.dot(h2, wout_ref[...], preferred_element_type=jnp.float32) + bout_ref[...]
    out_ref[...] = out.astype(out_ref.dtype)


def _rnn_forward_impl(x, wih1, whh1, b1, wih2, whh2, b2, wout, bout):
    B, T, F = x.shape
    B_pad = max(TB, ((B + TB - 1) // TB) * TB)

    x = x.astype(jnp.float32)
    x = jnp.pad(x, ((0, B_pad - B), (0, 0), (0, F_PAD - F)))
    # Time-major (T, B_pad, F_PAD): per-timestep slabs are sublane-aligned.
    x_tm = jnp.transpose(x, (1, 0, 2))

    # Layer-1 input weight: pad K 28 -> 32 (zero rows), keep f32 (off chain).
    w1x = jnp.pad(wih1.astype(jnp.float32), ((0, F_PAD - F), (0, 0)))
    # Recurrent MXU operands in bf16 (single-pass MXU on all generations).
    whh1_b = whh1.astype(jnp.bfloat16)
    wih2_b = wih2.astype(jnp.bfloat16)
    whh2_b = whh2.astype(jnp.bfloat16)
    b1f = b1.astype(jnp.float32)
    b2f = b2.astype(jnp.float32)

    # Lane-dense classifier: pad N 10 -> 128 (unmasked full-lane store).
    wout_p = jnp.pad(wout.astype(jnp.float32), ((0, 0), (0, OUT_PAD - NUM_CLASSES)))
    bout_p = jnp.pad(bout.astype(jnp.float32), ((0, 0), (0, OUT_PAD - NUM_CLASSES)))

    H = HIDDEN
    grid = (B_pad // TB,)

    full2d = lambda shape: pl.BlockSpec(shape, lambda i: (0, 0))

    out = pl.pallas_call(
        lstm_kernel,
        out_shape=jax.ShapeDtypeStruct((B_pad, OUT_PAD), jnp.float32),
        grid_spec=pltpu.PrefetchScalarGridSpec(
            num_scalar_prefetch=0,
            grid=grid,
            in_specs=[
                pl.BlockSpec((T, TB, F_PAD), lambda i: (0, i, 0)),   # x
                full2d((F_PAD, 4 * H)),                              # w1x
                full2d((H, 4 * H)),                                  # whh1 (bf16)
                full2d((1, 4 * H)),                                  # b1
                full2d((H, 4 * H)),                                  # wih2 (bf16)
                full2d((H, 4 * H)),                                  # whh2 (bf16)
                full2d((1, 4 * H)),                                  # b2
                full2d((H, OUT_PAD)),                                # wout
                full2d((1, OUT_PAD)),                                # bout
            ],
            out_specs=pl.BlockSpec((TB, OUT_PAD), lambda i: (i, 0)),
            scratch_shapes=[pltpu.VMEM((T * TB, 4 * H), jnp.float32)],  # gx1
        ),
        compiler_params=pltpu.CompilerParams(
            dimension_semantics=("parallel",)),
    )(x_tm, w1x, whh1_b, b1f, wih2_b, whh2_b, b2f, wout_p, bout_p)

    return out[:B, :NUM_CLASSES]


_rnn_forward_jit = jax.jit(_rnn_forward_impl)


def rnn_forward(x, params):
    """x: (B, T, F) batch-first, matching PyTorch batch_first=True."""
    return _rnn_forward_jit(x, params["wih1"], params["whh1"], params["b1"],
                            params["wih2"], params["whh2"], params["b2"],
                            params["wout"], params["bout"])


def init_params(key):
    """Deterministic init mimicking PyTorch LSTM/Linear uniform(-1/sqrt(H), 1/sqrt(H))."""
    H = HIDDEN
    k_lstm = 1.0 / jnp.sqrt(jnp.float32(H))
    keys = jax.random.split(key, 12)

    def u(k, shape, bound):
        return jax.random.uniform(k, shape, jnp.float32, -bound, bound)

    # layer 1 (input 28 -> hidden 64); PyTorch weight shapes (4H, in), (4H, H)
    wih1 = u(keys[0], (4 * H, INPUT_SIZE), k_lstm).T          # (28, 256)
    whh1 = u(keys[1], (4 * H, H), k_lstm).T                   # (64, 256)
    b1 = (u(keys[2], (4 * H,), k_lstm) + u(keys[3], (4 * H,), k_lstm)).reshape(1, 4 * H)

    # layer 2 (hidden 64 -> hidden 64)
    wih2 = u(keys[4], (4 * H, H), k_lstm).T                   # (64, 256)
    whh2 = u(keys[5], (4 * H, H), k_lstm).T                   # (64, 256)
    b2 = (u(keys[6], (4 * H,), k_lstm) + u(keys[7], (4 * H,), k_lstm)).reshape(1, 4 * H)

    # output Linear(64 -> 10)
    k_lin = 1.0 / jnp.sqrt(jnp.float32(H))
    wout = u(keys[8], (NUM_CLASSES, H), k_lin).T              # (64, 10)
    bout = u(keys[9], (NUM_CLASSES,), k_lin).reshape(1, NUM_CLASSES)

    return dict(wih1=wih1, whh1=whh1, b1=b1,
                wih2=wih2, whh2=whh2, b2=b2,
                wout=wout, bout=bout)


def rnn_reference(x, params):
    """Pure-JAX f32 reference of the same forward pass for correctness check."""
    H = HIDDEN
    B, T, _ = x.shape

    def cell(x_t, h, c, wih, whh, b):
        gates = x_t @ wih + h @ whh + b
        i = jax.nn.sigmoid(gates[:, 0:H])
        f = jax.nn.sigmoid(gates[:, H:2 * H])
        g = jnp.tanh(gates[:, 2 * H:3 * H])
        o = jax.nn.sigmoid(gates[:, 3 * H:4 * H])
        c = f * c + i * g
        h = o * jnp.tanh(c)
        return h, c

    h1 = c1 = h2 = c2 = jnp.zeros((B, H), jnp.float32)
    for t in range(T):
        h1, c1 = cell(x[:, t, :], h1, c1, params["wih1"], params["whh1"], params["b1"])
        h2, c2 = cell(h1, h2, c2, params["wih2"], params["whh2"], params["b2"])
    return h2 @ params["wout"] + params["bout"]


if __name__ == "__main__":
    key = jax.random.PRNGKey(0)
    k_x, k_p = jax.random.split(key)

    B, T = 2, 8
    x = jax.random.normal(k_x, (B, T, INPUT_SIZE), dtype=jnp.float32)
    params = init_params(k_p)

    out = rnn_forward(x, params)
    out = jax.block_until_ready(out)

    ref = rnn_reference(x, params)
    assert out.shape == (B, NUM_CLASSES)
    # bf16 MXU operands on the 8-step recurrence -> loosened tolerance vs the
    # pure-f32 reference (review item: relax the old 1e-4 check).
    assert jnp.allclose(out, ref, atol=5e-2, rtol=5e-2), (
        f"max abs err {jnp.max(jnp.abs(out - ref))}")

    print("KERNEL_OK")
</pallas_src>

<mosaic_0001>
module attributes {stable_mosaic.version = 11 : i64} {
  func.func @lstm_kernel(%arg0: i32, %arg1: memref<8x8x32xf32, #tpu.memory_space<vmem>>, %arg2: memref<32x256xf32, #tpu.memory_space<vmem>>, %arg3: memref<64x256xbf16, #tpu.memory_space<vmem>>, %arg4: memref<1x256xf32, #tpu.memory_space<vmem>>, %arg5: memref<64x256xbf16, #tpu.memory_space<vmem>>, %arg6: memref<64x256xbf16, #tpu.memory_space<vmem>>, %arg7: memref<1x256xf32, #tpu.memory_space<vmem>>, %arg8: memref<64x128xf32, #tpu.memory_space<vmem>>, %arg9: memref<1x128xf32, #tpu.memory_space<vmem>>, %arg10: memref<8x128xf32, #tpu.memory_space<vmem>>, %arg11: memref<64x256xf32, #tpu.memory_space<vmem>>) attributes {dimension_semantics = [#tpu.dimension_semantics<parallel>], iteration_bounds = array<i64: 1>, scalar_prefetch = 0 : i64, scratch_operands = 1 : i64, tpu.core_type = #tpu.core_type<tc>, window_params = [{transform_indices = @transform_0, window_bounds = array<i64: 8, 8, 32>}, {pipeline_mode = #tpu.pipeline_mode<synchronous>, transform_indices = @transform_1, window_bounds = array<i64: 32, 256>}, {pipeline_mode = #tpu.pipeline_mode<synchronous>, transform_indices = @transform_2, window_bounds = array<i64: 64, 256>}, {pipeline_mode = #tpu.pipeline_mode<synchronous>, transform_indices = @transform_3, window_bounds = array<i64: 1, 256>}, {pipeline_mode = #tpu.pipeline_mode<synchronous>, transform_indices = @transform_4, window_bounds = array<i64: 64, 256>}, {pipeline_mode = #tpu.pipeline_mode<synchronous>, transform_indices = @transform_5, window_bounds = array<i64: 64, 256>}, {pipeline_mode = #tpu.pipeline_mode<synchronous>, transform_indices = @transform_6, window_bounds = array<i64: 1, 256>}, {pipeline_mode = #tpu.pipeline_mode<synchronous>, transform_indices = @transform_7, window_bounds = array<i64: 64, 128>}, {pipeline_mode = #tpu.pipeline_mode<synchronous>, transform_indices = @transform_8, window_bounds = array<i64: 1, 128>}, {transform_indices = @transform_9, window_bounds = array<i64: 8, 128>}]} {
    %c0 = arith.constant 0 : index
    %c0_0 = arith.constant 0 : index
    %0 = vector.load %arg4[%c0, %c0_0] : memref<1x256xf32, #tpu.memory_space<vmem>>, vector<1x256xf32>
    %1 = vector.shape_cast %0 : vector<1x256xf32> to vector<1x256xf32>
    %2 = vector.broadcast %1 : vector<1x256xf32> to vector<8x256xf32>
    %c0_1 = arith.constant 0 : index
    %c0_2 = arith.constant 0 : index
    %3 = vector.load %arg2[%c0_1, %c0_2] : memref<32x256xf32, #tpu.memory_space<vmem>>, vector<32x256xf32>
    %c0_3 = arith.constant 0 : index
    %c0_4 = arith.constant 0 : index
    %c0_5 = arith.constant 0 : index
    %4 = vector.load %arg1[%c0_3, %c0_4, %c0_5] : memref<8x8x32xf32, #tpu.memory_space<vmem>>, vector<1x8x32xf32>
    %5 = vector.shape_cast %4 : vector<1x8x32xf32> to vector<8x32xf32>
    %cst = arith.constant dense<0.000000e+00> : vector<8x256xf32>
    %6 = tpu.matmul %5, %3, %cst {dimension_numbers = #tpu.dot_dimension_numbers<[1], [0], [0], [1], [0, 0, 1, 1], [], []>} : vector<8x32xf32>, vector<32x256xf32>, vector<8x256xf32> -> vector<8x256xf32>
    %7 = arith.addf %6, %2 : vector<8x256xf32>
    %c0_6 = arith.constant 0 : index
    %c0_7 = arith.constant 0 : index
    %8 = vector.load %arg11[%c0_6, %c0_7] : memref<64x256xf32, #tpu.memory_space<vmem>>, vector<8x256xf32>
    tpu.vector_store %arg11[%c0_6, %c0_7], %7 {strides = array<i32>} : memref<64x256xf32, #tpu.memory_space<vmem>>, vector<8x256xf32>,
    %c1 = arith.constant 1 : index
    %c0_8 = arith.constant 0 : index
    %c0_9 = arith.constant 0 : index
    %9 = vector.load %arg1[%c1, %c0_8, %c0_9] : memref<8x8x32xf32, #tpu.memory_space<vmem>>, vector<1x8x32xf32>
    %10 = vector.shape_cast %9 : vector<1x8x32xf32> to vector<8x32xf32>
    %cst_10 = arith.constant dense<0.000000e+00> : vector<8x256xf32>
    %11 = tpu.matmul %10, %3, %cst_10 {dimension_numbers = #tpu.dot_dimension_numbers<[1], [0], [0], [1], [0, 0, 1, 1], [], []>} : vector<8x32xf32>, vector<32x256xf32>, vector<8x256xf32> -> vector<8x256xf32>
    %12 = arith.addf %11, %2 : vector<8x256xf32>
    %c8 = arith.constant 8 : index
    %c0_11 = arith.constant 0 : index
    %13 = vector.load %arg11[%c8, %c0_11] : memref<64x256xf32, #tpu.memory_space<vmem>>, vector<8x256xf32>
    tpu.vector_store %arg11[%c8, %c0_11], %12 {strides = array<i32>} : memref<64x256xf32, #tpu.memory_space<vmem>>, vector<8x256xf32>,
    %c2 = arith.constant 2 : index
    %c0_12 = arith.constant 0 : index
    %c0_13 = arith.constant 0 : index
    %14 = vector.load %arg1[%c2, %c0_12, %c0_13] : memref<8x8x32xf32, #tpu.memory_space<vmem>>, vector<1x8x32xf32>
    %15 = vector.shape_cast %14 : vector<1x8x32xf32> to vector<8x32xf32>
    %cst_14 = arith.constant dense<0.000000e+00> : vector<8x256xf32>
    %16 = tpu.matmul %15, %3, %cst_14 {dimension_numbers = #tpu.dot_dimension_numbers<[1], [0], [0], [1], [0, 0, 1, 1], [], []>} : vector<8x32xf32>, vector<32x256xf32>, vector<8x256xf32> -> vector<8x256xf32>
    %17 = arith.addf %16, %2 : vector<8x256xf32>
    %c16 = arith.constant 16 : index
    %c0_15 = arith.constant 0 : index
    %18 = vector.load %arg11[%c16, %c0_15] : memref<64x256xf32, #tpu.memory_space<vmem>>, vector<8x256xf32>
    tpu.vector_store %arg11[%c16, %c0_15], %17 {strides = array<i32>} : memref<64x256xf32, #tpu.memory_space<vmem>>, vector<8x256xf32>,
    %c3 = arith.constant 3 : index
    %c0_16 = arith.constant 0 : index
    %c0_17 = arith.constant 0 : index
    %19 = vector.load %arg1[%c3, %c0_16, %c0_17] : memref<8x8x32xf32, #tpu.memory_space<vmem>>, vector<1x8x32xf32>
    %20 = vector.shape_cast %19 : vector<1x8x32xf32> to vector<8x32xf32>
    %cst_18 = arith.constant dense<0.000000e+00> : vector<8x256xf32>
    %21 = tpu.matmul %20, %3, %cst_18 {dimension_numbers = #tpu.dot_dimension_numbers<[1], [0], [0], [1], [0, 0, 1, 1], [], []>} : vector<8x32xf32>, vector<32x256xf32>, vector<8x256xf32> -> vector<8x256xf32>
    %22 = arith.addf %21, %2 : vector<8x256xf32>
    %c24 = arith.constant 24 : index
    %c0_19 = arith.constant 0 : index
    %23 = vector.load %arg11[%c24, %c0_19] : memref<64x256xf32, #tpu.memory_space<vmem>>, vector<8x256xf32>
    tpu.vector_store %arg11[%c24, %c0_19], %22 {strides = array<i32>} : memref<64x256xf32, #tpu.memory_space<vmem>>, vector<8x256xf32>,
    %c4 = arith.constant 4 : index
    %c0_20 = arith.constant 0 : index
    %c0_21 = arith.constant 0 : index
    %24 = vector.load %arg1[%c4, %c0_20, %c0_21] : memref<8x8x32xf32, #tpu.memory_space<vmem>>, vector<1x8x32xf32>
    %25 = vector.shape_cast %24 : vector<1x8x32xf32> to vector<8x32xf32>
    %cst_22 = arith.constant dense<0.000000e+00> : vector<8x256xf32>
    %26 = tpu.matmul %25, %3, %cst_22 {dimension_numbers = #tpu.dot_dimension_numbers<[1], [0], [0], [1], [0, 0, 1, 1], [], []>} : vector<8x32xf32>, vector<32x256xf32>, vector<8x256xf32> -> vector<8x256xf32>
    %27 = arith.addf %26, %2 : vector<8x256xf32>
    %c32 = arith.constant 32 : index
    %c0_23 = arith.constant 0 : index
    %28 = vector.load %arg11[%c32, %c0_23] : memref<64x256xf32, #tpu.memory_space<vmem>>, vector<8x256xf32>
    tpu.vector_store %arg11[%c32, %c0_23], %27 {strides = array<i32>} : memref<64x256xf32, #tpu.memory_space<vmem>>, vector<8x256xf32>,
    %c5 = arith.constant 5 : index
    %c0_24 = arith.constant 0 : index
    %c0_25 = arith.constant 0 : index
    %29 = vector.load %arg1[%c5, %c0_24, %c0_25] : memref<8x8x32xf32, #tpu.memory_space<vmem>>, vector<1x8x32xf32>
    %30 = vector.shape_cast %29 : vector<1x8x32xf32> to vector<8x32xf32>
    %cst_26 = arith.constant dense<0.000000e+00> : vector<8x256xf32>
    %31 = tpu.matmul %30, %3, %cst_26 {dimension_numbers = #tpu.dot_dimension_numbers<[1], [0], [0], [1], [0, 0, 1, 1], [], []>} : vector<8x32xf32>, vector<32x256xf32>, vector<8x256xf32> -> vector<8x256xf32>
    %32 = arith.addf %31, %2 : vector<8x256xf32>
    %c40 = arith.constant 40 : index
    %c0_27 = arith.constant 0 : index
    %33 = vector.load %arg11[%c40, %c0_27] : memref<64x256xf32, #tpu.memory_space<vmem>>, vector<8x256xf32>
    tpu.vector_store %arg11[%c40, %c0_27], %32 {strides = array<i32>} : memref<64x256xf32, #tpu.memory_space<vmem>>, vector<8x256xf32>,
    %c6 = arith.constant 6 : index
    %c0_28 = arith.constant 0 : index
    %c0_29 = arith.constant 0 : index
    %34 = vector.load %arg1[%c6, %c0_28, %c0_29] : memref<8x8x32xf32, #tpu.memory_space<vmem>>, vector<1x8x32xf32>
    %35 = vector.shape_cast %34 : vector<1x8x32xf32> to vector<8x32xf32>
    %cst_30 = arith.constant dense<0.000000e+00> : vector<8x256xf32>
    %36 = tpu.matmul %35, %3, %cst_30 {dimension_numbers = #tpu.dot_dimension_numbers<[1], [0], [0], [1], [0, 0, 1, 1], [], []>} : vector<8x32xf32>, vector<32x256xf32>, vector<8x256xf32> -> vector<8x256xf32>
    %37 = arith.addf %36, %2 : vector<8x256xf32>
    %c48 = arith.constant 48 : index
    %c0_31 = arith.constant 0 : index
    %38 = vector.load %arg11[%c48, %c0_31] : memref<64x256xf32, #tpu.memory_space<vmem>>, vector<8x256xf32>
    tpu.vector_store %arg11[%c48, %c0_31], %37 {strides = array<i32>} : memref<64x256xf32, #tpu.memory_space<vmem>>, vector<8x256xf32>,
    %c7 = arith.constant 7 : index
    %c0_32 = arith.constant 0 : index
    %c0_33 = arith.constant 0 : index
    %39 = vector.load %arg1[%c7, %c0_32, %c0_33] : memref<8x8x32xf32, #tpu.memory_space<vmem>>, vector<1x8x32xf32>
    %40 = vector.shape_cast %39 : vector<1x8x32xf32> to vector<8x32xf32>
    %cst_34 = arith.constant dense<0.000000e+00> : vector<8x256xf32>
    %41 = tpu.matmul %40, %3, %cst_34 {dimension_numbers = #tpu.dot_dimension_numbers<[1], [0], [0], [1], [0, 0, 1, 1], [], []>} : vector<8x32xf32>, vector<32x256xf32>, vector<8x256xf32> -> vector<8x256xf32>
    %42 = arith.addf %41, %2 : vector<8x256xf32>
    %c56 = arith.constant 56 : index
    %c0_35 = arith.constant 0 : index
    %43 = vector.load %arg11[%c56, %c0_35] : memref<64x256xf32, #tpu.memory_space<vmem>>, vector<8x256xf32>
    tpu.vector_store %arg11[%c56, %c0_35], %42 {strides = array<i32>} : memref<64x256xf32, #tpu.memory_space<vmem>>, vector<8x256xf32>,
    %c0_36 = arith.constant 0 : index
    %c0_37 = arith.constant 0 : index
    %44 = vector.load %arg3[%c0_36, %c0_37] : memref<64x256xbf16, #tpu.memory_space<vmem>>, vector<64x256xbf16>
    %c0_38 = arith.constant 0 : index
    %c0_39 = arith.constant 0 : index
    %45 = vector.load %arg5[%c0_38, %c0_39] : memref<64x256xbf16, #tpu.memory_space<vmem>>, vector<64x256xbf16>
    %c0_40 = arith.constant 0 : index
    %c0_41 = arith.constant 0 : index
    %46 = vector.load %arg6[%c0_40, %c0_41] : memref<64x256xbf16, #tpu.memory_space<vmem>>, vector<64x256xbf16>
    %c0_42 = arith.constant 0 : index
    %c0_43 = arith.constant 0 : index
    %47 = vector.load %arg7[%c0_42, %c0_43] : memref<1x256xf32, #tpu.memory_space<vmem>>, vector<1x256xf32>
    %48 = vector.shape_cast %47 : vector<1x256xf32> to vector<1x256xf32>
    %49 = vector.broadcast %48 : vector<1x256xf32> to vector<8x256xf32>
    %cst_44 = arith.constant 0.000000e+00 : f32
    %50 = vector.broadcast %cst_44 : f32 to vector<8x64xf32>
    %cst_45 = arith.constant 0.000000e+00 : bf16
    %51 = vector.broadcast %cst_45 : bf16 to vector<8x64xbf16>
    %cst_46 = arith.constant dense<0.000000e+00> : vector<8x256xf32>
    %52 = tpu.matmul %51, %46, %cst_46 {dimension_numbers = #tpu.dot_dimension_numbers<[1], [0], [0], [1], [0, 0, 1, 1], [], []>} : vector<8x64xbf16>, vector<64x256xbf16>, vector<8x256xf32> -> vector<8x256xf32>
    %c0_47 = arith.constant 0 : index
    %c0_48 = arith.constant 0 : index
    %53 = vector.load %arg11[%c0_47, %c0_48] : memref<64x256xf32, #tpu.memory_space<vmem>>, vector<8x256xf32>
    %cst_49 = arith.constant dense<0.000000e+00> : vector<8x256xf32>
    %54 = tpu.matmul %51, %44, %cst_49 {dimension_numbers = #tpu.dot_dimension_numbers<[1], [0], [0], [1], [0, 0, 1, 1], [], []>} : vector<8x64xbf16>, vector<64x256xbf16>, vector<8x256xf32> -> vector<8x256xf32>
    %55 = arith.addf %53, %54 : vector<8x256xf32>
    %56 = arith.negf %55 : vector<8x256xf32>
    %57 = math.exp %56 : vector<8x256xf32>
    %cst_50 = arith.constant 1.000000e+00 : f32
    %58 = vector.broadcast %cst_50 : f32 to vector<8x256xf32>
    %59 = arith.addf %58, %57 : vector<8x256xf32>
    %60 = arith.divf %58, %59 : vector<8x256xf32>
    %61 = vector.extract_strided_slice %60 {offsets = [0, 0], sizes = [8, 64], strides = [1, 1]} : vector<8x256xf32> to vector<8x64xf32>
    %62 = vector.extract_strided_slice %60 {offsets = [0, 64], sizes = [8, 64], strides = [1, 1]} : vector<8x256xf32> to vector<8x64xf32>
    %63 = vector.extract_strided_slice %60 {offsets = [0, 192], sizes = [8, 64], strides = [1, 1]} : vector<8x256xf32> to vector<8x64xf32>
    %64 = vector.extract_strided_slice %55 {offsets = [0, 128], sizes = [8, 64], strides = [1, 1]} : vector<8x256xf32> to vector<8x64xf32>
    %65 = math.tanh %64 : vector<8x64xf32>
    %66 = arith.mulf %62, %50 : vector<8x64xf32>
    %67 = arith.mulf %61, %65 : vector<8x64xf32>
    %68 = arith.addf %66, %67 : vector<8x64xf32>
    %69 = math.tanh %68 : vector<8x64xf32>
    %70 = arith.mulf %63, %69 : vector<8x64xf32>
    %71 = arith.truncf %70 : vector<8x64xf32> to vector<8x64xbf16>
    %cst_51 = arith.constant dense<0.000000e+00> : vector<8x256xf32>
    %72 = tpu.matmul %71, %45, %cst_51 {dimension_numbers = #tpu.dot_dimension_numbers<[1], [0], [0], [1], [0, 0, 1, 1], [], []>} : vector<8x64xbf16>, vector<64x256xbf16>, vector<8x256xf32> -> vector<8x256xf32>
    %73 = arith.addf %72, %52 : vector<8x256xf32>
    %74 = arith.addf %73, %49 : vector<8x256xf32>
    %75 = arith.negf %74 : vector<8x256xf32>
    %76 = math.exp %75 : vector<8x256xf32>
    %cst_52 = arith.constant 1.000000e+00 : f32
    %77 = vector.broadcast %cst_52 : f32 to vector<8x256xf32>
    %78 = arith.addf %77, %76 : vector<8x256xf32>
    %79 = arith.divf %77, %78 : vector<8x256xf32>
    %80 = vector.extract_strided_slice %79 {offsets = [0, 0], sizes = [8, 64], strides = [1, 1]} : vector<8x256xf32> to vector<8x64xf32>
    %81 = vector.extract_strided_slice %79 {offsets = [0, 64], sizes = [8, 64], strides = [1, 1]} : vector<8x256xf32> to vector<8x64xf32>
    %82 = vector.extract_strided_slice %79 {offsets = [0, 192], sizes = [8, 64], strides = [1, 1]} : vector<8x256xf32> to vector<8x64xf32>
    %83 = vector.extract_strided_slice %74 {offsets = [0, 128], sizes = [8, 64], strides = [1, 1]} : vector<8x256xf32> to vector<8x64xf32>
    %84 = math.tanh %83 : vector<8x64xf32>
    %85 = arith.mulf %81, %50 : vector<8x64xf32>
    %86 = arith.mulf %80, %84 : vector<8x64xf32>
    %87 = arith.addf %85, %86 : vector<8x64xf32>
    %88 = math.tanh %87 : vector<8x64xf32>
    %89 = arith.mulf %82, %88 : vector<8x64xf32>
    %90 = arith.truncf %89 : vector<8x64xf32> to vector<8x64xbf16>
    %cst_53 = arith.constant dense<0.000000e+00> : vector<8x256xf32>
    %91 = tpu.matmul %90, %46, %cst_53 {dimension_numbers = #tpu.dot_dimension_numbers<[1], [0], [0], [1], [0, 0, 1, 1], [], []>} : vector<8x64xbf16>, vector<64x256xbf16>, vector<8x256xf32> -> vector<8x256xf32>
    %c8_54 = arith.constant 8 : index
    %c0_55 = arith.constant 0 : index
    %92 = vector.load %arg11[%c8_54, %c0_55] : memref<64x256xf32, #tpu.memory_space<vmem>>, vector<8x256xf32>
    %cst_56 = arith.constant dense<0.000000e+00> : vector<8x256xf32>
    %93 = tpu.matmul %71, %44, %cst_56 {dimension_numbers = #tpu.dot_dimension_numbers<[1], [0], [0], [1], [0, 0, 1, 1], [], []>} : vector<8x64xbf16>, vector<64x256xbf16>, vector<8x256xf32> -> vector<8x256xf32>
    %94 = arith.addf %92, %93 : vector<8x256xf32>
    %95 = arith.negf %94 : vector<8x256xf32>
    %96 = math.exp %95 : vector<8x256xf32>
    %cst_57 = arith.constant 1.000000e+00 : f32
    %97 = vector.broadcast %cst_57 : f32 to vector<8x256xf32>
    %98 = arith.addf %97, %96 : vector<8x256xf32>
    %99 = arith.divf %97, %98 : vector<8x256xf32>
    %100 = vector.extract_strided_slice %99 {offsets = [0, 0], sizes = [8, 64], strides = [1, 1]} : vector<8x256xf32> to vector<8x64xf32>
    %101 = vector.extract_strided_slice %99 {offsets = [0, 64], sizes = [8, 64], strides = [1, 1]} : vector<8x256xf32> to vector<8x64xf32>
    %102 = vector.extract_strided_slice %99 {offsets = [0, 192], sizes = [8, 64], strides = [1, 1]} : vector<8x256xf32> to vector<8x64xf32>
    %103 = vector.extract_strided_slice %94 {offsets = [0, 128], sizes = [8, 64], strides = [1, 1]} : vector<8x256xf32> to vector<8x64xf32>
    %104 = math.tanh %103 : vector<8x64xf32>
    %105 = arith.mulf %101, %68 : vector<8x64xf32>
    %106 = arith.mulf %100, %104 : vector<8x64xf32>
    %107 = arith.addf %105, %106 : vector<8x64xf32>
    %108 = math.tanh %107 : vector<8x64xf32>
    %109 = arith.mulf %102, %108 : vector<8x64xf32>
    %110 = arith.truncf %109 : vector<8x64xf32> to vector<8x64xbf16>
    %cst_58 = arith.constant dense<0.000000e+00> : vector<8x256xf32>
    %111 = tpu.matmul %110, %45, %cst_58 {dimension_numbers = #tpu.dot_dimension_numbers<[1], [0], [0], [1], [0, 0, 1, 1], [], []>} : vector<8x64xbf16>, vector<64x256xbf16>, vector<8x256xf32> -> vector<8x256xf32>
    %112 = arith.addf %111, %91 : vector<8x256xf32>
    %113 = arith.addf %112, %49 : vector<8x256xf32>
    %114 = arith.negf %113 : vector<8x256xf32>
    %115 = math.exp %114 : vector<8x256xf32>
    %cst_59 = arith.constant 1.000000e+00 : f32
    %116 = vector.broadcast %cst_59 : f32 to vector<8x256xf32>
    %117 = arith.addf %116, %115 : vector<8x256xf32>
    %118 = arith.divf %116, %117 : vector<8x256xf32>
    %119 = vector.extract_strided_slice %118 {offsets = [0, 0], sizes = [8, 64], strides = [1, 1]} : vector<8x256xf32> to vector<8x64xf32>
    %120 = vector.extract_strided_slice %118 {offsets = [0, 64], sizes = [8, 64], strides = [1, 1]} : vector<8x256xf32> to vector<8x64xf32>
    %121 = vector.extract_strided_slice %118 {offsets = [0, 192], sizes = [8, 64], strides = [1, 1]} : vector<8x256xf32> to vector<8x64xf32>
    %122 = vector.extract_strided_slice %113 {offsets = [0, 128], sizes = [8, 64], strides = [1, 1]} : vector<8x256xf32> to vector<8x64xf32>
    %123 = math.tanh %122 : vector<8x64xf32>
    %124 = arith.mulf %120, %87 : vector<8x64xf32>
    %125 = arith.mulf %119, %123 : vector<8x64xf32>
    %126 = arith.addf %124, %125 : vector<8x64xf32>
    %127 = math.tanh %126 : vector<8x64xf32>
    %128 = arith.mulf %121, %127 : vector<8x64xf32>
    %129 = arith.truncf %128 : vector<8x64xf32> to vector<8x64xbf16>
    %cst_60 = arith.constant dense<0.000000e+00> : vector<8x256xf32>
    %130 = tpu.matmul %129, %46, %cst_60 {dimension_numbers = #tpu.dot_dimension_numbers<[1], [0], [0], [1], [0, 0, 1, 1], [], []>} : vector<8x64xbf16>, vector<64x256xbf16>, vector<8x256xf32> -> vector<8x256xf32>
    %c16_61 = arith.constant 16 : index
    %c0_62 = arith.constant 0 : index
    %131 = vector.load %arg11[%c16_61, %c0_62] : memref<64x256xf32, #tpu.memory_space<vmem>>, vector<8x256xf32>
    %cst_63 = arith.constant dense<0.000000e+00> : vector<8x256xf32>
    %132 = tpu.matmul %110, %44, %cst_63 {dimension_numbers = #tpu.dot_dimension_numbers<[1], [0], [0], [1], [0, 0, 1, 1], [], []>} : vector<8x64xbf16>, vector<64x256xbf16>, vector<8x256xf32> -> vector<8x256xf32>
    %133 = arith.addf %131, %132 : vector<8x256xf32>
    %134 = arith.negf %133 : vector<8x256xf32>
    %135 = math.exp %134 : vector<8x256xf32>
    %cst_64 = arith.constant 1.000000e+00 : f32
    %136 = vector.broadcast %cst_64 : f32 to vector<8x256xf32>
    %137 = arith.addf %136, %135 : vector<8x256xf32>
    %138 = arith.divf %136, %137 : vector<8x256xf32>
    %139 = vector.extract_strided_slice %138 {offsets = [0, 0], sizes = [8, 64], strides = [1, 1]} : vector<8x256xf32> to vector<8x64xf32>
    %140 = vector.extract_strided_slice %138 {offsets = [0, 64], sizes = [8, 64], strides = [1, 1]} : vector<8x256xf32> to vector<8x64xf32>
    %141 = vector.extract_strided_slice %138 {offsets = [0, 192], sizes = [8, 64], strides = [1, 1]} : vector<8x256xf32> to vector<8x64xf32>
    %142 = vector.extract_strided_slice %133 {offsets = [0, 128], sizes = [8, 64], strides = [1, 1]} : vector<8x256xf32> to vector<8x64xf32>
    %143 = math.tanh %142 : vector<8x64xf32>
    %144 = arith.mulf %140, %107 : vector<8x64xf32>
    %145 = arith.mulf %139, %143 : vector<8x64xf32>
    %146 = arith.addf %144, %145 : vector<8x64xf32>
    %147 = math.tanh %146 : vector<8x64xf32>
    %148 = arith.mulf %141, %147 : vector<8x64xf32>
    %149 = arith.truncf %148 : vector<8x64xf32> to vector<8x64xbf16>
    %cst_65 = arith.constant dense<0.000000e+00> : vector<8x256xf32>
    %150 = tpu.matmul %149, %45, %cst_65 {dimension_numbers = #tpu.dot_dimension_numbers<[1], [0], [0], [1], [0, 0, 1, 1], [], []>} : vector<8x64xbf16>, vector<64x256xbf16>, vector<8x256xf32> -> vector<8x256xf32>
    %151 = arith.addf %150, %130 : vector<8x256xf32>
    %152 = arith.addf %151, %49 : vector<8x256xf32>
    %153 = arith.negf %152 : vector<8x256xf32>
    %154 = math.exp %153 : vector<8x256xf32>
    %cst_66 = arith.constant 1.000000e+00 : f32
    %155 = vector.broadcast %cst_66 : f32 to vector<8x256xf32>
    %156 = arith.addf %155, %154 : vector<8x256xf32>
    %157 = arith.divf %155, %156 : vector<8x256xf32>
    %158 = vector.extract_strided_slice %157 {offsets = [0, 0], sizes = [8, 64], strides = [1, 1]} : vector<8x256xf32> to vector<8x64xf32>
    %159 = vector.extract_strided_slice %157 {offsets = [0, 64], sizes = [8, 64], strides = [1, 1]} : vector<8x256xf32> to vector<8x64xf32>
    %160 = vector.extract_strided_slice %157 {offsets = [0, 192], sizes = [8, 64], strides = [1, 1]} : vector<8x256xf32> to vector<8x64xf32>
    %161 = vector.extract_strided_slice %152 {offsets = [0, 128], sizes = [8, 64], strides = [1, 1]} : vector<8x256xf32> to vector<8x64xf32>
    %162 = math.tanh %161 : vector<8x64xf32>
    %163 = arith.mulf %159, %126 : vector<8x64xf32>
    %164 = arith.mulf %158, %162 : vector<8x64xf32>
    %165 = arith.addf %163, %164 : vector<8x64xf32>
    %166 = math.tanh %165 : vector<8x64xf32>
    %167 = arith.mulf %160, %166 : vector<8x64xf32>
    %168 = arith.truncf %167 : vector<8x64xf32> to vector<8x64xbf16>
    %cst_67 = arith.constant dense<0.000000e+00> : vector<8x256xf32>
    %169 = tpu.matmul %168, %46, %cst_67 {dimension_numbers = #tpu.dot_dimension_numbers<[1], [0], [0], [1], [0, 0, 1, 1], [], []>} : vector<8x64xbf16>, vector<64x256xbf16>, vector<8x256xf32> -> vector<8x256xf32>
    %c24_68 = arith.constant 24 : index
    %c0_69 = arith.constant 0 : index
    %170 = vector.load %arg11[%c24_68, %c0_69] : memref<64x256xf32, #tpu.memory_space<vmem>>, vector<8x256xf32>
    %cst_70 = arith.constant dense<0.000000e+00> : vector<8x256xf32>
    %171 = tpu.matmul %149, %44, %cst_70 {dimension_numbers = #tpu.dot_dimension_numbers<[1], [0], [0], [1], [0, 0, 1, 1], [], []>} : vector<8x64xbf16>, vector<64x256xbf16>, vector<8x256xf32> -> vector<8x256xf32>
    %172 = arith.addf %170, %171 : vector<8x256xf32>
    %173 = arith.negf %172 : vector<8x256xf32>
    %174 = math.exp %173 : vector<8x256xf32>
    %cst_71 = arith.constant 1.000000e+00 : f32
    %175 = vector.broadcast %cst_71 : f32 to vector<8x256xf32>
    %176 = arith.addf %175, %174 : vector<8x256xf32>
    %177 = arith.divf %175, %176 : vector<8x256xf32>
    %178 = vector.extract_strided_slice %177 {offsets = [0, 0], sizes = [8, 64], strides = [1, 1]} : vector<8x256xf32> to vector<8x64xf32>
    %179 = vector.extract_strided_slice %177 {offsets = [0, 64], sizes = [8, 64], strides = [1, 1]} : vector<8x256xf32> to vector<8x64xf32>
    %180 = vector.extract_strided_slice %177 {offsets = [0, 192], sizes = [8, 64], strides = [1, 1]} : vector<8x256xf32> to vector<8x64xf32>
    %181 = vector.extract_strided_slice %172 {offsets = [0, 128], sizes = [8, 64], strides = [1, 1]} : vector<8x256xf32> to vector<8x64xf32>
    %182 = math.tanh %181 : vector<8x64xf32>
    %183 = arith.mulf %179, %146 : vector<8x64xf32>
    %184 = arith.mulf %178, %182 : vector<8x64xf32>
    %185 = arith.addf %183, %184 : vector<8x64xf32>
    %186 = math.tanh %185 : vector<8x64xf32>
    %187 = arith.mulf %180, %186 : vector<8x64xf32>
    %188 = arith.truncf %187 : vector<8x64xf32> to vector<8x64xbf16>
    %cst_72 = arith.constant dense<0.000000e+00> : vector<8x256xf32>
    %189 = tpu.matmul %188, %45, %cst_72 {dimension_numbers = #tpu.dot_dimension_numbers<[1], [0], [0], [1], [0, 0, 1, 1], [], []>} : vector<8x64xbf16>, vector<64x256xbf16>, vector<8x256xf32> -> vector<8x256xf32>
    %190 = arith.addf %189, %169 : vector<8x256xf32>
    %191 = arith.addf %190, %49 : vector<8x256xf32>
    %192 = arith.negf %191 : vector<8x256xf32>
    %193 = math.exp %192 : vector<8x256xf32>
    %cst_73 = arith.constant 1.000000e+00 : f32
    %194 = vector.broadcast %cst_73 : f32 to vector<8x256xf32>
    %195 = arith.addf %194, %193 : vector<8x256xf32>
    %196 = arith.divf %194, %195 : vector<8x256xf32>
    %197 = vector.extract_strided_slice %196 {offsets = [0, 0], sizes = [8, 64], strides = [1, 1]} : vector<8x256xf32> to vector<8x64xf32>
    %198 = vector.extract_strided_slice %196 {offsets = [0, 64], sizes = [8, 64], strides = [1, 1]} : vector<8x256xf32> to vector<8x64xf32>
    %199 = vector.extract_strided_slice %196 {offsets = [0, 192], sizes = [8, 64], strides = [1, 1]} : vector<8x256xf32> to vector<8x64xf32>
    %200 = vector.extract_strided_slice %191 {offsets = [0, 128], sizes = [8, 64], strides = [1, 1]} : vector<8x256xf32> to vector<8x64xf32>
    %201 = math.tanh %200 : vector<8x64xf32>
    %202 = arith.mulf %198, %165 : vector<8x64xf32>
    %203 = arith.mulf %197, %201 : vector<8x64xf32>
    %204 = arith.addf %202, %203 : vector<8x64xf32>
    %205 = math.tanh %204 : vector<8x64xf32>
    %206 = arith.mulf %199, %205 : vector<8x64xf32>
    %207 = arith.truncf %206 : vector<8x64xf32> to vector<8x64xbf16>
    %cst_74 = arith.constant dense<0.000000e+00> : vector<8x256xf32>
    %208 = tpu.matmul %207, %46, %cst_74 {dimension_numbers = #tpu.dot_dimension_numbers<[1], [0], [0], [1], [0, 0, 1, 1], [], []>} : vector<8x64xbf16>, vector<64x256xbf16>, vector<8x256xf32> -> vector<8x256xf32>
    %c32_75 = arith.constant 32 : index
    %c0_76 = arith.constant 0 : index
    %209 = vector.load %arg11[%c32_75, %c0_76] : memref<64x256xf32, #tpu.memory_space<vmem>>, vector<8x256xf32>
    %cst_77 = arith.constant dense<0.000000e+00> : vector<8x256xf32>
    %210 = tpu.matmul %188, %44, %cst_77 {dimension_numbers = #tpu.dot_dimension_numbers<[1], [0], [0], [1], [0, 0, 1, 1], [], []>} : vector<8x64xbf16>, vector<64x256xbf16>, vector<8x256xf32> -> vector<8x256xf32>
    %211 = arith.addf %209, %210 : vector<8x256xf32>
    %212 = arith.negf %211 : vector<8x256xf32>
    %213 = math.exp %212 : vector<8x256xf32>
    %cst_78 = arith.constant 1.000000e+00 : f32
    %214 = vector.broadcast %cst_78 : f32 to vector<8x256xf32>
    %215 = arith.addf %214, %213 : vector<8x256xf32>
    %216 = arith.divf %214, %215 : vector<8x256xf32>
    %217 = vector.extract_strided_slice %216 {offsets = [0, 0], sizes = [8, 64], strides = [1, 1]} : vector<8x256xf32> to vector<8x64xf32>
    %218 = vector.extract_strided_slice %216 {offsets = [0, 64], sizes = [8, 64], strides = [1, 1]} : vector<8x256xf32> to vector<8x64xf32>
    %219 = vector.extract_strided_slice %216 {offsets = [0, 192], sizes = [8, 64], strides = [1, 1]} : vector<8x256xf32> to vector<8x64xf32>
    %220 = vector.extract_strided_slice %211 {offsets = [0, 128], sizes = [8, 64], strides = [1, 1]} : vector<8x256xf32> to vector<8x64xf32>
    %221 = math.tanh %220 : vector<8x64xf32>
    %222 = arith.mulf %218, %185 : vector<8x64xf32>
    %223 = arith.mulf %217, %221 : vector<8x64xf32>
    %224 = arith.addf %222, %223 : vector<8x64xf32>
    %225 = math.tanh %224 : vector<8x64xf32>
    %226 = arith.mulf %219, %225 : vector<8x64xf32>
    %227 = arith.truncf %226 : vector<8x64xf32> to vector<8x64xbf16>
    %cst_79 = arith.constant dense<0.000000e+00> : vector<8x256xf32>
    %228 = tpu.matmul %227, %45, %cst_79 {dimension_numbers = #tpu.dot_dimension_numbers<[1], [0], [0], [1], [0, 0, 1, 1], [], []>} : vector<8x64xbf16>, vector<64x256xbf16>, vector<8x256xf32> -> vector<8x256xf32>
    %229 = arith.addf %228, %208 : vector<8x256xf32>
    %230 = arith.addf %229, %49 : vector<8x256xf32>
    %231 = arith.negf %230 : vector<8x256xf32>
    %232 = math.exp %231 : vector<8x256xf32>
    %cst_80 = arith.constant 1.000000e+00 : f32
    %233 = vector.broadcast %cst_80 : f32 to vector<8x256xf32>
    %234 = arith.addf %233, %232 : vector<8x256xf32>
    %235 = arith.divf %233, %234 : vector<8x256xf32>
    %236 = vector.extract_strided_slice %235 {offsets = [0, 0], sizes = [8, 64], strides = [1, 1]} : vector<8x256xf32> to vector<8x64xf32>
    %237 = vector.extract_strided_slice %235 {offsets = [0, 64], sizes = [8, 64], strides = [1, 1]} : vector<8x256xf32> to vector<8x64xf32>
    %238 = vector.extract_strided_slice %235 {offsets = [0, 192], sizes = [8, 64], strides = [1, 1]} : vector<8x256xf32> to vector<8x64xf32>
    %239 = vector.extract_strided_slice %230 {offsets = [0, 128], sizes = [8, 64], strides = [1, 1]} : vector<8x256xf32> to vector<8x64xf32>
    %240 = math.tanh %239 : vector<8x64xf32>
    %241 = arith.mulf %237, %204 : vector<8x64xf32>
    %242 = arith.mulf %236, %240 : vector<8x64xf32>
    %243 = arith.addf %241, %242 : vector<8x64xf32>
    %244 = math.tanh %243 : vector<8x64xf32>
    %245 = arith.mulf %238, %244 : vector<8x64xf32>
    %246 = arith.truncf %245 : vector<8x64xf32> to vector<8x64xbf16>
    %cst_81 = arith.constant dense<0.000000e+00> : vector<8x256xf32>
    %247 = tpu.matmul %246, %46, %cst_81 {dimension_numbers = #tpu.dot_dimension_numbers<[1], [0], [0], [1], [0, 0, 1, 1], [], []>} : vector<8x64xbf16>, vector<64x256xbf16>, vector<8x256xf32> -> vector<8x256xf32>
    %c40_82 = arith.constant 40 : index
    %c0_83 = arith.constant 0 : index
    %248 = vector.load %arg11[%c40_82, %c0_83] : memref<64x256xf32, #tpu.memory_space<vmem>>, vector<8x256xf32>
    %cst_84 = arith.constant dense<0.000000e+00> : vector<8x256xf32>
    %249 = tpu.matmul %227, %44, %cst_84 {dimension_numbers = #tpu.dot_dimension_numbers<[1], [0], [0], [1], [0, 0, 1, 1], [], []>} : vector<8x64xbf16>, vector<64x256xbf16>, vector<8x256xf32> -> vector<8x256xf32>
    %250 = arith.addf %248, %249 : vector<8x256xf32>
    %251 = arith.negf %250 : vector<8x256xf32>
    %252 = math.exp %251 : vector<8x256xf32>
    %cst_85 = arith.constant 1.000000e+00 : f32
    %253 = vector.broadcast %cst_85 : f32 to vector<8x256xf32>
    %254 = arith.addf %253, %252 : vector<8x256xf32>
    %255 = arith.divf %253, %254 : vector<8x256xf32>
    %256 = vector.extract_strided_slice %255 {offsets = [0, 0], sizes = [8, 64], strides = [1, 1]} : vector<8x256xf32> to vector<8x64xf32>
    %257 = vector.extract_strided_slice %255 {offsets = [0, 64], sizes = [8, 64], strides = [1, 1]} : vector<8x256xf32> to vector<8x64xf32>
    %258 = vector.extract_strided_slice %255 {offsets = [0, 192], sizes = [8, 64], strides = [1, 1]} : vector<8x256xf32> to vector<8x64xf32>
    %259 = vector.extract_strided_slice %250 {offsets = [0, 128], sizes = [8, 64], strides = [1, 1]} : vector<8x256xf32> to vector<8x64xf32>
    %260 = math.tanh %259 : vector<8x64xf32>
    %261 = arith.mulf %257, %224 : vector<8x64xf32>
    %262 = arith.mulf %256, %260 : vector<8x64xf32>
    %263 = arith.addf %261, %262 : vector<8x64xf32>
    %264 = math.tanh %263 : vector<8x64xf32>
    %265 = arith.mulf %258, %264 : vector<8x64xf32>
    %266 = arith.truncf %265 : vector<8x64xf32> to vector<8x64xbf16>
    %cst_86 = arith.constant dense<0.000000e+00> : vector<8x256xf32>
    %267 = tpu.matmul %266, %45, %cst_86 {dimension_numbers = #tpu.dot_dimension_numbers<[1], [0], [0], [1], [0, 0, 1, 1], [], []>} : vector<8x64xbf16>, vector<64x256xbf16>, vector<8x256xf32> -> vector<8x256xf32>
    %268 = arith.addf %267, %247 : vector<8x256xf32>
    %269 = arith.addf %268, %49 : vector<8x256xf32>
    %270 = arith.negf %269 : vector<8x256xf32>
    %271 = math.exp %270 : vector<8x256xf32>
    %cst_87 = arith.constant 1.000000e+00 : f32
    %272 = vector.broadcast %cst_87 : f32 to vector<8x256xf32>
    %273 = arith.addf %272, %271 : vector<8x256xf32>
    %274 = arith.divf %272, %273 : vector<8x256xf32>
    %275 = vector.extract_strided_slice %274 {offsets = [0, 0], sizes = [8, 64], strides = [1, 1]} : vector<8x256xf32> to vector<8x64xf32>
    %276 = vector.extract_strided_slice %274 {offsets = [0, 64], sizes = [8, 64], strides = [1, 1]} : vector<8x256xf32> to vector<8x64xf32>
    %277 = vector.extract_strided_slice %274 {offsets = [0, 192], sizes = [8, 64], strides = [1, 1]} : vector<8x256xf32> to vector<8x64xf32>
    %278 = vector.extract_strided_slice %269 {offsets = [0, 128], sizes = [8, 64], strides = [1, 1]} : vector<8x256xf32> to vector<8x64xf32>
    %279 = math.tanh %278 : vector<8x64xf32>
    %280 = arith.mulf %276, %243 : vector<8x64xf32>
    %281 = arith.mulf %275, %279 : vector<8x64xf32>
    %282 = arith.addf %280, %281 : vector<8x64xf32>
    %283 = math.tanh %282 : vector<8x64xf32>
    %284 = arith.mulf %277, %283 : vector<8x64xf32>
    %285 = arith.truncf %284 : vector<8x64xf32> to vector<8x64xbf16>
    %cst_88 = arith.constant dense<0.000000e+00> : vector<8x256xf32>
    %286 = tpu.matmul %285, %46, %cst_88 {dimension_numbers = #tpu.dot_dimension_numbers<[1], [0], [0], [1], [0, 0, 1, 1], [], []>} : vector<8x64xbf16>, vector<64x256xbf16>, vector<8x256xf32> -> vector<8x256xf32>
    %c48_89 = arith.constant 48 : index
    %c0_90 = arith.constant 0 : index
    %287 = vector.load %arg11[%c48_89, %c0_90] : memref<64x256xf32, #tpu.memory_space<vmem>>, vector<8x256xf32>
    %cst_91 = arith.constant dense<0.000000e+00> : vector<8x256xf32>
    %288 = tpu.matmul %266, %44, %cst_91 {dimension_numbers = #tpu.dot_dimension_numbers<[1], [0], [0], [1], [0, 0, 1, 1], [], []>} : vector<8x64xbf16>, vector<64x256xbf16>, vector<8x256xf32> -> vector<8x256xf32>
    %289 = arith.addf %287, %288 : vector<8x256xf32>
    %290 = arith.negf %289 : vector<8x256xf32>
    %291 = math.exp %290 : vector<8x256xf32>
    %cst_92 = arith.constant 1.000000e+00 : f32
    %292 = vector.broadcast %cst_92 : f32 to vector<8x256xf32>
    %293 = arith.addf %292, %291 : vector<8x256xf32>
    %294 = arith.divf %292, %293 : vector<8x256xf32>
    %295 = vector.extract_strided_slice %294 {offsets = [0, 0], sizes = [8, 64], strides = [1, 1]} : vector<8x256xf32> to vector<8x64xf32>
    %296 = vector.extract_strided_slice %294 {offsets = [0, 64], sizes = [8, 64], strides = [1, 1]} : vector<8x256xf32> to vector<8x64xf32>
    %297 = vector.extract_strided_slice %294 {offsets = [0, 192], sizes = [8, 64], strides = [1, 1]} : vector<8x256xf32> to vector<8x64xf32>
    %298 = vector.extract_strided_slice %289 {offsets = [0, 128], sizes = [8, 64], strides = [1, 1]} : vector<8x256xf32> to vector<8x64xf32>
    %299 = math.tanh %298 : vector<8x64xf32>
    %300 = arith.mulf %296, %263 : vector<8x64xf32>
    %301 = arith.mulf %295, %299 : vector<8x64xf32>
    %302 = arith.addf %300, %301 : vector<8x64xf32>
    %303 = math.tanh %302 : vector<8x64xf32>
    %304 = arith.mulf %297, %303 : vector<8x64xf32>
    %305 = arith.truncf %304 : vector<8x64xf32> to vector<8x64xbf16>
    %cst_93 = arith.constant dense<0.000000e+00> : vector<8x256xf32>
    %306 = tpu.matmul %305, %45, %cst_93 {dimension_numbers = #tpu.dot_dimension_numbers<[1], [0], [0], [1], [0, 0, 1, 1], [], []>} : vector<8x64xbf16>, vector<64x256xbf16>, vector<8x256xf32> -> vector<8x256xf32>
    %307 = arith.addf %306, %286 : vector<8x256xf32>
    %308 = arith.addf %307, %49 : vector<8x256xf32>
    %309 = arith.negf %308 : vector<8x256xf32>
    %310 = math.exp %309 : vector<8x256xf32>
    %cst_94 = arith.constant 1.000000e+00 : f32
    %311 = vector.broadcast %cst_94 : f32 to vector<8x256xf32>
    %312 = arith.addf %311, %310 : vector<8x256xf32>
    %313 = arith.divf %311, %312 : vector<8x256xf32>
    %314 = vector.extract_strided_slice %313 {offsets = [0, 0], sizes = [8, 64], strides = [1, 1]} : vector<8x256xf32> to vector<8x64xf32>
    %315 = vector.extract_strided_slice %313 {offsets = [0, 64], sizes = [8, 64], strides = [1, 1]} : vector<8x256xf32> to vector<8x64xf32>
    %316 = vector.extract_strided_slice %313 {offsets = [0, 192], sizes = [8, 64], strides = [1, 1]} : vector<8x256xf32> to vector<8x64xf32>
    %317 = vector.extract_strided_slice %308 {offsets = [0, 128], sizes = [8, 64], strides = [1, 1]} : vector<8x256xf32> to vector<8x64xf32>
    %318 = math.tanh %317 : vector<8x64xf32>
    %319 = arith.mulf %315, %282 : vector<8x64xf32>
    %320 = arith.mulf %314, %318 : vector<8x64xf32>
    %321 = arith.addf %319, %320 : vector<8x64xf32>
    %322 = math.tanh %321 : vector<8x64xf32>
    %323 = arith.mulf %316, %322 : vector<8x64xf32>
    %324 = arith.truncf %323 : vector<8x64xf32> to vector<8x64xbf16>
    %cst_95 = arith.constant dense<0.000000e+00> : vector<8x256xf32>
    %325 = tpu.matmul %324, %46, %cst_95 {dimension_numbers = #tpu.dot_dimension_numbers<[1], [0], [0], [1], [0, 0, 1, 1], [], []>} : vector<8x64xbf16>, vector<64x256xbf16>, vector<8x256xf32> -> vector<8x256xf32>
    %c56_96 = arith.constant 56 : index
    %c0_97 = arith.constant 0 : index
    %326 = vector.load %arg11[%c56_96, %c0_97] : memref<64x256xf32, #tpu.memory_space<vmem>>, vector<8x256xf32>
    %cst_98 = arith.constant dense<0.000000e+00> : vector<8x256xf32>
    %327 = tpu.matmul %305, %44, %cst_98 {dimension_numbers = #tpu.dot_dimension_numbers<[1], [0], [0], [1], [0, 0, 1, 1], [], []>} : vector<8x64xbf16>, vector<64x256xbf16>, vector<8x256xf32> -> vector<8x256xf32>
    %328 = arith.addf %326, %327 : vector<8x256xf32>
    %329 = arith.negf %328 : vector<8x256xf32>
    %330 = math.exp %329 : vector<8x256xf32>
    %cst_99 = arith.constant 1.000000e+00 : f32
    %331 = vector.broadcast %cst_99 : f32 to vector<8x256xf32>
    %332 = arith.addf %331, %330 : vector<8x256xf32>
    %333 = arith.divf %331, %332 : vector<8x256xf32>
    %334 = vector.extract_strided_slice %333 {offsets = [0, 0], sizes = [8, 64], strides = [1, 1]} : vector<8x256xf32> to vector<8x64xf32>
    %335 = vector.extract_strided_slice %333 {offsets = [0, 64], sizes = [8, 64], strides = [1, 1]} : vector<8x256xf32> to vector<8x64xf32>
    %336 = vector.extract_strided_slice %333 {offsets = [0, 192], sizes = [8, 64], strides = [1, 1]} : vector<8x256xf32> to vector<8x64xf32>
    %337 = vector.extract_strided_slice %328 {offsets = [0, 128], sizes = [8, 64], strides = [1, 1]} : vector<8x256xf32> to vector<8x64xf32>
    %338 = math.tanh %337 : vector<8x64xf32>
    %339 = arith.mulf %335, %302 : vector<8x64xf32>
    %340 = arith.mulf %334, %338 : vector<8x64xf32>
    %341 = arith.addf %339, %340 : vector<8x64xf32>
    %342 = math.tanh %341 : vector<8x64xf32>
    %343 = arith.mulf %336, %342 : vector<8x64xf32>
    %344 = arith.truncf %343 : vector<8x64xf32> to vector<8x64xbf16>
    %cst_100 = arith.constant dense<0.000000e+00> : vector<8x256xf32>
    %345 = tpu.matmul %344, %45, %cst_100 {dimension_numbers = #tpu.dot_dimension_numbers<[1], [0], [0], [1], [0, 0, 1, 1], [], []>} : vector<8x64xbf16>, vector<64x256xbf16>, vector<8x256xf32> -> vector<8x256xf32>
    %346 = arith.addf %345, %325 : vector<8x256xf32>
    %347 = arith.addf %346, %49 : vector<8x256xf32>
    %348 = arith.negf %347 : vector<8x256xf32>
    %349 = math.exp %348 : vector<8x256xf32>
    %cst_101 = arith.constant 1.000000e+00 : f32
    %350 = vector.broadcast %cst_101 : f32 to vector<8x256xf32>
    %351 = arith.addf %350, %349 : vector<8x256xf32>
    %352 = arith.divf %350, %351 : vector<8x256xf32>
    %353 = vector.extract_strided_slice %352 {offsets = [0, 0], sizes = [8, 64], strides = [1, 1]} : vector<8x256xf32> to vector<8x64xf32>
    %354 = vector.extract_strided_slice %352 {offsets = [0, 64], sizes = [8, 64], strides = [1, 1]} : vector<8x256xf32> to vector<8x64xf32>
    %355 = vector.extract_strided_slice %352 {offsets = [0, 192], sizes = [8, 64], strides = [1, 1]} : vector<8x256xf32> to vector<8x64xf32>
    %356 = vector.extract_strided_slice %347 {offsets = [0, 128], sizes = [8, 64], strides = [1, 1]} : vector<8x256xf32> to vector<8x64xf32>
    %357 = math.tanh %356 : vector<8x64xf32>
    %358 = arith.mulf %354, %321 : vector<8x64xf32>
    %359 = arith.mulf %353, %357 : vector<8x64xf32>
    %360 = arith.addf %358, %359 : vector<8x64xf32>
    %361 = math.tanh %360 : vector<8x64xf32>
    %362 = arith.mulf %355, %361 : vector<8x64xf32>
    %c0_102 = arith.constant 0 : index
    %c0_103 = arith.constant 0 : index
    %363 = vector.load %arg8[%c0_102, %c0_103] : memref<64x128xf32, #tpu.memory_space<vmem>>, vector<64x128xf32>
    %cst_104 = arith.constant dense<0.000000e+00> : vector<8x128xf32>
    %364 = tpu.matmul %362, %363, %cst_104 {dimension_numbers = #tpu.dot_dimension_numbers<[1], [0], [0], [1], [0, 0, 1, 1], [], []>} : vector<8x64xf32>, vector<64x128xf32>, vector<8x128xf32> -> vector<8x128xf32>
    %c0_105 = arith.constant 0 : index
    %c0_106 = arith.constant 0 : index
    %365 = vector.load %arg9[%c0_105, %c0_106] : memref<1x128xf32, #tpu.memory_space<vmem>>, vector<1x128xf32>
    %366 = vector.broadcast %365 : vector<1x128xf32> to vector<8x128xf32>
    %367 = arith.addf %364, %366 : vector<8x128xf32>
    %c0_107 = arith.constant 0 : index
    %c0_108 = arith.constant 0 : index
    %368 = vector.load %arg10[%c0_107, %c0_108] : memref<8x128xf32, #tpu.memory_space<vmem>>, vector<8x128xf32>
    tpu.vector_store %arg10[%c0_107, %c0_108], %367 {strides = array<i32>} : memref<8x128xf32, #tpu.memory_space<vmem>>, vector<8x128xf32>,
    return
  }
  func.func @transform_0(%arg0: i32) -> (i32, i32, i32) {
    %c0_i32 = arith.constant 0 : i32
    %c0_i32_0 = arith.constant 0 : i32
    %c0_i32_1 = arith.constant 0 : i32
    return %c0_i32, %arg0, %c0_i32_0 : i32, i32, i32
  }
  func.func @transform_1(%arg0: i32) -> (i32, i32) {
    %c0_i32 = arith.constant 0 : i32
    %c0_i32_0 = arith.constant 0 : i32
    %c0_i32_1 = arith.constant 0 : i32
    return %c0_i32, %c0_i32_0 : i32, i32
  }
  func.func @transform_2(%arg0: i32) -> (i32, i32) {
    %c0_i32 = arith.constant 0 : i32
    %c0_i32_0 = arith.constant 0 : i32
    %c0_i32_1 = arith.constant 0 : i32
    return %c0_i32, %c0_i32_0 : i32, i32
  }
  func.func @transform_3(%arg0: i32) -> (i32, i32) {
    %c0_i32 = arith.constant 0 : i32
    %c0_i32_0 = arith.constant 0 : i32
    %c0_i32_1 = arith.constant 0 : i32
    return %c0_i32, %c0_i32_0 : i32, i32
  }
  func.func @transform_4(%arg0: i32) -> (i32, i32) {
    %c0_i32 = arith.constant 0 : i32
    %c0_i32_0 = arith.constant 0 : i32
    %c0_i32_1 = arith.constant 0 : i32
    return %c0_i32, %c0_i32_0 : i32, i32
  }
  func.func @transform_5(%arg0: i32) -> (i32, i32) {
    %c0_i32 = arith.constant 0 : i32
    %c0_i32_0 = arith.constant 0 : i32
    %c0_i32_1 = arith.constant 0 : i32
    return %c0_i32, %c0_i32_0 : i32, i32
  }
  func.func @transform_6(%arg0: i32) -> (i32, i32) {
    %c0_i32 = arith.constant 0 : i32
    %c0_i32_0 = arith.constant 0 : i32
    %c0_i32_1 = arith.constant 0 : i32
    return %c0_i32, %c0_i32_0 : i32, i32
  }
  func.func @transform_7(%arg0: i32) -> (i32, i32) {
    %c0_i32 = arith.constant 0 : i32
    %c0_i32_0 = arith.constant 0 : i32
    %c0_i32_1 = arith.constant 0 : i32
    return %c0_i32, %c0_i32_0 : i32, i32
  }
  func.func @transform_8(%arg0: i32) -> (i32, i32) {
    %c0_i32 = arith.constant 0 : i32
    %c0_i32_0 = arith.constant 0 : i32
    %c0_i32_1 = arith.constant 0 : i32
    return %c0_i32, %c0_i32_0 : i32, i32
  }
  func.func @transform_9(%arg0: i32) -> (i32, i32) {
    %c0_i32 = arith.constant 0 : i32
    %c0_i32_0 = arith.constant 0 : i32
    return %arg0, %c0_i32 : i32, i32
  }
}

</mosaic_0001>

<llo_original>
// kernel: _rnn_forward_impl.1
$region0: #{_rnn_forward_impl.1}
  #allocation0 [shape = 'u32[]', space=smem, size = 0x4, offset = 0x4, fixed_abs, tag = 'smem constant byte address 0x4 - core index']
  #allocation1 [shape = 'u32[144,128]{1,0:T(1,128)}', space=vmem, size = 0x12000, scoped, tag = 'internal scratch']
  #allocation2 [shape = 'f32[64,256]{1,0:T(8,128)}', space=vmem, size = 0x10000, scoped, tag = 'scratch operand']
  %s0 = inlined_call_operand.vmem [shape: f32[8,8,32], index: 0, kind: input, shape index: {}]
  %s1 = inlined_call_operand.vmem [shape: f32[32,256], index: 1, kind: input, shape index: {}]
  %s2 = inlined_call_operand.vmem [shape: bf16[64,256], index: 2, kind: input, shape index: {}]
  %s3 = inlined_call_operand.vmem [shape: f32[1,256], index: 3, kind: input, shape index: {}]
  %s4 = inlined_call_operand.vmem [shape: bf16[64,256], index: 4, kind: input, shape index: {}]
  %s5 = inlined_call_operand.vmem [shape: bf16[64,256], index: 5, kind: input, shape index: {}]
  %s6 = inlined_call_operand.vmem [shape: f32[1,256], index: 6, kind: input, shape index: {}]
  %s7 = inlined_call_operand.vmem [shape: f32[64,128], index: 7, kind: input, shape index: {}]
  %s8 = inlined_call_operand.vmem [shape: f32[1,128], index: 8, kind: input, shape index: {}]
  %s9 = inlined_call_operand.vmem [shape: f32[8,128], index: 9, kind: output, shape index: {}]
  %s10 = sld [smem:[#allocation0]]
  $region46: #{_rnn_forward_impl.1} parent=0
    _
  %s12 = ssub.s32 1, %s10
  %s13 = scalar_select 0, %s12, %s10
  // Predicated region
  $region2: #{_rnn_forward_impl.1} parent=0 // pred_check
    _
  $region3: #{_rnn_forward_impl.1} parent=0 // pred_check_branch
    %15 = sbr.rel (0) target = $region5
  $region4: #{_rnn_forward_impl.1} parent=0 // pred_region
    _
  $region5: #{_rnn_forward_impl.1} parent=0 // pred_fallthru
    _
  // Predicated region
  $region6: #{_rnn_forward_impl.1} parent=0 // pred_check
    _
  $region7: #{_rnn_forward_impl.1} parent=0 // pred_check_branch
    %17 = sbr.rel (0) target = $region9
  $region8: #{_rnn_forward_impl.1} parent=0 // pred_region
    _
  $region9: #{_rnn_forward_impl.1} parent=0 // pred_fallthru
    _
  // Predicated region
  $region10: #{_rnn_forward_impl.1} parent=0 // pred_check
    _
  $region11: #{_rnn_forward_impl.1} parent=0 // pred_check_branch
    %19 = sbr.rel (0) target = $region13
  $region12: #{_rnn_forward_impl.1} parent=0 // pred_region
    _
  $region13: #{_rnn_forward_impl.1} parent=0 // pred_fallthru
    _
  // Predicated region
  $region14: #{_rnn_forward_impl.1} parent=0 // pred_check
    _
  $region15: #{_rnn_forward_impl.1} parent=0 // pred_check_branch
    %21 = sbr.rel (0) target = $region17
  $region16: #{_rnn_forward_impl.1} parent=0 // pred_region
    _
  $region17: #{_rnn_forward_impl.1} parent=0 // pred_fallthru
    _
  // Predicated region
  $region18: #{_rnn_forward_impl.1} parent=0 // pred_check
    _
  $region19: #{_rnn_forward_impl.1} parent=0 // pred_check_branch
    %23 = sbr.rel (0) target = $region21
  $region20: #{_rnn_forward_impl.1} parent=0 // pred_region
    _
  $region21: #{_rnn_forward_impl.1} parent=0 // pred_fallthru
    _
  // Predicated region
  $region22: #{_rnn_forward_impl.1} parent=0 // pred_check
    _
  $region23: #{_rnn_forward_impl.1} parent=0 // pred_check_branch
    %25 = sbr.rel (0) target = $region25
  $region24: #{_rnn_forward_impl.1} parent=0 // pred_region
    _
  $region25: #{_rnn_forward_impl.1} parent=0 // pred_fallthru
    _
  // Predicated region
  $region26: #{_rnn_forward_impl.1} parent=0 // pred_check
    _
  $region27: #{_rnn_forward_impl.1} parent=0 // pred_check_branch
    %27 = sbr.rel (0) target = $region29
  $region28: #{_rnn_forward_impl.1} parent=0 // pred_region
    _
  $region29: #{_rnn_forward_impl.1} parent=0 // pred_fallthru
    _
  // Predicated region
  $region30: #{_rnn_forward_impl.1} parent=0 // pred_check
    _
  $region31: #{_rnn_forward_impl.1} parent=0 // pred_check_branch
    %29 = sbr.rel (0) target = $region33
  $region32: #{_rnn_forward_impl.1} parent=0 // pred_region
    _
  $region33: #{_rnn_forward_impl.1} parent=0 // pred_fallthru
    _
  // Predicated region
  $region34: #{_rnn_forward_impl.1} parent=0 // pred_check
    _
  $region35: #{_rnn_forward_impl.1} parent=0 // pred_check_branch
    %31 = sbr.rel (0) target = $region37
  $region36: #{_rnn_forward_impl.1} parent=0 // pred_region
    _
  $region37: #{_rnn_forward_impl.1} parent=0 // pred_fallthru
    _
  %v33 = vld [vmem:[%s3] sm:$0x3]
  %v35 = vlaneseq
  %v36 = vshrl.u32 %v35, 7
  %v37 = vsub.s32 0, %v36
  %v38 = vrot.slane %v33, %v37
  %v39 = vlaneseq
  %v40 = vshrl.u32 %v39, 7
  %v41 = vsub.s32 1, %v40
  %v42 = vrot.slane %v33, %v41
  %v45 = vld [vmem:[%s1] sm:$0xff]
  %v46 = vld [vmem:[%s1 + $0x8] sm:$0xff]
  %v47 = vld [vmem:[%s1 + $0x10] sm:$0xff]
  %v48 = vld [vmem:[%s1 + $0x18] sm:$0xff]
  %v49 = vld [vmem:[%s1 + $0x20] sm:$0xff]
  %v50 = vld [vmem:[%s1 + $0x28] sm:$0xff]
  %v51 = vld [vmem:[%s1 + $0x30] sm:$0xff]
  %v52 = vld [vmem:[%s1 + $0x38] sm:$0xff]
  %v53 = vld [vmem:[%s0] sm:$0xff]
  %vm54 = vcmask 261120
  %v56 = vsel %vm54, %v53, 0
  %58 = vmatprep.subr.mxu0 0.0
  %59 = vmatpush1.msra.mxu0 0.0
  %60 = vmatprep.subr.mxu0 0.0
  %61 = vmatpush1.msra.mxu0 0.0
  %62 = vmatprep.subr.mxu0 0.0
  %63 = vmatpush1.msra.mxu0 0.0
  %64 = vmatprep.subr.mxu0 0.0
  %65 = vmatpush1.msra.mxu0 0.0
  %66 = vmatprep.subr.mxu0 0.0
  %67 = vmatpush1.msra.mxu0 0.0
  %68 = vmatprep.subr.mxu0 0.0
  %69 = vmatpush1.msra.mxu0 0.0
  %70 = vmatprep.subr.mxu0 0.0
  %71 = vmatpush1.msra.mxu0 0.0
  %72 = vmatprep.subr.mxu0 0.0
  %73 = vmatpush1.msra.mxu0 0.0
  %74 = vmatprep.subr.mxu0 0.0
  %75 = vmatpush1.msra.mxu0 0.0
  %76 = vmatprep.subr.mxu0 0.0
  %77 = vmatpush1.msra.mxu0 0.0
  %78 = vmatprep.subr.mxu0 0.0
  %79 = vmatpush1.msra.mxu0 0.0
  %80 = vmatprep.subr.mxu0 0.0
  %81 = vmatpush1.msra.mxu0 0.0
  %82 = vmatprep.subr.mxu0 %v52
  %83 = vmatpush1.msra.mxu0 %v51
  %84 = vmatprep.subr.mxu0 %v50
  %85 = vmatpush1.msra.mxu0 %v49
  %86 = vmatprep.subr.mxu0 %v48
  %87 = vmatpush1.msra.mxu0 %v47
  %88 = vmatprep.subr.mxu0 %v46
  %89 = vmatpush1.msra.mxu0 %v45
  %90 = vmatprep.subr.mxu0 0.0
  %91 = vmatpush2.msra.mxu0 0.0
  %92 = vmatprep.subr.mxu0 0.0
  %93 = vmatpush2.msra.mxu0 0.0
  %94 = vmatprep.subr.mxu0 0.0
  %95 = vmatpush2.msra.mxu0 0.0
  %96 = vmatprep.subr.mxu0 0.0
  %97 = vmatpush2.msra.mxu0 0.0
  %98 = vmatprep.subr.mxu0 0.0
  %99 = vmatpush2.msra.mxu0 0.0
  %100 = vmatprep.subr.mxu0 0.0
  %101 = vmatpush2.msra.mxu0 0.0
  %102 = vmatprep.subr.mxu0 0.0
  %103 = vmatpush2.msra.mxu0 0.0
  %104 = vmatprep.subr.mxu0 0.0
  %105 = vmatpush2.msra.mxu0 0.0
  %106 = vmatprep.subr.mxu0 0.0
  %107 = vmatpush2.msra.mxu0 0.0
  %108 = vmatprep.subr.mxu0 0.0
  %109 = vmatpush2.msra.mxu0 0.0
  %110 = vmatprep.subr.mxu0 0.0
  %111 = vmatpush2.msra.mxu0 0.0
  %112 = vmatprep.subr.mxu0 0.0
  %113 = vmatpush2.msra.mxu0 0.0
  %114 = vmatprep.subr.mxu0 0.0
  %115 = vmatpush2.msra.mxu0 0.0
  %116 = vmatprep.subr.mxu0 0.0
  %117 = vmatpush2.msra.mxu0 0.0
  %118 = vmatprep.subr.mxu0 0.0
  %119 = vmatpush2.msra.mxu0 0.0
  %120 = vmatprep.subr.mxu0 0.0
  %121 = vmatpush2.msra.mxu0 0.0
  %122 = vmatprep.mubr.f32.mxu0 0.0
  %123 = vmatmul.mubr.f32.gmra.mxu0 %v56
  %v124 = vpop.f32.mrf.mxu0
  %v125 = vadd.f32 %v38, %v124
  %v126 = vpop.f32.mrf.mxu0
  %v127 = vadd.f32 %v42, %v126
  %128 = vdwg.mxu0
  %129 = vst [vmem:[#allocation2] sm:$0xff] %v125
  %130 = vst [vmem:[#allocation2 + $0x8] sm:$0xff] %v127
  %s131 = scalar_lea.vmem %s0, 8
  %v132 = vld [vmem:[%s131] sm:$0xff]
  %v134 = vsel %vm54, %v132, 0
  %136 = vmatprep.subr.mxu0 0.0
  %137 = vmatpush1.msra.mxu0 0.0
  %138 = vmatprep.subr.mxu0 0.0
  %139 = vmatpush1.msra.mxu0 0.0
  %140 = vmatprep.subr.mxu0 0.0
  %141 = vmatpush1.msra.mxu0 0.0
  %142 = vmatprep.subr.mxu0 0.0
  %143 = vmatpush1.msra.mxu0 0.0
  %144 = vmatprep.subr.mxu0 0.0
  %145 = vmatpush1.msra.mxu0 0.0
  %146 = vmatprep.subr.mxu0 0.0
  %147 = vmatpush1.msra.mxu0 0.0
  %148 = vmatprep.subr.mxu0 0.0
  %149 = vmatpush1.msra.mxu0 0.0
  %150 = vmatprep.subr.mxu0 0.0
  %151 = vmatpush1.msra.mxu0 0.0
  %152 = vmatprep.subr.mxu0 0.0
  %153 = vmatpush1.msra.mxu0 0.0
  %154 = vmatprep.subr.mxu0 0.0
  %155 = vmatpush1.msra.mxu0 0.0
  %156 = vmatprep.subr.mxu0 0.0
  %157 = vmatpush1.msra.mxu0 0.0
  %158 = vmatprep.subr.mxu0 0.0
  %159 = vmatpush1.msra.mxu0 0.0
  %160 = vmatprep.subr.mxu0 %v52
  %161 = vmatpush1.msra.mxu0 %v51
  %162 = vmatprep.subr.mxu0 %v50
  %163 = vmatpush1.msra.mxu0 %v49
  %164 = vmatprep.subr.mxu0 %v48
  %165 = vmatpush1.msra.mxu0 %v47
  %166 = vmatprep.subr.mxu0 %v46
  %167 = vmatpush1.msra.mxu0 %v45
  %168 = vmatprep.subr.mxu0 0.0
  %169 = vmatpush2.msra.mxu0 0.0
  %170 = vmatprep.subr.mxu0 0.0
  %171 = vmatpush2.msra.mxu0 0.0
  %172 = vmatprep.subr.mxu0 0.0
  %173 = vmatpush2.msra.mxu0 0.0
  %174 = vmatprep.subr.mxu0 0.0
  %175 = vmatpush2.msra.mxu0 0.0
  %176 = vmatprep.subr.mxu0 0.0
  %177 = vmatpush2.msra.mxu0 0.0
  %178 = vmatprep.subr.mxu0 0.0
  %179 = vmatpush2.msra.mxu0 0.0
  %180 = vmatprep.subr.mxu0 0.0
  %181 = vmatpush2.msra.mxu0 0.0
  %182 = vmatprep.subr.mxu0 0.0
  %183 = vmatpush2.msra.mxu0 0.0
  %184 = vmatprep.subr.mxu0 0.0
  %185 = vmatpush2.msra.mxu0 0.0
  %186 = vmatprep.subr.mxu0 0.0
  %187 = vmatpush2.msra.mxu0 0.0
  %188 = vmatprep.subr.mxu0 0.0
  %189 = vmatpush2.msra.mxu0 0.0
  %190 = vmatprep.subr.mxu0 0.0
  %191 = vmatpush2.msra.mxu0 0.0
  %192 = vmatprep.subr.mxu0 0.0
  %193 = vmatpush2.msra.mxu0 0.0
  %194 = vmatprep.subr.mxu0 0.0
  %195 = vmatpush2.msra.mxu0 0.0
  %196 = vmatprep.subr.mxu0 0.0
  %197 = vmatpush2.msra.mxu0 0.0
  %198 = vmatprep.subr.mxu0 0.0
  %199 = vmatpush2.msra.mxu0 0.0
  %200 = vmatprep.mubr.f32.mxu0 0.0
  %201 = vmatmul.mubr.f32.gmra.mxu0 %v134
  %v202 = vpop.f32.mrf.mxu0
  %v203 = vadd.f32 %v38, %v202
  %v204 = vpop.f32.mrf.mxu0
  %v205 = vadd.f32 %v42, %v204
  %206 = vdwg.mxu0
  %207 = vst [vmem:[#allocation2 + $0x10] sm:$0xff] %v203
  %208 = vst [vmem:[#allocation2 + $0x18] sm:$0xff] %v205
  %s209 = scalar_lea.vmem %s0, 16
  %v210 = vld [vmem:[%s209] sm:$0xff]
  %v212 = vsel %vm54, %v210, 0
  %214 = vmatprep.subr.mxu0 0.0
  %215 = vmatpush1.msra.mxu0 0.0
  %216 = vmatprep.subr.mxu0 0.0
  %217 = vmatpush1.msra.mxu0 0.0
  %218 = vmatprep.subr.mxu0 0.0
  %219 = vmatpush1.msra.mxu0 0.0
  %220 = vmatprep.subr.mxu0 0.0
  %221 = vmatpush1.msra.mxu0 0.0
  %222 = vmatprep.subr.mxu0 0.0
  %223 = vmatpush1.msra.mxu0 0.0
  %224 = vmatprep.subr.mxu0 0.0
  %225 = vmatpush1.msra.mxu0 0.0
  %226 = vmatprep.subr.mxu0 0.0
  %227 = vmatpush1.msra.mxu0 0.0
  %228 = vmatprep.subr.mxu0 0.0
  %229 = vmatpush1.msra.mxu0 0.0
  %230 = vmatprep.subr.mxu0 0.0
  %231 = vmatpush1.msra.mxu0 0.0
  %232 = vmatprep.subr.mxu0 0.0
  %233 = vmatpush1.msra.mxu0 0.0
  %234 = vmatprep.subr.mxu0 0.0
  %235 = vmatpush1.msra.mxu0 0.0
  %236 = vmatprep.subr.mxu0 0.0
  %237 = vmatpush1.msra.mxu0 0.0
  %238 = vmatprep.subr.mxu0 %v52
  %239 = vmatpush1.msra.mxu0 %v51
  %240 = vmatprep.subr.mxu0 %v50
  %241 = vmatpush1.msra.mxu0 %v49
  %242 = vmatprep.subr.mxu0 %v48
  %243 = vmatpush1.msra.mxu0 %v47
  %244 = vmatprep.subr.mxu0 %v46
  %245 = vmatpush1.msra.mxu0 %v45
  %246 = vmatprep.subr.mxu0 0.0
  %247 = vmatpush2.msra.mxu0 0.0
  %248 = vmatprep.subr.mxu0 0.0
  %249 = vmatpush2.msra.mxu0 0.0
  %250 = vmatprep.subr.mxu0 0.0
  %251 = vmatpush2.msra.mxu0 0.0
  %252 = vmatprep.subr.mxu0 0.0
  %253 = vmatpush2.msra.mxu0 0.0
  %254 = vmatprep.subr.mxu0 0.0
  %255 = vmatpush2.msra.mxu0 0.0
  %256 = vmatprep.subr.mxu0 0.0
  %257 = vmatpush2.msra.mxu0 0.0
  %258 = vmatprep.subr.mxu0 0.0
  %259 = vmatpush2.msra.mxu0 0.0
  %260 = vmatprep.subr.mxu0 0.0
  %261 = vmatpush2.msra.mxu0 0.0
  %262 = vmatprep.subr.mxu0 0.0
  %263 = vmatpush2.msra.mxu0 0.0
  %264 = vmatprep.subr.mxu0 0.0
  %265 = vmatpush2.msra.mxu0 0.0
  %266 = vmatprep.subr.mxu0 0.0
  %267 = vmatpush2.msra.mxu0 0.0
  %268 = vmatprep.subr.mxu0 0.0
  %269 = vmatpush2.msra.mxu0 0.0
  %270 = vmatprep.subr.mxu0 0.0
  %271 = vmatpush2.msra.mxu0 0.0
  %272 = vmatprep.subr.mxu0 0.0
  %273 = vmatpush2.msra.mxu0 0.0
  %274 = vmatprep.subr.mxu0 0.0
  %275 = vmatpush2.msra.mxu0 0.0
  %276 = vmatprep.subr.mxu0 0.0
  %277 = vmatpush2.msra.mxu0 0.0
  %278 = vmatprep.mubr.f32.mxu0 0.0
  %279 = vmatmul.mubr.f32.gmra.mxu0 %v212
  %v280 = vpop.f32.mrf.mxu0
  %v281 = vadd.f32 %v38, %v280
  %v282 = vpop.f32.mrf.mxu0
  %v283 = vadd.f32 %v42, %v282
  %284 = vdwg.mxu0
  %285 = vst [vmem:[#allocation2 + $0x20] sm:$0xff] %v281
  %286 = vst [vmem:[#allocation2 + $0x28] sm:$0xff] %v283
  %s287 = scalar_lea.vmem %s0, 24
  %v288 = vld [vmem:[%s287] sm:$0xff]
  %v290 = vsel %vm54, %v288, 0
  %292 = vmatprep.subr.mxu0 0.0
  %293 = vmatpush1.msra.mxu0 0.0
  %294 = vmatprep.subr.mxu0 0.0
  %295 = vmatpush1.msra.mxu0 0.0
  %296 = vmatprep.subr.mxu0 0.0
  %297 = vmatpush1.msra.mxu0 0.0
  %298 = vmatprep.subr.mxu0 0.0
  %299 = vmatpush1.msra.mxu0 0.0
  %300 = vmatprep.subr.mxu0 0.0
  %301 = vmatpush1.msra.mxu0 0.0
  %302 = vmatprep.subr.mxu0 0.0
  %303 = vmatpush1.msra.mxu0 0.0
  %304 = vmatprep.subr.mxu0 0.0
  %305 = vmatpush1.msra.mxu0 0.0
  %306 = vmatprep.subr.mxu0 0.0
  %307 = vmatpush1.msra.mxu0 0.0
  %308 = vmatprep.subr.mxu0 0.0
  %309 = vmatpush1.msra.mxu0 0.0
  %310 = vmatprep.subr.mxu0 0.0
  %311 = vmatpush1.msra.mxu0 0.0
  %312 = vmatprep.subr.mxu0 0.0
  %313 = vmatpush1.msra.mxu0 0.0
  %314 = vmatprep.subr.mxu0 0.0
  %315 = vmatpush1.msra.mxu0 0.0
  %316 = vmatprep.subr.mxu0 %v52
  %317 = vmatpush1.msra.mxu0 %v51
  %318 = vmatprep.subr.mxu0 %v50
  %319 = vmatpush1.msra.mxu0 %v49
  %320 = vmatprep.subr.mxu0 %v48
  %321 = vmatpush1.msra.mxu0 %v47
  %322 = vmatprep.subr.mxu0 %v46
  %323 = vmatpush1.msra.mxu0 %v45
  %324 = vmatprep.subr.mxu0 0.0
  %325 = vmatpush2.msra.mxu0 0.0
  %326 = vmatprep.subr.mxu0 0.0
  %327 = vmatpush2.msra.mxu0 0.0
  %328 = vmatprep.subr.mxu0 0.0
  %329 = vmatpush2.msra.mxu0 0.0
  %330 = vmatprep.subr.mxu0 0.0
  %331 = vmatpush2.msra.mxu0 0.0
  %332 = vmatprep.subr.mxu0 0.0
  %333 = vmatpush2.msra.mxu0 0.0
  %334 = vmatprep.subr.mxu0 0.0
  %335 = vmatpush2.msra.mxu0 0.0
  %336 = vmatprep.subr.mxu0 0.0
  %337 = vmatpush2.msra.mxu0 0.0
  %338 = vmatprep.subr.mxu0 0.0
  %339 = vmatpush2.msra.mxu0 0.0
  %340 = vmatprep.subr.mxu0 0.0
  %341 = vmatpush2.msra.mxu0 0.0
  %342 = vmatprep.subr.mxu0 0.0
  %343 = vmatpush2.msra.mxu0 0.0
  %344 = vmatprep.subr.mxu0 0.0
  %345 = vmatpush2.msra.mxu0 0.0
  %346 = vmatprep.subr.mxu0 0.0
  %347 = vmatpush2.msra.mxu0 0.0
  %348 = vmatprep.subr.mxu0 0.0
  %349 = vmatpush2.msra.mxu0 0.0
  %350 = vmatprep.subr.mxu0 0.0
  %351 = vmatpush2.msra.mxu0 0.0
  %352 = vmatprep.subr.mxu0 0.0
  %353 = vmatpush2.msra.mxu0 0.0
  %354 = vmatprep.subr.mxu0 0.0
  %355 = vmatpush2.msra.mxu0 0.0
  %356 = vmatprep.mubr.f32.mxu0 0.0
  %357 = vmatmul.mubr.f32.gmra.mxu0 %v290
  %v358 = vpop.f32.mrf.mxu0
  %v359 = vadd.f32 %v38, %v358
  %v360 = vpop.f32.mrf.mxu0
  %v361 = vadd.f32 %v42, %v360
  %362 = vdwg.mxu0
  %363 = vst [vmem:[#allocation2 + $0x30] sm:$0xff] %v359
  %364 = vst [vmem:[#allocation2 + $0x38] sm:$0xff] %v361
  %s365 = scalar_lea.vmem %s0, 32
  %v366 = vld [vmem:[%s365] sm:$0xff]
  %v368 = vsel %vm54, %v366, 0
  %370 = vmatprep.subr.mxu0 0.0
  %371 = vmatpush1.msra.mxu0 0.0
  %372 = vmatprep.subr.mxu0 0.0
  %373 = vmatpush1.msra.mxu0 0.0
  %374 = vmatprep.subr.mxu0 0.0
  %375 = vmatpush1.msra.mxu0 0.0
  %376 = vmatprep.subr.mxu0 0.0
  %377 = vmatpush1.msra.mxu0 0.0
  %378 = vmatprep.subr.mxu0 0.0
  %379 = vmatpush1.msra.mxu0 0.0
  %380 = vmatprep.subr.mxu0 0.0
  %381 = vmatpush1.msra.mxu0 0.0
  %382 = vmatprep.subr.mxu0 0.0
  %383 = vmatpush1.msra.mxu0 0.0
  %384 = vmatprep.subr.mxu0 0.0
  %385 = vmatpush1.msra.mxu0 0.0
  %386 = vmatprep.subr.mxu0 0.0
  %387 = vmatpush1.msra.mxu0 0.0
  %388 = vmatprep.subr.mxu0 0.0
  %389 = vmatpush1.msra.mxu0 0.0
  %390 = vmatprep.subr.mxu0 0.0
  %391 = vmatpush1.msra.mxu0 0.0
  %392 = vmatprep.subr.mxu0 0.0
  %393 = vmatpush1.msra.mxu0 0.0
  %394 = vmatprep.subr.mxu0 %v52
  %395 = vmatpush1.msra.mxu0 %v51
  %396 = vmatprep.subr.mxu0 %v50
  %397 = vmatpush1.msra.mxu0 %v49
  %398 = vmatprep.subr.mxu0 %v48
  %399 = vmatpush1.msra.mxu0 %v47
  %400 = vmatprep.subr.mxu0 %v46
  %401 = vmatpush1.msra.mxu0 %v45
  %402 = vmatprep.subr.mxu0 0.0
  %403 = vmatpush2.msra.mxu0 0.0
  %404 = vmatprep.subr.mxu0 0.0
  %405 = vmatpush2.msra.mxu0 0.0
  %406 = vmatprep.subr.mxu0 0.0
  %407 = vmatpush2.msra.mxu0 0.0
  %408 = vmatprep.subr.mxu0 0.0
  %409 = vmatpush2.msra.mxu0 0.0
  %410 = vmatprep.subr.mxu0 0.0
  %411 = vmatpush2.msra.mxu0 0.0
  %412 = vmatprep.subr.mxu0 0.0
  %413 = vmatpush2.msra.mxu0 0.0
  %414 = vmatprep.subr.mxu0 0.0
  %415 = vmatpush2.msra.mxu0 0.0
  %416 = vmatprep.subr.mxu0 0.0
  %417 = vmatpush2.msra.mxu0 0.0
  %418 = vmatprep.subr.mxu0 0.0
  %419 = vmatpush2.msra.mxu0 0.0
  %420 = vmatprep.subr.mxu0 0.0
  %421 = vmatpush2.msra.mxu0 0.0
  %422 = vmatprep.subr.mxu0 0.0
  %423 = vmatpush2.msra.mxu0 0.0
  %424 = vmatprep.subr.mxu0 0.0
  %425 = vmatpush2.msra.mxu0 0.0
  %426 = vmatprep.subr.mxu0 0.0
  %427 = vmatpush2.msra.mxu0 0.0
  %428 = vmatprep.subr.mxu0 0.0
  %429 = vmatpush2.msra.mxu0 0.0
  %430 = vmatprep.subr.mxu0 0.0
  %431 = vmatpush2.msra.mxu0 0.0
  %432 = vmatprep.subr.mxu0 0.0
  %433 = vmatpush2.msra.mxu0 0.0
  %434 = vmatprep.mubr.f32.mxu0 0.0
  %435 = vmatmul.mubr.f32.gmra.mxu0 %v368
  %v436 = vpop.f32.mrf.mxu0
  %v437 = vadd.f32 %v38, %v436
  %v438 = vpop.f32.mrf.mxu0
  %v439 = vadd.f32 %v42, %v438
  %440 = vdwg.mxu0
  %441 = vst [vmem:[#allocation2 + $0x40] sm:$0xff] %v437
  %442 = vst [vmem:[#allocation2 + $0x48] sm:$0xff] %v439
  %s443 = scalar_lea.vmem %s0, 40
  %v444 = vld [vmem:[%s443] sm:$0xff]
  %v446 = vsel %vm54, %v444, 0
  %448 = vmatprep.subr.mxu0 0.0
  %449 = vmatpush1.msra.mxu0 0.0
  %450 = vmatprep.subr.mxu0 0.0
  %451 = vmatpush1.msra.mxu0 0.0
  %452 = vmatprep.subr.mxu0 0.0
  %453 = vmatpush1.msra.mxu0 0.0
  %454 = vmatprep.subr.mxu0 0.0
  %455 = vmatpush1.msra.mxu0 0.0
  %456 = vmatprep.subr.mxu0 0.0
  %457 = vmatpush1.msra.mxu0 0.0
  %458 = vmatprep.subr.mxu0 0.0
  %459 = vmatpush1.msra.mxu0 0.0
  %460 = vmatprep.subr.mxu0 0.0
  %461 = vmatpush1.msra.mxu0 0.0
  %462 = vmatprep.subr.mxu0 0.0
  %463 = vmatpush1.msra.mxu0 0.0
  %464 = vmatprep.subr.mxu0 0.0
  %465 = vmatpush1.msra.mxu0 0.0
  %466 = vmatprep.subr.mxu0 0.0
  %467 = vmatpush1.msra.mxu0 0.0
  %468 = vmatprep.subr.mxu0 0.0
  %469 = vmatpush1.msra.mxu0 0.0
  %470 = vmatprep.subr.mxu0 0.0
  %471 = vmatpush1.msra.mxu0 0.0
  %472 = vmatprep.subr.mxu0 %v52
  %473 = vmatpush1.msra.mxu0 %v51
  %474 = vmatprep.subr.mxu0 %v50
  %475 = vmatpush1.msra.mxu0 %v49
  %476 = vmatprep.subr.mxu0 %v48
  %477 = vmatpush1.msra.mxu0 %v47
  %478 = vmatprep.subr.mxu0 %v46
  %479 = vmatpush1.msra.mxu0 %v45
  %480 = vmatprep.subr.mxu0 0.0
  %481 = vmatpush2.msra.mxu0 0.0
  %482 = vmatprep.subr.mxu0 0.0
  %483 = vmatpush2.msra.mxu0 0.0
  %484 = vmatprep.subr.mxu0 0.0
  %485 = vmatpush2.msra.mxu0 0.0
  %486 = vmatprep.subr.mxu0 0.0
  %487 = vmatpush2.msra.mxu0 0.0
  %488 = vmatprep.subr.mxu0 0.0
  %489 = vmatpush2.msra.mxu0 0.0
  %490 = vmatprep.subr.mxu0 0.0
  %491 = vmatpush2.msra.mxu0 0.0
  %492 = vmatprep.subr.mxu0 0.0
  %493 = vmatpush2.msra.mxu0 0.0
  %494 = vmatprep.subr.mxu0 0.0
  %495 = vmatpush2.msra.mxu0 0.0
  %496 = vmatprep.subr.mxu0 0.0
  %497 = vmatpush2.msra.mxu0 0.0
  %498 = vmatprep.subr.mxu0 0.0
  %499 = vmatpush2.msra.mxu0 0.0
  %500 = vmatprep.subr.mxu0 0.0
  %501 = vmatpush2.msra.mxu0 0.0
  %502 = vmatprep.subr.mxu0 0.0
  %503 = vmatpush2.msra.mxu0 0.0
  %504 = vmatprep.subr.mxu0 0.0
  %505 = vmatpush2.msra.mxu0 0.0
  %506 = vmatprep.subr.mxu0 0.0
  %507 = vmatpush2.msra.mxu0 0.0
  %508 = vmatprep.subr.mxu0 0.0
  %509 = vmatpush2.msra.mxu0 0.0
  %510 = vmatprep.subr.mxu0 0.0
  %511 = vmatpush2.msra.mxu0 0.0
  %512 = vmatprep.mubr.f32.mxu0 0.0
  %513 = vmatmul.mubr.f32.gmra.mxu0 %v446
  %v514 = vpop.f32.mrf.mxu0
  %v515 = vadd.f32 %v38, %v514
  %v516 = vpop.f32.mrf.mxu0
  %v517 = vadd.f32 %v42, %v516
  %518 = vdwg.mxu0
  %519 = vst [vmem:[#allocation2 + $0x50] sm:$0xff] %v515
  %520 = vst [vmem:[#allocation2 + $0x58] sm:$0xff] %v517
  %s521 = scalar_lea.vmem %s0, 48
  %v522 = vld [vmem:[%s521] sm:$0xff]
  %v524 = vsel %vm54, %v522, 0
  %526 = vmatprep.subr.mxu0 0.0
  %527 = vmatpush1.msra.mxu0 0.0
  %528 = vmatprep.subr.mxu0 0.0
  %529 = vmatpush1.msra.mxu0 0.0
  %530 = vmatprep.subr.mxu0 0.0
  %531 = vmatpush1.msra.mxu0 0.0
  %532 = vmatprep.subr.mxu0 0.0
  %533 = vmatpush1.msra.mxu0 0.0
  %534 = vmatprep.subr.mxu0 0.0
  %535 = vmatpush1.msra.mxu0 0.0
  %536 = vmatprep.subr.mxu0 0.0
  %537 = vmatpush1.msra.mxu0 0.0
  %538 = vmatprep.subr.mxu0 0.0
  %539 = vmatpush1.msra.mxu0 0.0
  %540 = vmatprep.subr.mxu0 0.0
  %541 = vmatpush1.msra.mxu0 0.0
  %542 = vmatprep.subr.mxu0 0.0
  %543 = vmatpush1.msra.mxu0 0.0
  %544 = vmatprep.subr.mxu0 0.0
  %545 = vmatpush1.msra.mxu0 0.0
  %546 = vmatprep.subr.mxu0 0.0
  %547 = vmatpush1.msra.mxu0 0.0
  %548 = vmatprep.subr.mxu0 0.0
  %549 = vmatpush1.msra.mxu0 0.0
  %550 = vmatprep.subr.mxu0 %v52
  %551 = vmatpush1.msra.mxu0 %v51
  %552 = vmatprep.subr.mxu0 %v50
  %553 = vmatpush1.msra.mxu0 %v49
  %554 = vmatprep.subr.mxu0 %v48
  %555 = vmatpush1.msra.mxu0 %v47
  %556 = vmatprep.subr.mxu0 %v46
  %557 = vmatpush1.msra.mxu0 %v45
  %558 = vmatprep.subr.mxu0 0.0
  %559 = vmatpush2.msra.mxu0 0.0
  %560 = vmatprep.subr.mxu0 0.0
  %561 = vmatpush2.msra.mxu0 0.0
  %562 = vmatprep.subr.mxu0 0.0
  %563 = vmatpush2.msra.mxu0 0.0
  %564 = vmatprep.subr.mxu0 0.0
  %565 = vmatpush2.msra.mxu0 0.0
  %566 = vmatprep.subr.mxu0 0.0
  %567 = vmatpush2.msra.mxu0 0.0
  %568 = vmatprep.subr.mxu0 0.0
  %569 = vmatpush2.msra.mxu0 0.0
  %570 = vmatprep.subr.mxu0 0.0
  %571 = vmatpush2.msra.mxu0 0.0
  %572 = vmatprep.subr.mxu0 0.0
  %573 = vmatpush2.msra.mxu0 0.0
  %574 = vmatprep.subr.mxu0 0.0
  %575 = vmatpush2.msra.mxu0 0.0
  %576 = vmatprep.subr.mxu0 0.0
  %577 = vmatpush2.msra.mxu0 0.0
  %578 = vmatprep.subr.mxu0 0.0
  %579 = vmatpush2.msra.mxu0 0.0
  %580 = vmatprep.subr.mxu0 0.0
  %581 = vmatpush2.msra.mxu0 0.0
  %582 = vmatprep.subr.mxu0 0.0
  %583 = vmatpush2.msra.mxu0 0.0
  %584 = vmatprep.subr.mxu0 0.0
  %585 = vmatpush2.msra.mxu0 0.0
  %586 = vmatprep.subr.mxu0 0.0
  %587 = vmatpush2.msra.mxu0 0.0
  %588 = vmatprep.subr.mxu0 0.0
  %589 = vmatpush2.msra.mxu0 0.0
  %590 = vmatprep.mubr.f32.mxu0 0.0
  %591 = vmatmul.mubr.f32.gmra.mxu0 %v524
  %v592 = vpop.f32.mrf.mxu0
  %v593 = vadd.f32 %v38, %v592
  %v594 = vpop.f32.mrf.mxu0
  %v595 = vadd.f32 %v42, %v594
  %596 = vdwg.mxu0
  %597 = vst [vmem:[#allocation2 + $0x60] sm:$0xff] %v593
  %598 = vst [vmem:[#allocation2 + $0x68] sm:$0xff] %v595
  %s599 = scalar_lea.vmem %s0, 56
  %v600 = vld [vmem:[%s599] sm:$0xff]
  %v602 = vsel %vm54, %v600, 0
  %604 = vmatprep.subr.mxu0 0.0
  %605 = vmatpush1.msra.mxu0 0.0
  %606 = vmatprep.subr.mxu0 0.0
  %607 = vmatpush1.msra.mxu0 0.0
  %608 = vmatprep.subr.mxu0 0.0
  %609 = vmatpush1.msra.mxu0 0.0
  %610 = vmatprep.subr.mxu0 0.0
  %611 = vmatpush1.msra.mxu0 0.0
  %612 = vmatprep.subr.mxu0 0.0
  %613 = vmatpush1.msra.mxu0 0.0
  %614 = vmatprep.subr.mxu0 0.0
  %615 = vmatpush1.msra.mxu0 0.0
  %616 = vmatprep.subr.mxu0 0.0
  %617 = vmatpush1.msra.mxu0 0.0
  %618 = vmatprep.subr.mxu0 0.0
  %619 = vmatpush1.msra.mxu0 0.0
  %620 = vmatprep.subr.mxu0 0.0
  %621 = vmatpush1.msra.mxu0 0.0
  %622 = vmatprep.subr.mxu0 0.0
  %623 = vmatpush1.msra.mxu0 0.0
  %624 = vmatprep.subr.mxu0 0.0
  %625 = vmatpush1.msra.mxu0 0.0
  %626 = vmatprep.subr.mxu0 0.0
  %627 = vmatpush1.msra.mxu0 0.0
  %628 = vmatprep.subr.mxu0 %v52
  %629 = vmatpush1.msra.mxu0 %v51
  %630 = vmatprep.subr.mxu0 %v50
  %631 = vmatpush1.msra.mxu0 %v49
  %632 = vmatprep.subr.mxu0 %v48
  %633 = vmatpush1.msra.mxu0 %v47
  %634 = vmatprep.subr.mxu0 %v46
  %635 = vmatpush1.msra.mxu0 %v45
  %636 = vmatprep.subr.mxu0 0.0
  %637 = vmatpush2.msra.mxu0 0.0
  %638 = vmatprep.subr.mxu0 0.0
  %639 = vmatpush2.msra.mxu0 0.0
  %640 = vmatprep.subr.mxu0 0.0
  %641 = vmatpush2.msra.mxu0 0.0
  %642 = vmatprep.subr.mxu0 0.0
  %643 = vmatpush2.msra.mxu0 0.0
  %644 = vmatprep.subr.mxu0 0.0
  %645 = vmatpush2.msra.mxu0 0.0
  %646 = vmatprep.subr.mxu0 0.0
  %647 = vmatpush2.msra.mxu0 0.0
  %648 = vmatprep.subr.mxu0 0.0
  %649 = vmatpush2.msra.mxu0 0.0
  %650 = vmatprep.subr.mxu0 0.0
  %651 = vmatpush2.msra.mxu0 0.0
  %652 = vmatprep.subr.mxu0 0.0
  %653 = vmatpush2.msra.mxu0 0.0
  %654 = vmatprep.subr.mxu0 0.0
  %655 = vmatpush2.msra.mxu0 0.0
  %656 = vmatprep.subr.mxu0 0.0
  %657 = vmatpush2.msra.mxu0 0.0
  %658 = vmatprep.subr.mxu0 0.0
  %659 = vmatpush2.msra.mxu0 0.0
  %660 = vmatprep.subr.mxu0 0.0
  %661 = vmatpush2.msra.mxu0 0.0
  %662 = vmatprep.subr.mxu0 0.0
  %663 = vmatpush2.msra.mxu0 0.0
  %664 = vmatprep.subr.mxu0 0.0
  %665 = vmatpush2.msra.mxu0 0.0
  %666 = vmatprep.subr.mxu0 0.0
  %667 = vmatpush2.msra.mxu0 0.0
  %668 = vmatprep.mubr.f32.mxu0 0.0
  %669 = vmatmul.mubr.f32.gmra.mxu0 %v602
  %v670 = vpop.f32.mrf.mxu0
  %v671 = vadd.f32 %v38, %v670
  %v672 = vpop.f32.mrf.mxu0
  %v673 = vadd.f32 %v42, %v672
  %674 = vdwg.mxu0
  %675 = vst [vmem:[#allocation2 + $0x70] sm:$0xff] %v671
  %676 = vst [vmem:[#allocation2 + $0x78] sm:$0xff] %v673
  %v677 = vld [vmem:[%s2] sm:$0xff]
  %v678 = vld [vmem:[%s2 + $0x8] sm:$0xff]
  %v679 = vld [vmem:[%s2 + $0x10] sm:$0xff]
  %v680 = vld [vmem:[%s2 + $0x18] sm:$0xff]
  %v681 = vld [vmem:[%s2 + $0x20] sm:$0xff]
  %v682 = vld [vmem:[%s2 + $0x28] sm:$0xff]
  %v683 = vld [vmem:[%s2 + $0x30] sm:$0xff]
  %v684 = vld [vmem:[%s2 + $0x38] sm:$0xff]
  %v685 = vld [vmem:[%s4] sm:$0xff]
  %v686 = vld [vmem:[%s4 + $0x8] sm:$0xff]
  %v687 = vld [vmem:[%s4 + $0x10] sm:$0xff]
  %v688 = vld [vmem:[%s4 + $0x18] sm:$0xff]
  %v689 = vld [vmem:[%s4 + $0x20] sm:$0xff]
  %v690 = vld [vmem:[%s4 + $0x28] sm:$0xff]
  %v691 = vld [vmem:[%s4 + $0x30] sm:$0xff]
  %v692 = vld [vmem:[%s4 + $0x38] sm:$0xff]
  %v693 = vld [vmem:[%s5] sm:$0xff]
  %v694 = vld [vmem:[%s5 + $0x8] sm:$0xff]
  %v695 = vld [vmem:[%s5 + $0x10] sm:$0xff]
  %v696 = vld [vmem:[%s5 + $0x18] sm:$0xff]
  %v697 = vld [vmem:[%s5 + $0x20] sm:$0xff]
  %v698 = vld [vmem:[%s5 + $0x28] sm:$0xff]
  %v699 = vld [vmem:[%s5 + $0x30] sm:$0xff]
  %v700 = vld [vmem:[%s5 + $0x38] sm:$0xff]
  %v701 = vld [vmem:[%s6] sm:$0x3]
  %v703 = vlaneseq
  %v704 = vshrl.u32 %v703, 7
  %v705 = vsub.s32 0, %v704
  %v706 = vrot.slane %v701, %v705
  %v707 = vlaneseq
  %v708 = vshrl.u32 %v707, 7
  %v709 = vsub.s32 1, %v708
  %v710 = vrot.slane %v701, %v709
  %v721 = vunpack.c.l.b16 %v693
  %v722 = vunpack.c.h.b16 %v693
  %v723 = vunpack.c.l.b16 %v694
  %v724 = vunpack.c.h.b16 %v694
  %v725 = vunpack.c.l.b16 %v695
  %v726 = vunpack.c.h.b16 %v695
  %v727 = vunpack.c.l.b16 %v696
  %v728 = vunpack.c.h.b16 %v696
  %v729 = vunpack.c.l.b16 %v697
  %v730 = vunpack.c.h.b16 %v697
  %v731 = vunpack.c.l.b16 %v698
  %v732 = vunpack.c.h.b16 %v698
  %v733 = vunpack.c.l.b16 %v699
  %v734 = vunpack.c.h.b16 %v699
  %v735 = vunpack.c.l.b16 %v700
  %v736 = vunpack.c.h.b16 %v700
  %v737 = vpack.c.b16 %v723, %v721
  %v738 = vpack.c.b16 %v724, %v722
  %v739 = vpack.c.b16 %v727, %v725
  %v740 = vpack.c.b16 %v728, %v726
  %v741 = vpack.c.b16 %v731, %v729
  %v742 = vpack.c.b16 %v732, %v730
  %v743 = vpack.c.b16 %v735, %v733
  %v744 = vpack.c.b16 %v736, %v734
  %vm753 = vcmask 523264
  %v755 = vsel %vm753, 0, 0
  %757 = vmatprep.subr.bf16.mxu0 0
  %758 = vmatpush1.bf16.msra.mxu0 0
  %759 = vmatprep.subr.bf16.mxu0 0
  %760 = vmatpush1.bf16.msra.mxu0 0
  %761 = vmatprep.subr.bf16.mxu0 0
  %762 = vmatpush1.bf16.msra.mxu0 0
  %763 = vmatprep.subr.bf16.mxu0 0
  %764 = vmatpush1.bf16.msra.mxu0 0
  %765 = vmatprep.subr.bf16.mxu0 %v744
  %766 = vmatpush1.bf16.msra.mxu0 %v743
  %767 = vmatprep.subr.bf16.mxu0 %v742
  %768 = vmatpush1.bf16.msra.mxu0 %v741
  %769 = vmatprep.subr.bf16.mxu0 %v740
  %770 = vmatpush1.bf16.msra.mxu0 %v739
  %771 = vmatprep.subr.bf16.mxu0 %v738
  %772 = vmatpush1.bf16.msra.mxu0 %v737
  %773 = vmatprep.subr.bf16.mxu0 0
  %774 = vmatpush2.bf16.msra.mxu0 0
  %775 = vmatprep.subr.bf16.mxu0 0
  %776 = vmatpush2.bf16.msra.mxu0 0
  %777 = vmatprep.subr.bf16.mxu0 0
  %778 = vmatpush2.bf16.msra.mxu0 0
  %779 = vmatprep.subr.bf16.mxu0 0
  %780 = vmatpush2.bf16.msra.mxu0 0
  %781 = vmatprep.subr.bf16.mxu0 0
  %782 = vmatpush2.bf16.msra.mxu0 0
  %783 = vmatprep.subr.bf16.mxu0 0
  %784 = vmatpush2.bf16.msra.mxu0 0
  %785 = vmatprep.subr.bf16.mxu0 0
  %786 = vmatpush2.bf16.msra.mxu0 0
  %787 = vmatprep.subr.bf16.mxu0 0
  %788 = vmatpush2.bf16.msra.mxu0 0
  %789 = vmatprep.mubr.bf16.mxu0 0
  %790 = vmatmul.mubr.bf16.gmra.mxu0 %v755
  %v791 = vpop.f32.mrf.mxu0
  %v792 = vadd.f32 0.0, %v791
  %v793 = vpop.f32.mrf.mxu0
  %v794 = vadd.f32 0.0, %v793
  %v795 = vpop.f32.mrf.mxu0
  %v796 = vpop.f32.mrf.mxu0
  %797 = vdwg.mxu0
  %v798 = vld [vmem:[#allocation2] sm:$0xff]
  %v799 = vld [vmem:[#allocation2 + $0x8] sm:$0xff]
  %v808 = vunpack.c.l.b16 %v677
  %v809 = vunpack.c.h.b16 %v677
  %v810 = vunpack.c.l.b16 %v678
  %v811 = vunpack.c.h.b16 %v678
  %v812 = vunpack.c.l.b16 %v679
  %v813 = vunpack.c.h.b16 %v679
  %v814 = vunpack.c.l.b16 %v680
  %v815 = vunpack.c.h.b16 %v680
  %v816 = vunpack.c.l.b16 %v681
  %v817 = vunpack.c.h.b16 %v681
  %v818 = vunpack.c.l.b16 %v682
  %v819 = vunpack.c.h.b16 %v682
  %v820 = vunpack.c.l.b16 %v683
  %v821 = vunpack.c.h.b16 %v683
  %v822 = vunpack.c.l.b16 %v684
  %v823 = vunpack.c.h.b16 %v684
  %v824 = vpack.c.b16 %v810, %v808
  %v825 = vpack.c.b16 %v811, %v809
  %v826 = vpack.c.b16 %v814, %v812
  %v827 = vpack.c.b16 %v815, %v813
  %v828 = vpack.c.b16 %v818, %v816
  %v829 = vpack.c.b16 %v819, %v817
  %v830 = vpack.c.b16 %v822, %v820
  %v831 = vpack.c.b16 %v823, %v821
  %840 = vmatprep.subr.bf16.mxu0 0
  %841 = vmatpush1.bf16.msra.mxu0 0
  %842 = vmatprep.subr.bf16.mxu0 0
  %843 = vmatpush1.bf16.msra.mxu0 0
  %844 = vmatprep.subr.bf16.mxu0 0
  %845 = vmatpush1.bf16.msra.mxu0 0
  %846 = vmatprep.subr.bf16.mxu0 0
  %847 = vmatpush1.bf16.msra.mxu0 0
  %848 = vmatprep.subr.bf16.mxu0 %v831
  %849 = vmatpush1.bf16.msra.mxu0 %v830
  %850 = vmatprep.subr.bf16.mxu0 %v829
  %851 = vmatpush1.bf16.msra.mxu0 %v828
  %852 = vmatprep.subr.bf16.mxu0 %v827
  %853 = vmatpush1.bf16.msra.mxu0 %v826
  %854 = vmatprep.subr.bf16.mxu0 %v825
  %855 = vmatpush1.bf16.msra.mxu0 %v824
  %856 = vmatprep.subr.bf16.mxu0 0
  %857 = vmatpush2.bf16.msra.mxu0 0
  %858 = vmatprep.subr.bf16.mxu0 0
  %859 = vmatpush2.bf16.msra.mxu0 0
  %860 = vmatprep.subr.bf16.mxu0 0
  %861 = vmatpush2.bf16.msra.mxu0 0
  %862 = vmatprep.subr.bf16.mxu0 0
  %863 = vmatpush2.bf16.msra.mxu0 0
  %864 = vmatprep.subr.bf16.mxu0 0
  %865 = vmatpush2.bf16.msra.mxu0 0
  %866 = vmatprep.subr.bf16.mxu0 0
  %867 = vmatpush2.bf16.msra.mxu0 0
  %868 = vmatprep.subr.bf16.mxu0 0
  %869 = vmatpush2.bf16.msra.mxu0 0
  %870 = vmatprep.subr.bf16.mxu0 0
  %871 = vmatpush2.bf16.msra.mxu0 0
  %872 = vmatprep.mubr.bf16.mxu0 0
  %873 = vmatmul.mubr.bf16.gmra.mxu0 %v755
  %v874 = vpop.f32.mrf.mxu0
  %v875 = vadd.f32 0.0, %v874
  %v876 = vpop.f32.mrf.mxu0
  %v877 = vadd.f32 0.0, %v876
  %v878 = vpop.f32.mrf.mxu0
  %v879 = vpop.f32.mrf.mxu0
  %880 = vdwg.mxu0
  %v881 = vadd.f32 %v798, %v875
  %v882 = vadd.f32 %v799, %v877
  %v883 = vxor.u32 %v881, 2147483648
  %v884 = vxor.u32 %v882, 2147483648
  %v885 = vmul.f32 %v883, 1.442695
  %v886 = vpow.pop %v885
  %v887 = vmul.f32 %v884, 1.442695
  %v888 = vpow.pop %v887
  %v889 = vadd.f32 %v886, 1.0
  %v890 = vadd.f32 %v888, 1.0
  %v891 = vrcp.pop %v889
  %v892 = vmul.f32 1.0, %v891
  %v893 = vrcp.pop %v890
  %v894 = vmul.f32 1.0, %v893
  %v895 = vtanh.pop %v882
  %v896 = vmul.f32 %v892, 0.0
  %v897 = vmul.f32 %v892, %v895
  %899 = vrot.lane.b32.xlu0 %v897, 64
  %v900 = vpop.permute.xlu0 %899
  %v902 = vadd.f32 %v896, %v900
  %v903 = vtanh.pop %v902
  %v904 = vmul.f32 %v894, %v903
  %v905 = vpack.c.bf16 %v904, %v904
  %907 = vrot.lane.b32.xlu0 %v905, 64
  %v908 = vpop.permute.xlu0 %907
  %v917 = vunpack.c.l.b16 %v685
  %v918 = vunpack.c.h.b16 %v685
  %v919 = vunpack.c.l.b16 %v686
  %v920 = vunpack.c.h.b16 %v686
  %v921 = vunpack.c.l.b16 %v687
  %v922 = vunpack.c.h.b16 %v687
  %v923 = vunpack.c.l.b16 %v688
  %v924 = vunpack.c.h.b16 %v688
  %v925 = vunpack.c.l.b16 %v689
  %v926 = vunpack.c.h.b16 %v689
  %v927 = vunpack.c.l.b16 %v690
  %v928 = vunpack.c.h.b16 %v690
  %v929 = vunpack.c.l.b16 %v691
  %v930 = vunpack.c.h.b16 %v691
  %v931 = vunpack.c.l.b16 %v692
  %v932 = vunpack.c.h.b16 %v692
  %v933 = vpack.c.b16 %v919, %v917
  %v934 = vpack.c.b16 %v920, %v918
  %v935 = vpack.c.b16 %v923, %v921
  %v936 = vpack.c.b16 %v924, %v922
  %v937 = vpack.c.b16 %v927, %v925
  %v938 = vpack.c.b16 %v928, %v926
  %v939 = vpack.c.b16 %v931, %v929
  %v940 = vpack.c.b16 %v932, %v930
  %v950 = vsel %vm753, %v908, 0
  %952 = vmatprep.subr.bf16.mxu0 0
  %953 = vmatpush1.bf16.msra.mxu0 0
  %954 = vmatprep.subr.bf16.mxu0 0
  %955 = vmatpush1.bf16.msra.mxu0 0
  %956 = vmatprep.subr.bf16.mxu0 0
  %957 = vmatpush1.bf16.msra.mxu0 0
  %958 = vmatprep.subr.bf16.mxu0 0
  %959 = vmatpush1.bf16.msra.mxu0 0
  %960 = vmatprep.subr.bf16.mxu0 %v940
  %961 = vmatpush1.bf16.msra.mxu0 %v939
  %962 = vmatprep.subr.bf16.mxu0 %v938
  %963 = vmatpush1.bf16.msra.mxu0 %v937
  %964 = vmatprep.subr.bf16.mxu0 %v936
  %965 = vmatpush1.bf16.msra.mxu0 %v935
  %966 = vmatprep.subr.bf16.mxu0 %v934
  %967 = vmatpush1.bf16.msra.mxu0 %v933
  %968 = vmatprep.subr.bf16.mxu0 0
  %969 = vmatpush2.bf16.msra.mxu0 0
  %970 = vmatprep.subr.bf16.mxu0 0
  %971 = vmatpush2.bf16.msra.mxu0 0
  %972 = vmatprep.subr.bf16.mxu0 0
  %973 = vmatpush2.bf16.msra.mxu0 0
  %974 = vmatprep.subr.bf16.mxu0 0
  %975 = vmatpush2.bf16.msra.mxu0 0
  %976 = vmatprep.subr.bf16.mxu0 0
  %977 = vmatpush2.bf16.msra.mxu0 0
  %978 = vmatprep.subr.bf16.mxu0 0
  %979 = vmatpush2.bf16.msra.mxu0 0
  %980 = vmatprep.subr.bf16.mxu0 0
  %981 = vmatpush2.bf16.msra.mxu0 0
  %982 = vmatprep.subr.bf16.mxu0 0
  %983 = vmatpush2.bf16.msra.mxu0 0
  %984 = vmatprep.mubr.bf16.mxu0 0
  %985 = vmatmul.mubr.bf16.gmra.mxu0 %v950
  %v986 = vpop.f32.mrf.mxu0
  %v987 = vadd.f32 %v792, %v986
  %v988 = vpop.f32.mrf.mxu0
  %v989 = vadd.f32 %v794, %v988
  %v990 = vpop.f32.mrf.mxu0
  %v991 = vpop.f32.mrf.mxu0
  %992 = vdwg.mxu0
  %v993 = vadd.f32 %v987, %v706
  %v994 = vadd.f32 %v989, %v710
  %v995 = vxor.u32 %v993, 2147483648
  %v996 = vxor.u32 %v994, 2147483648
  %v997 = vmul.f32 %v995, 1.442695
  %v998 = vpow.pop %v997
  %v999 = vmul.f32 %v996, 1.442695
  %v1000 = vpow.pop %v999
  %v1001 = vadd.f32 %v998, 1.0
  %v1002 = vadd.f32 %v1000, 1.0
  %v1003 = vrcp.pop %v1001
  %v1004 = vmul.f32 1.0, %v1003
  %v1005 = vrcp.pop %v1002
  %v1006 = vmul.f32 1.0, %v1005
  %v1007 = vtanh.pop %v994
  %v1008 = vmul.f32 %v1004, 0.0
  %v1009 = vmul.f32 %v1004, %v1007
  %1011 = vrot.lane.b32.xlu0 %v1009, 64
  %v1012 = vpop.permute.xlu0 %1011
  %v1014 = vadd.f32 %v1008, %v1012
  %v1015 = vtanh.pop %v1014
  %v1016 = vmul.f32 %v1006, %v1015
  %v1017 = vpack.c.bf16 %v1016, %v1016
  %1019 = vrot.lane.b32.xlu0 %v1017, 64
  %v1020 = vpop.permute.xlu0 %1019
  %v1022 = vsel %vm753, %v1020, 0
  %1024 = vmatprep.subr.bf16.mxu0 0
  %1025 = vmatpush1.bf16.msra.mxu0 0
  %1026 = vmatprep.subr.bf16.mxu0 0
  %1027 = vmatpush1.bf16.msra.mxu0 0
  %1028 = vmatprep.subr.bf16.mxu0 0
  %1029 = vmatpush1.bf16.msra.mxu0 0
  %1030 = vmatprep.subr.bf16.mxu0 0
  %1031 = vmatpush1.bf16.msra.mxu0 0
  %1032 = vmatprep.subr.bf16.mxu0 %v744
  %1033 = vmatpush1.bf16.msra.mxu0 %v743
  %1034 = vmatprep.subr.bf16.mxu0 %v742
  %1035 = vmatpush1.bf16.msra.mxu0 %v741
  %1036 = vmatprep.subr.bf16.mxu0 %v740
  %1037 = vmatpush1.bf16.msra.mxu0 %v739
  %1038 = vmatprep.subr.bf16.mxu0 %v738
  %1039 = vmatpush1.bf16.msra.mxu0 %v737
  %1040 = vmatprep.subr.bf16.mxu0 0
  %1041 = vmatpush2.bf16.msra.mxu0 0
  %1042 = vmatprep.subr.bf16.mxu0 0
  %1043 = vmatpush2.bf16.msra.mxu0 0
  %1044 = vmatprep.subr.bf16.mxu0 0
  %1045 = vmatpush2.bf16.msra.mxu0 0
  %1046 = vmatprep.subr.bf16.mxu0 0
  %1047 = vmatpush2.bf16.msra.mxu0 0
  %1048 = vmatprep.subr.bf16.mxu0 0
  %1049 = vmatpush2.bf16.msra.mxu0 0
  %1050 = vmatprep.subr.bf16.mxu0 0
  %1051 = vmatpush2.bf16.msra.mxu0 0
  %1052 = vmatprep.subr.bf16.mxu0 0
  %1053 = vmatpush2.bf16.msra.mxu0 0
  %1054 = vmatprep.subr.bf16.mxu0 0
  %1055 = vmatpush2.bf16.msra.mxu0 0
  %1056 = vmatprep.mubr.bf16.mxu0 0
  %1057 = vmatmul.mubr.bf16.gmra.mxu0 %v1022
  %v1058 = vpop.f32.mrf.mxu0
  %v1059 = vadd.f32 0.0, %v1058
  %v1060 = vpop.f32.mrf.mxu0
  %v1061 = vadd.f32 0.0, %v1060
  %v1062 = vpop.f32.mrf.mxu0
  %v1063 = vpop.f32.mrf.mxu0
  %1064 = vdwg.mxu0
  %v1065 = vld [vmem:[#allocation2 + $0x10] sm:$0xff]
  %v1066 = vld [vmem:[#allocation2 + $0x18] sm:$0xff]
  %1067 = vmatprep.subr.bf16.mxu0 0
  %1068 = vmatpush1.bf16.msra.mxu0 0
  %1069 = vmatprep.subr.bf16.mxu0 0
  %1070 = vmatpush1.bf16.msra.mxu0 0
  %1071 = vmatprep.subr.bf16.mxu0 0
  %1072 = vmatpush1.bf16.msra.mxu0 0
  %1073 = vmatprep.subr.bf16.mxu0 0
  %1074 = vmatpush1.bf16.msra.mxu0 0
  %1075 = vmatprep.subr.bf16.mxu0 %v831
  %1076 = vmatpush1.bf16.msra.mxu0 %v830
  %1077 = vmatprep.subr.bf16.mxu0 %v829
  %1078 = vmatpush1.bf16.msra.mxu0 %v828
  %1079 = vmatprep.subr.bf16.mxu0 %v827
  %1080 = vmatpush1.bf16.msra.mxu0 %v826
  %1081 = vmatprep.subr.bf16.mxu0 %v825
  %1082 = vmatpush1.bf16.msra.mxu0 %v824
  %1083 = vmatprep.subr.bf16.mxu0 0
  %1084 = vmatpush2.bf16.msra.mxu0 0
  %1085 = vmatprep.subr.bf16.mxu0 0
  %1086 = vmatpush2.bf16.msra.mxu0 0
  %1087 = vmatprep.subr.bf16.mxu0 0
  %1088 = vmatpush2.bf16.msra.mxu0 0
  %1089 = vmatprep.subr.bf16.mxu0 0
  %1090 = vmatpush2.bf16.msra.mxu0 0
  %1091 = vmatprep.subr.bf16.mxu0 0
  %1092 = vmatpush2.bf16.msra.mxu0 0
  %1093 = vmatprep.subr.bf16.mxu0 0
  %1094 = vmatpush2.bf16.msra.mxu0 0
  %1095 = vmatprep.subr.bf16.mxu0 0
  %1096 = vmatpush2.bf16.msra.mxu0 0
  %1097 = vmatprep.subr.bf16.mxu0 0
  %1098 = vmatpush2.bf16.msra.mxu0 0
  %1099 = vmatprep.mubr.bf16.mxu0 0
  %1100 = vmatmul.mubr.bf16.gmra.mxu0 %v950
  %v1101 = vpop.f32.mrf.mxu0
  %v1102 = vadd.f32 0.0, %v1101
  %v1103 = vpop.f32.mrf.mxu0
  %v1104 = vadd.f32 0.0, %v1103
  %v1105 = vpop.f32.mrf.mxu0
  %v1106 = vpop.f32.mrf.mxu0
  %1107 = vdwg.mxu0
  %v1108 = vadd.f32 %v1065, %v1102
  %v1109 = vadd.f32 %v1066, %v1104
  %v1110 = vxor.u32 %v1108, 2147483648
  %v1111 = vxor.u32 %v1109, 2147483648
  %v1112 = vmul.f32 %v1110, 1.442695
  %v1113 = vpow.pop %v1112
  %v1114 = vmul.f32 %v1111, 1.442695
  %v1115 = vpow.pop %v1114
  %v1116 = vadd.f32 %v1113, 1.0
  %v1117 = vadd.f32 %v1115, 1.0
  %v1118 = vrcp.pop %v1116
  %v1119 = vmul.f32 1.0, %v1118
  %v1120 = vrcp.pop %v1117
  %v1121 = vmul.f32 1.0, %v1120
  %v1122 = vtanh.pop %v1109
  %v1123 = vmul.f32 %v1119, %v902
  %v1124 = vmul.f32 %v1119, %v1122
  %1126 = vrot.lane.b32.xlu0 %v1124, 64
  %v1127 = vpop.permute.xlu0 %1126
  %v1129 = vadd.f32 %v1123, %v1127
  %v1130 = vtanh.pop %v1129
  %v1131 = vmul.f32 %v1121, %v1130
  %v1132 = vpack.c.bf16 %v1131, %v1131
  %1134 = vrot.lane.b32.xlu0 %v1132, 64
  %v1135 = vpop.permute.xlu0 %1134
  %v1137 = vsel %vm753, %v1135, 0
  %1139 = vmatprep.subr.bf16.mxu0 0
  %1140 = vmatpush1.bf16.msra.mxu0 0
  %1141 = vmatprep.subr.bf16.mxu0 0
  %1142 = vmatpush1.bf16.msra.mxu0 0
  %1143 = vmatprep.subr.bf16.mxu0 0
  %1144 = vmatpush1.bf16.msra.mxu0 0
  %1145 = vmatprep.subr.bf16.mxu0 0
  %1146 = vmatpush1.bf16.msra.mxu0 0
  %1147 = vmatprep.subr.bf16.mxu0 %v940
  %1148 = vmatpush1.bf16.msra.mxu0 %v939
  %1149 = vmatprep.subr.bf16.mxu0 %v938
  %1150 = vmatpush1.bf16.msra.mxu0 %v937
  %1151 = vmatprep.subr.bf16.mxu0 %v936
  %1152 = vmatpush1.bf16.msra.mxu0 %v935
  %1153 = vmatprep.subr.bf16.mxu0 %v934
  %1154 = vmatpush1.bf16.msra.mxu0 %v933
  %1155 = vmatprep.subr.bf16.mxu0 0
  %1156 = vmatpush2.bf16.msra.mxu0 0
  %1157 = vmatprep.subr.bf16.mxu0 0
  %1158 = vmatpush2.bf16.msra.mxu0 0
  %1159 = vmatprep.subr.bf16.mxu0 0
  %1160 = vmatpush2.bf16.msra.mxu0 0
  %1161 = vmatprep.subr.bf16.mxu0 0
  %1162 = vmatpush2.bf16.msra.mxu0 0
  %1163 = vmatprep.subr.bf16.mxu0 0
  %1164 = vmatpush2.bf16.msra.mxu0 0
  %1165 = vmatprep.subr.bf16.mxu0 0
  %1166 = vmatpush2.bf16.msra.mxu0 0
  %1167 = vmatprep.subr.bf16.mxu0 0
  %1168 = vmatpush2.bf16.msra.mxu0 0
  %1169 = vmatprep.subr.bf16.mxu0 0
  %1170 = vmatpush2.bf16.msra.mxu0 0
  %1171 = vmatprep.mubr.bf16.mxu0 0
  %1172 = vmatmul.mubr.bf16.gmra.mxu0 %v1137
  %v1173 = vpop.f32.mrf.mxu0
  %v1174 = vadd.f32 %v1059, %v1173
  %v1175 = vpop.f32.mrf.mxu0
  %v1176 = vadd.f32 %v1061, %v1175
  %v1177 = vpop.f32.mrf.mxu0
  %v1178 = vpop.f32.mrf.mxu0
  %1179 = vdwg.mxu0
  %v1180 = vadd.f32 %v1174, %v706
  %v1181 = vadd.f32 %v1176, %v710
  %v1182 = vxor.u32 %v1180, 2147483648
  %v1183 = vxor.u32 %v1181, 2147483648
  %v1184 = vmul.f32 %v1182, 1.442695
  %v1185 = vpow.pop %v1184
  %v1186 = vmul.f32 %v1183, 1.442695
  %v1187 = vpow.pop %v1186
  %v1188 = vadd.f32 %v1185, 1.0
  %v1189 = vadd.f32 %v1187, 1.0
  %v1190 = vrcp.pop %v1188
  %v1191 = vmul.f32 1.0, %v1190
  %v1192 = vrcp.pop %v1189
  %v1193 = vmul.f32 1.0, %v1192
  %v1194 = vtanh.pop %v1181
  %v1195 = vmul.f32 %v1191, %v1014
  %v1196 = vmul.f32 %v1191, %v1194
  %1198 = vrot.lane.b32.xlu0 %v1196, 64
  %v1199 = vpop.permute.xlu0 %1198
  %v1201 = vadd.f32 %v1195, %v1199
  %v1202 = vtanh.pop %v1201
  %v1203 = vmul.f32 %v1193, %v1202
  %v1204 = vpack.c.bf16 %v1203, %v1203
  %1206 = vrot.lane.b32.xlu0 %v1204, 64
  %v1207 = vpop.permute.xlu0 %1206
  %v1209 = vsel %vm753, %v1207, 0
  %1211 = vmatprep.subr.bf16.mxu0 0
  %1212 = vmatpush1.bf16.msra.mxu0 0
  %1213 = vmatprep.subr.bf16.mxu0 0
  %1214 = vmatpush1.bf16.msra.mxu0 0
  %1215 = vmatprep.subr.bf16.mxu0 0
  %1216 = vmatpush1.bf16.msra.mxu0 0
  %1217 = vmatprep.subr.bf16.mxu0 0
  %1218 = vmatpush1.bf16.msra.mxu0 0
  %1219 = vmatprep.subr.bf16.mxu0 %v744
  %1220 = vmatpush1.bf16.msra.mxu0 %v743
  %1221 = vmatprep.subr.bf16.mxu0 %v742
  %1222 = vmatpush1.bf16.msra.mxu0 %v741
  %1223 = vmatprep.subr.bf16.mxu0 %v740
  %1224 = vmatpush1.bf16.msra.mxu0 %v739
  %1225 = vmatprep.subr.bf16.mxu0 %v738
  %1226 = vmatpush1.bf16.msra.mxu0 %v737
  %1227 = vmatprep.subr.bf16.mxu0 0
  %1228 = vmatpush2.bf16.msra.mxu0 0
  %1229 = vmatprep.subr.bf16.mxu0 0
  %1230 = vmatpush2.bf16.msra.mxu0 0
  %1231 = vmatprep.subr.bf16.mxu0 0
  %1232 = vmatpush2.bf16.msra.mxu0 0
  %1233 = vmatprep.subr.bf16.mxu0 0
  %1234 = vmatpush2.bf16.msra.mxu0 0
  %1235 = vmatprep.subr.bf16.mxu0 0
  %1236 = vmatpush2.bf16.msra.mxu0 0
  %1237 = vmatprep.subr.bf16.mxu0 0
  %1238 = vmatpush2.bf16.msra.mxu0 0
  %1239 = vmatprep.subr.bf16.mxu0 0
  %1240 = vmatpush2.bf16.msra.mxu0 0
  %1241 = vmatprep.subr.bf16.mxu0 0
  %1242 = vmatpush2.bf16.msra.mxu0 0
  %1243 = vmatprep.mubr.bf16.mxu0 0
  %1244 = vmatmul.mubr.bf16.gmra.mxu0 %v1209
  %v1245 = vpop.f32.mrf.mxu0
  %v1246 = vadd.f32 0.0, %v1245
  %v1247 = vpop.f32.mrf.mxu0
  %v1248 = vadd.f32 0.0, %v1247
  %v1249 = vpop.f32.mrf.mxu0
  %v1250 = vpop.f32.mrf.mxu0
  %1251 = vdwg.mxu0
  %v1252 = vld [vmem:[#allocation2 + $0x20] sm:$0xff]
  %v1253 = vld [vmem:[#allocation2 + $0x28] sm:$0xff]
  %1254 = vmatprep.subr.bf16.mxu0 0
  %1255 = vmatpush1.bf16.msra.mxu0 0
  %1256 = vmatprep.subr.bf16.mxu0 0
  %1257 = vmatpush1.bf16.msra.mxu0 0
  %1258 = vmatprep.subr.bf16.mxu0 0
  %1259 = vmatpush1.bf16.msra.mxu0 0
  %1260 = vmatprep.subr.bf16.mxu0 0
  %1261 = vmatpush1.bf16.msra.mxu0 0
  %1262 = vmatprep.subr.bf16.mxu0 %v831
  %1263 = vmatpush1.bf16.msra.mxu0 %v830
  %1264 = vmatprep.subr.bf16.mxu0 %v829
  %1265 = vmatpush1.bf16.msra.mxu0 %v828
  %1266 = vmatprep.subr.bf16.mxu0 %v827
  %1267 = vmatpush1.bf16.msra.mxu0 %v826
  %1268 = vmatprep.subr.bf16.mxu0 %v825
  %1269 = vmatpush1.bf16.msra.mxu0 %v824
  %1270 = vmatprep.subr.bf16.mxu0 0
  %1271 = vmatpush2.bf16.msra.mxu0 0
  %1272 = vmatprep.subr.bf16.mxu0 0
  %1273 = vmatpush2.bf16.msra.mxu0 0
  %1274 = vmatprep.subr.bf16.mxu0 0
  %1275 = vmatpush2.bf16.msra.mxu0 0
  %1276 = vmatprep.subr.bf16.mxu0 0
  %1277 = vmatpush2.bf16.msra.mxu0 0
  %1278 = vmatprep.subr.bf16.mxu0 0
  %1279 = vmatpush2.bf16.msra.mxu0 0
  %1280 = vmatprep.subr.bf16.mxu0 0
  %1281 = vmatpush2.bf16.msra.mxu0 0
  %1282 = vmatprep.subr.bf16.mxu0 0
  %1283 = vmatpush2.bf16.msra.mxu0 0
  %1284 = vmatprep.subr.bf16.mxu0 0
  %1285 = vmatpush2.bf16.msra.mxu0 0
  %1286 = vmatprep.mubr.bf16.mxu0 0
  %1287 = vmatmul.mubr.bf16.gmra.mxu0 %v1137
  %v1288 = vpop.f32.mrf.mxu0
  %v1289 = vadd.f32 0.0, %v1288
  %v1290 = vpop.f32.mrf.mxu0
  %v1291 = vadd.f32 0.0, %v1290
  %v1292 = vpop.f32.mrf.mxu0
  %v1293 = vpop.f32.mrf.mxu0
  %1294 = vdwg.mxu0
  %v1295 = vadd.f32 %v1252, %v1289
  %v1296 = vadd.f32 %v1253, %v1291
  %v1297 = vxor.u32 %v1295, 2147483648
  %v1298 = vxor.u32 %v1296, 2147483648
  %v1299 = vmul.f32 %v1297, 1.442695
  %v1300 = vpow.pop %v1299
  %v1301 = vmul.f32 %v1298, 1.442695
  %v1302 = vpow.pop %v1301
  %v1303 = vadd.f32 %v1300, 1.0
  %v1304 = vadd.f32 %v1302, 1.0
  %v1305 = vrcp.pop %v1303
  %v1306 = vmul.f32 1.0, %v1305
  %v1307 = vrcp.pop %v1304
  %v1308 = vmul.f32 1.0, %v1307
  %v1309 = vtanh.pop %v1296
  %v1310 = vmul.f32 %v1306, %v1129
  %v1311 = vmul.f32 %v1306, %v1309
  %1313 = vrot.lane.b32.xlu0 %v1311, 64
  %v1314 = vpop.permute.xlu0 %1313
  %v1316 = vadd.f32 %v1310, %v1314
  %v1317 = vtanh.pop %v1316
  %v1318 = vmul.f32 %v1308, %v1317
  %v1319 = vpack.c.bf16 %v1318, %v1318
  %1321 = vrot.lane.b32.xlu0 %v1319, 64
  %v1322 = vpop.permute.xlu0 %1321
  %v1324 = vsel %vm753, %v1322, 0
  %1326 = vmatprep.subr.bf16.mxu0 0
  %1327 = vmatpush1.bf16.msra.mxu0 0
  %1328 = vmatprep.subr.bf16.mxu0 0
  %1329 = vmatpush1.bf16.msra.mxu0 0
  %1330 = vmatprep.subr.bf16.mxu0 0
  %1331 = vmatpush1.bf16.msra.mxu0 0
  %1332 = vmatprep.subr.bf16.mxu0 0
  %1333 = vmatpush1.bf16.msra.mxu0 0
  %1334 = vmatprep.subr.bf16.mxu0 %v940
  %1335 = vmatpush1.bf16.msra.mxu0 %v939
  %1336 = vmatprep.subr.bf16.mxu0 %v938
  %1337 = vmatpush1.bf16.msra.mxu0 %v937
  %1338 = vmatprep.subr.bf16.mxu0 %v936
  %1339 = vmatpush1.bf16.msra.mxu0 %v935
  %1340 = vmatprep.subr.bf16.mxu0 %v934
  %1341 = vmatpush1.bf16.msra.mxu0 %v933
  %1342 = vmatprep.subr.bf16.mxu0 0
  %1343 = vmatpush2.bf16.msra.mxu0 0
  %1344 = vmatprep.subr.bf16.mxu0 0
  %1345 = vmatpush2.bf16.msra.mxu0 0
  %1346 = vmatprep.subr.bf16.mxu0 0
  %1347 = vmatpush2.bf16.msra.mxu0 0
  %1348 = vmatprep.subr.bf16.mxu0 0
  %1349 = vmatpush2.bf16.msra.mxu0 0
  %1350 = vmatprep.subr.bf16.mxu0 0
  %1351 = vmatpush2.bf16.msra.mxu0 0
  %1352 = vmatprep.subr.bf16.mxu0 0
  %1353 = vmatpush2.bf16.msra.mxu0 0
  %1354 = vmatprep.subr.bf16.mxu0 0
  %1355 = vmatpush2.bf16.msra.mxu0 0
  %1356 = vmatprep.subr.bf16.mxu0 0
  %1357 = vmatpush2.bf16.msra.mxu0 0
  %1358 = vmatprep.mubr.bf16.mxu0 0
  %1359 = vmatmul.mubr.bf16.gmra.mxu0 %v1324
  %v1360 = vpop.f32.mrf.mxu0
  %v1361 = vadd.f32 %v1246, %v1360
  %v1362 = vpop.f32.mrf.mxu0
  %v1363 = vadd.f32 %v1248, %v1362
  %v1364 = vpop.f32.mrf.mxu0
  %v1365 = vpop.f32.mrf.mxu0
  %1366 = vdwg.mxu0
  %v1367 = vadd.f32 %v1361, %v706
  %v1368 = vadd.f32 %v1363, %v710
  %v1369 = vxor.u32 %v1367, 2147483648
  %v1370 = vxor.u32 %v1368, 2147483648
  %v1371 = vmul.f32 %v1369, 1.442695
  %v1372 = vpow.pop %v1371
  %v1373 = vmul.f32 %v1370, 1.442695
  %v1374 = vpow.pop %v1373
  %v1375 = vadd.f32 %v1372, 1.0
  %v1376 = vadd.f32 %v1374, 1.0
  %v1377 = vrcp.pop %v1375
  %v1378 = vmul.f32 1.0, %v1377
  %v1379 = vrcp.pop %v1376
  %v1380 = vmul.f32 1.0, %v1379
  %v1381 = vtanh.pop %v1368
  %v1382 = vmul.f32 %v1378, %v1201
  %v1383 = vmul.f32 %v1378, %v1381
  %1385 = vrot.lane.b32.xlu0 %v1383, 64
  %v1386 = vpop.permute.xlu0 %1385
  %v1388 = vadd.f32 %v1382, %v1386
  %v1389 = vtanh.pop %v1388
  %v1390 = vmul.f32 %v1380, %v1389
  %v1391 = vpack.c.bf16 %v1390, %v1390
  %1393 = vrot.lane.b32.xlu0 %v1391, 64
  %v1394 = vpop.permute.xlu0 %1393
  %v1396 = vsel %vm753, %v1394, 0
  %1398 = vmatprep.subr.bf16.mxu0 0
  %1399 = vmatpush1.bf16.msra.mxu0 0
  %1400 = vmatprep.subr.bf16.mxu0 0
  %1401 = vmatpush1.bf16.msra.mxu0 0
  %1402 = vmatprep.subr.bf16.mxu0 0
  %1403 = vmatpush1.bf16.msra.mxu0 0
  %1404 = vmatprep.subr.bf16.mxu0 0
  %1405 = vmatpush1.bf16.msra.mxu0 0
  %1406 = vmatprep.subr.bf16.mxu0 %v744
  %1407 = vmatpush1.bf16.msra.mxu0 %v743
  %1408 = vmatprep.subr.bf16.mxu0 %v742
  %1409 = vmatpush1.bf16.msra.mxu0 %v741
  %1410 = vmatprep.subr.bf16.mxu0 %v740
  %1411 = vmatpush1.bf16.msra.mxu0 %v739
  %1412 = vmatprep.subr.bf16.mxu0 %v738
  %1413 = vmatpush1.bf16.msra.mxu0 %v737
  %1414 = vmatprep.subr.bf16.mxu0 0
  %1415 = vmatpush2.bf16.msra.mxu0 0
  %1416 = vmatprep.subr.bf16.mxu0 0
  %1417 = vmatpush2.bf16.msra.mxu0 0
  %1418 = vmatprep.subr.bf16.mxu0 0
  %1419 = vmatpush2.bf16.msra.mxu0 0
  %1420 = vmatprep.subr.bf16.mxu0 0
  %1421 = vmatpush2.bf16.msra.mxu0 0
  %1422 = vmatprep.subr.bf16.mxu0 0
  %1423 = vmatpush2.bf16.msra.mxu0 0
  %1424 = vmatprep.subr.bf16.mxu0 0
  %1425 = vmatpush2.bf16.msra.mxu0 0
  %1426 = vmatprep.subr.bf16.mxu0 0
  %1427 = vmatpush2.bf16.msra.mxu0 0
  %1428 = vmatprep.subr.bf16.mxu0 0
  %1429 = vmatpush2.bf16.msra.mxu0 0
  %1430 = vmatprep.mubr.bf16.mxu0 0
  %1431 = vmatmul.mubr.bf16.gmra.mxu0 %v1396
  %v1432 = vpop.f32.mrf.mxu0
  %v1433 = vadd.f32 0.0, %v1432
  %v1434 = vpop.f32.mrf.mxu0
  %v1435 = vadd.f32 0.0, %v1434
  %v1436 = vpop.f32.mrf.mxu0
  %v1437 = vpop.f32.mrf.mxu0
  %1438 = vdwg.mxu0
  %v1439 = vld [vmem:[#allocation2 + $0x30] sm:$0xff]
  %v1440 = vld [vmem:[#allocation2 + $0x38] sm:$0xff]
  %1441 = vmatprep.subr.bf16.mxu0 0
  %1442 = vmatpush1.bf16.msra.mxu0 0
  %1443 = vmatprep.subr.bf16.mxu0 0
  %1444 = vmatpush1.bf16.msra.mxu0 0
  %1445 = vmatprep.subr.bf16.mxu0 0
  %1446 = vmatpush1.bf16.msra.mxu0 0
  %1447 = vmatprep.subr.bf16.mxu0 0
  %1448 = vmatpush1.bf16.msra.mxu0 0
  %1449 = vmatprep.subr.bf16.mxu0 %v831
  %1450 = vmatpush1.bf16.msra.mxu0 %v830
  %1451 = vmatprep.subr.bf16.mxu0 %v829
  %1452 = vmatpush1.bf16.msra.mxu0 %v828
  %1453 = vmatprep.subr.bf16.mxu0 %v827
  %1454 = vmatpush1.bf16.msra.mxu0 %v826
  %1455 = vmatprep.subr.bf16.mxu0 %v825
  %1456 = vmatpush1.bf16.msra.mxu0 %v824
  %1457 = vmatprep.subr.bf16.mxu0 0
  %1458 = vmatpush2.bf16.msra.mxu0 0
  %1459 = vmatprep.subr.bf16.mxu0 0
  %1460 = vmatpush2.bf16.msra.mxu0 0
  %1461 = vmatprep.subr.bf16.mxu0 0
  %1462 = vmatpush2.bf16.msra.mxu0 0
  %1463 = vmatprep.subr.bf16.mxu0 0
  %1464 = vmatpush2.bf16.msra.mxu0 0
  %1465 = vmatprep.subr.bf16.mxu0 0
  %1466 = vmatpush2.bf16.msra.mxu0 0
  %1467 = vmatprep.subr.bf16.mxu0 0
  %1468 = vmatpush2.bf16.msra.mxu0 0
  %1469 = vmatprep.subr.bf16.mxu0 0
  %1470 = vmatpush2.bf16.msra.mxu0 0
  %1471 = vmatprep.subr.bf16.mxu0 0
  %1472 = vmatpush2.bf16.msra.mxu0 0
  %1473 = vmatprep.mubr.bf16.mxu0 0
  %1474 = vmatmul.mubr.bf16.gmra.mxu0 %v1324
  %v1475 = vpop.f32.mrf.mxu0
  %v1476 = vadd.f32 0.0, %v1475
  %v1477 = vpop.f32.mrf.mxu0
  %v1478 = vadd.f32 0.0, %v1477
  %v1479 = vpop.f32.mrf.mxu0
  %v1480 = vpop.f32.mrf.mxu0
  %1481 = vdwg.mxu0
  %v1482 = vadd.f32 %v1439, %v1476
  %v1483 = vadd.f32 %v1440, %v1478
  %v1484 = vxor.u32 %v1482, 2147483648
  %v1485 = vxor.u32 %v1483, 2147483648
  %v1486 = vmul.f32 %v1484, 1.442695
  %v1487 = vpow.pop %v1486
  %v1488 = vmul.f32 %v1485, 1.442695
  %v1489 = vpow.pop %v1488
  %v1490 = vadd.f32 %v1487, 1.0
  %v1491 = vadd.f32 %v1489, 1.0
  %v1492 = vrcp.pop %v1490
  %v1493 = vmul.f32 1.0, %v1492
  %v1494 = vrcp.pop %v1491
  %v1495 = vmul.f32 1.0, %v1494
  %v1496 = vtanh.pop %v1483
  %v1497 = vmul.f32 %v1493, %v1316
  %v1498 = vmul.f32 %v1493, %v1496
  %1500 = vrot.lane.b32.xlu0 %v1498, 64
  %v1501 = vpop.permute.xlu0 %1500
  %v1503 = vadd.f32 %v1497, %v1501
  %v1504 = vtanh.pop %v1503
  %v1505 = vmul.f32 %v1495, %v1504
  %v1506 = vpack.c.bf16 %v1505, %v1505
  %1508 = vrot.lane.b32.xlu0 %v1506, 64
  %v1509 = vpop.permute.xlu0 %1508
  %v1511 = vsel %vm753, %v1509, 0
  %1513 = vmatprep.subr.bf16.mxu0 0
  %1514 = vmatpush1.bf16.msra.mxu0 0
  %1515 = vmatprep.subr.bf16.mxu0 0
  %1516 = vmatpush1.bf16.msra.mxu0 0
  %1517 = vmatprep.subr.bf16.mxu0 0
  %1518 = vmatpush1.bf16.msra.mxu0 0
  %1519 = vmatprep.subr.bf16.mxu0 0
  %1520 = vmatpush1.bf16.msra.mxu0 0
  %1521 = vmatprep.subr.bf16.mxu0 %v940
  %1522 = vmatpush1.bf16.msra.mxu0 %v939
  %1523 = vmatprep.subr.bf16.mxu0 %v938
  %1524 = vmatpush1.bf16.msra.mxu0 %v937
  %1525 = vmatprep.subr.bf16.mxu0 %v936
  %1526 = vmatpush1.bf16.msra.mxu0 %v935
  %1527 = vmatprep.subr.bf16.mxu0 %v934
  %1528 = vmatpush1.bf16.msra.mxu0 %v933
  %1529 = vmatprep.subr.bf16.mxu0 0
  %1530 = vmatpush2.bf16.msra.mxu0 0
  %1531 = vmatprep.subr.bf16.mxu0 0
  %1532 = vmatpush2.bf16.msra.mxu0 0
  %1533 = vmatprep.subr.bf16.mxu0 0
  %1534 = vmatpush2.bf16.msra.mxu0 0
  %1535 = vmatprep.subr.bf16.mxu0 0
  %1536 = vmatpush2.bf16.msra.mxu0 0
  %1537 = vmatprep.subr.bf16.mxu0 0
  %1538 = vmatpush2.bf16.msra.mxu0 0
  %1539 = vmatprep.subr.bf16.mxu0 0
  %1540 = vmatpush2.bf16.msra.mxu0 0
  %1541 = vmatprep.subr.bf16.mxu0 0
  %1542 = vmatpush2.bf16.msra.mxu0 0
  %1543 = vmatprep.subr.bf16.mxu0 0
  %1544 = vmatpush2.bf16.msra.mxu0 0
  %1545 = vmatprep.mubr.bf16.mxu0 0
  %1546 = vmatmul.mubr.bf16.gmra.mxu0 %v1511
  %v1547 = vpop.f32.mrf.mxu0
  %v1548 = vadd.f32 %v1433, %v1547
  %v1549 = vpop.f32.mrf.mxu0
  %v1550 = vadd.f32 %v1435, %v1549
  %v1551 = vpop.f32.mrf.mxu0
  %v1552 = vpop.f32.mrf.mxu0
  %1553 = vdwg.mxu0
  %v1554 = vadd.f32 %v1548, %v706
  %v1555 = vadd.f32 %v1550, %v710
  %v1556 = vxor.u32 %v1554, 2147483648
  %v1557 = vxor.u32 %v1555, 2147483648
  %v1558 = vmul.f32 %v1556, 1.442695
  %v1559 = vpow.pop %v1558
  %v1560 = vmul.f32 %v1557, 1.442695
  %v1561 = vpow.pop %v1560
  %v1562 = vadd.f32 %v1559, 1.0
  %v1563 = vadd.f32 %v1561, 1.0
  %v1564 = vrcp.pop %v1562
  %v1565 = vmul.f32 1.0, %v1564
  %v1566 = vrcp.pop %v1563
  %v1567 = vmul.f32 1.0, %v1566
  %v1568 = vtanh.pop %v1555
  %v1569 = vmul.f32 %v1565, %v1388
  %v1570 = vmul.f32 %v1565, %v1568
  %1572 = vrot.lane.b32.xlu0 %v1570, 64
  %v1573 = vpop.permute.xlu0 %1572
  %v1575 = vadd.f32 %v1569, %v1573
  %v1576 = vtanh.pop %v1575
  %v1577 = vmul.f32 %v1567, %v1576
  %v1578 = vpack.c.bf16 %v1577, %v1577
  %1580 = vrot.lane.b32.xlu0 %v1578, 64
  %v1581 = vpop.permute.xlu0 %1580
  %v1583 = vsel %vm753, %v1581, 0
  %1585 = vmatprep.subr.bf16.mxu0 0
  %1586 = vmatpush1.bf16.msra.mxu0 0
  %1587 = vmatprep.subr.bf16.mxu0 0
  %1588 = vmatpush1.bf16.msra.mxu0 0
  %1589 = vmatprep.subr.bf16.mxu0 0
  %1590 = vmatpush1.bf16.msra.mxu0 0
  %1591 = vmatprep.subr.bf16.mxu0 0
  %1592 = vmatpush1.bf16.msra.mxu0 0
  %1593 = vmatprep.subr.bf16.mxu0 %v744
  %1594 = vmatpush1.bf16.msra.mxu0 %v743
  %1595 = vmatprep.subr.bf16.mxu0 %v742
  %1596 = vmatpush1.bf16.msra.mxu0 %v741
  %1597 = vmatprep.subr.bf16.mxu0 %v740
  %1598 = vmatpush1.bf16.msra.mxu0 %v739
  %1599 = vmatprep.subr.bf16.mxu0 %v738
  %1600 = vmatpush1.bf16.msra.mxu0 %v737
  %1601 = vmatprep.subr.bf16.mxu0 0
  %1602 = vmatpush2.bf16.msra.mxu0 0
  %1603 = vmatprep.subr.bf16.mxu0 0
  %1604 = vmatpush2.bf16.msra.mxu0 0
  %1605 = vmatprep.subr.bf16.mxu0 0
  %1606 = vmatpush2.bf16.msra.mxu0 0
  %1607 = vmatprep.subr.bf16.mxu0 0
  %1608 = vmatpush2.bf16.msra.mxu0 0
  %1609 = vmatprep.subr.bf16.mxu0 0
  %1610 = vmatpush2.bf16.msra.mxu0 0
  %1611 = vmatprep.subr.bf16.mxu0 0
  %1612 = vmatpush2.bf16.msra.mxu0 0
  %1613 = vmatprep.subr.bf16.mxu0 0
  %1614 = vmatpush2.bf16.msra.mxu0 0
  %1615 = vmatprep.subr.bf16.mxu0 0
  %1616 = vmatpush2.bf16.msra.mxu0 0
  %1617 = vmatprep.mubr.bf16.mxu0 0
  %1618 = vmatmul.mubr.bf16.gmra.mxu0 %v1583
  %v1619 = vpop.f32.mrf.mxu0
  %v1620 = vadd.f32 0.0, %v1619
  %v1621 = vpop.f32.mrf.mxu0
  %v1622 = vadd.f32 0.0, %v1621
  %v1623 = vpop.f32.mrf.mxu0
  %v1624 = vpop.f32.mrf.mxu0
  %1625 = vdwg.mxu0
  %v1626 = vld [vmem:[#allocation2 + $0x40] sm:$0xff]
  %v1627 = vld [vmem:[#allocation2 + $0x48] sm:$0xff]
  %1628 = vmatprep.subr.bf16.mxu0 0
  %1629 = vmatpush1.bf16.msra.mxu0 0
  %1630 = vmatprep.subr.bf16.mxu0 0
  %1631 = vmatpush1.bf16.msra.mxu0 0
  %1632 = vmatprep.subr.bf16.mxu0 0
  %1633 = vmatpush1.bf16.msra.mxu0 0
  %1634 = vmatprep.subr.bf16.mxu0 0
  %1635 = vmatpush1.bf16.msra.mxu0 0
  %1636 = vmatprep.subr.bf16.mxu0 %v831
  %1637 = vmatpush1.bf16.msra.mxu0 %v830
  %1638 = vmatprep.subr.bf16.mxu0 %v829
  %1639 = vmatpush1.bf16.msra.mxu0 %v828
  %1640 = vmatprep.subr.bf16.mxu0 %v827
  %1641 = vmatpush1.bf16.msra.mxu0 %v826
  %1642 = vmatprep.subr.bf16.mxu0 %v825
  %1643 = vmatpush1.bf16.msra.mxu0 %v824
  %1644 = vmatprep.subr.bf16.mxu0 0
  %1645 = vmatpush2.bf16.msra.mxu0 0
  %1646 = vmatprep.subr.bf16.mxu0 0
  %1647 = vmatpush2.bf16.msra.mxu0 0
  %1648 = vmatprep.subr.bf16.mxu0 0
  %1649 = vmatpush2.bf16.msra.mxu0 0
  %1650 = vmatprep.subr.bf16.mxu0 0
  %1651 = vmatpush2.bf16.msra.mxu0 0
  %1652 = vmatprep.subr.bf16.mxu0 0
  %1653 = vmatpush2.bf16.msra.mxu0 0
  %1654 = vmatprep.subr.bf16.mxu0 0
  %1655 = vmatpush2.bf16.msra.mxu0 0
  %1656 = vmatprep.subr.bf16.mxu0 0
  %1657 = vmatpush2.bf16.msra.mxu0 0
  %1658 = vmatprep.subr.bf16.mxu0 0
  %1659 = vmatpush2.bf16.msra.mxu0 0
  %1660 = vmatprep.mubr.bf16.mxu0 0
  %1661 = vmatmul.mubr.bf16.gmra.mxu0 %v1511
  %v1662 = vpop.f32.mrf.mxu0
  %v1663 = vadd.f32 0.0, %v1662
  %v1664 = vpop.f32.mrf.mxu0
  %v1665 = vadd.f32 0.0, %v1664
  %v1666 = vpop.f32.mrf.mxu0
  %v1667 = vpop.f32.mrf.mxu0
  %1668 = vdwg.mxu0
  %v1669 = vadd.f32 %v1626, %v1663
  %v1670 = vadd.f32 %v1627, %v1665
  %v1671 = vxor.u32 %v1669, 2147483648
  %v1672 = vxor.u32 %v1670, 2147483648
  %v1673 = vmul.f32 %v1671, 1.442695
  %v1674 = vpow.pop %v1673
  %v1675 = vmul.f32 %v1672, 1.442695
  %v1676 = vpow.pop %v1675
  %v1677 = vadd.f32 %v1674, 1.0
  %v1678 = vadd.f32 %v1676, 1.0
  %v1679 = vrcp.pop %v1677
  %v1680 = vmul.f32 1.0, %v1679
  %v1681 = vrcp.pop %v1678
  %v1682 = vmul.f32 1.0, %v1681
  %v1683 = vtanh.pop %v1670
  %v1684 = vmul.f32 %v1680, %v1503
  %v1685 = vmul.f32 %v1680, %v1683
  %1687 = vrot.lane.b32.xlu0 %v1685, 64
  %v1688 = vpop.permute.xlu0 %1687
  %v1690 = vadd.f32 %v1684, %v1688
  %v1691 = vtanh.pop %v1690
  %v1692 = vmul.f32 %v1682, %v1691
  %v1693 = vpack.c.bf16 %v1692, %v1692
  %1695 = vrot.lane.b32.xlu0 %v1693, 64
  %v1696 = vpop.permute.xlu0 %1695
  %v1698 = vsel %vm753, %v1696, 0
  %1700 = vmatprep.subr.bf16.mxu0 0
  %1701 = vmatpush1.bf16.msra.mxu0 0
  %1702 = vmatprep.subr.bf16.mxu0 0
  %1703 = vmatpush1.bf16.msra.mxu0 0
  %1704 = vmatprep.subr.bf16.mxu0 0
  %1705 = vmatpush1.bf16.msra.mxu0 0
  %1706 = vmatprep.subr.bf16.mxu0 0
  %1707 = vmatpush1.bf16.msra.mxu0 0
  %1708 = vmatprep.subr.bf16.mxu0 %v940
  %1709 = vmatpush1.bf16.msra.mxu0 %v939
  %1710 = vmatprep.subr.bf16.mxu0 %v938
  %1711 = vmatpush1.bf16.msra.mxu0 %v937
  %1712 = vmatprep.subr.bf16.mxu0 %v936
  %1713 = vmatpush1.bf16.msra.mxu0 %v935
  %1714 = vmatprep.subr.bf16.mxu0 %v934
  %1715 = vmatpush1.bf16.msra.mxu0 %v933
  %1716 = vmatprep.subr.bf16.mxu0 0
  %1717 = vmatpush2.bf16.msra.mxu0 0
  %1718 = vmatprep.subr.bf16.mxu0 0
  %1719 = vmatpush2.bf16.msra.mxu0 0
  %1720 = vmatprep.subr.bf16.mxu0 0
  %1721 = vmatpush2.bf16.msra.mxu0 0
  %1722 = vmatprep.subr.bf16.mxu0 0
  %1723 = vmatpush2.bf16.msra.mxu0 0
  %1724 = vmatprep.subr.bf16.mxu0 0
  %1725 = vmatpush2.bf16.msra.mxu0 0
  %1726 = vmatprep.subr.bf16.mxu0 0
  %1727 = vmatpush2.bf16.msra.mxu0 0
  %1728 = vmatprep.subr.bf16.mxu0 0
  %1729 = vmatpush2.bf16.msra.mxu0 0
  %1730 = vmatprep.subr.bf16.mxu0 0
  %1731 = vmatpush2.bf16.msra.mxu0 0
  %1732 = vmatprep.mubr.bf16.mxu0 0
  %1733 = vmatmul.mubr.bf16.gmra.mxu0 %v1698
  %v1734 = vpop.f32.mrf.mxu0
  %v1735 = vadd.f32 %v1620, %v1734
  %v1736 = vpop.f32.mrf.mxu0
  %v1737 = vadd.f32 %v1622, %v1736
  %v1738 = vpop.f32.mrf.mxu0
  %v1739 = vpop.f32.mrf.mxu0
  %1740 = vdwg.mxu0
  %v1741 = vadd.f32 %v1735, %v706
  %v1742 = vadd.f32 %v1737, %v710
  %v1743 = vxor.u32 %v1741, 2147483648
  %v1744 = vxor.u32 %v1742, 2147483648
  %v1745 = vmul.f32 %v1743, 1.442695
  %v1746 = vpow.pop %v1745
  %v1747 = vmul.f32 %v1744, 1.442695
  %v1748 = vpow.pop %v1747
  %v1749 = vadd.f32 %v1746, 1.0
  %v1750 = vadd.f32 %v1748, 1.0
  %v1751 = vrcp.pop %v1749
  %v1752 = vmul.f32 1.0, %v1751
  %v1753 = vrcp.pop %v1750
  %v1754 = vmul.f32 1.0, %v1753
  %v1755 = vtanh.pop %v1742
  %v1756 = vmul.f32 %v1752, %v1575
  %v1757 = vmul.f32 %v1752, %v1755
  %1759 = vrot.lane.b32.xlu0 %v1757, 64
  %v1760 = vpop.permute.xlu0 %1759
  %v1762 = vadd.f32 %v1756, %v1760
  %v1763 = vtanh.pop %v1762
  %v1764 = vmul.f32 %v1754, %v1763
  %v1765 = vpack.c.bf16 %v1764, %v1764
  %1767 = vrot.lane.b32.xlu0 %v1765, 64
  %v1768 = vpop.permute.xlu0 %1767
  %v1770 = vsel %vm753, %v1768, 0
  %1772 = vmatprep.subr.bf16.mxu0 0
  %1773 = vmatpush1.bf16.msra.mxu0 0
  %1774 = vmatprep.subr.bf16.mxu0 0
  %1775 = vmatpush1.bf16.msra.mxu0 0
  %1776 = vmatprep.subr.bf16.mxu0 0
  %1777 = vmatpush1.bf16.msra.mxu0 0
  %1778 = vmatprep.subr.bf16.mxu0 0
  %1779 = vmatpush1.bf16.msra.mxu0 0
  %1780 = vmatprep.subr.bf16.mxu0 %v744
  %1781 = vmatpush1.bf16.msra.mxu0 %v743
  %1782 = vmatprep.subr.bf16.mxu0 %v742
  %1783 = vmatpush1.bf16.msra.mxu0 %v741
  %1784 = vmatprep.subr.bf16.mxu0 %v740
  %1785 = vmatpush1.bf16.msra.mxu0 %v739
  %1786 = vmatprep.subr.bf16.mxu0 %v738
  %1787 = vmatpush1.bf16.msra.mxu0 %v737
  %1788 = vmatprep.subr.bf16.mxu0 0
  %1789 = vmatpush2.bf16.msra.mxu0 0
  %1790 = vmatprep.subr.bf16.mxu0 0
  %1791 = vmatpush2.bf16.msra.mxu0 0
  %1792 = vmatprep.subr.bf16.mxu0 0
  %1793 = vmatpush2.bf16.msra.mxu0 0
  %1794 = vmatprep.subr.bf16.mxu0 0
  %1795 = vmatpush2.bf16.msra.mxu0 0
  %1796 = vmatprep.subr.bf16.mxu0 0
  %1797 = vmatpush2.bf16.msra.mxu0 0
  %1798 = vmatprep.subr.bf16.mxu0 0
  %1799 = vmatpush2.bf16.msra.mxu0 0
  %1800 = vmatprep.subr.bf16.mxu0 0
  %1801 = vmatpush2.bf16.msra.mxu0 0
  %1802 = vmatprep.subr.bf16.mxu0 0
  %1803 = vmatpush2.bf16.msra.mxu0 0
  %1804 = vmatprep.mubr.bf16.mxu0 0
  %1805 = vmatmul.mubr.bf16.gmra.mxu0 %v1770
  %v1806 = vpop.f32.mrf.mxu0
  %v1807 = vadd.f32 0.0, %v1806
  %v1808 = vpop.f32.mrf.mxu0
  %v1809 = vadd.f32 0.0, %v1808
  %v1810 = vpop.f32.mrf.mxu0
  %v1811 = vpop.f32.mrf.mxu0
  %1812 = vdwg.mxu0
  %v1813 = vld [vmem:[#allocation2 + $0x50] sm:$0xff]
  %v1814 = vld [vmem:[#allocation2 + $0x58] sm:$0xff]
  %1815 = vmatprep.subr.bf16.mxu0 0
  %1816 = vmatpush1.bf16.msra.mxu0 0
  %1817 = vmatprep.subr.bf16.mxu0 0
  %1818 = vmatpush1.bf16.msra.mxu0 0
  %1819 = vmatprep.subr.bf16.mxu0 0
  %1820 = vmatpush1.bf16.msra.mxu0 0
  %1821 = vmatprep.subr.bf16.mxu0 0
  %1822 = vmatpush1.bf16.msra.mxu0 0
  %1823 = vmatprep.subr.bf16.mxu0 %v831
  %1824 = vmatpush1.bf16.msra.mxu0 %v830
  %1825 = vmatprep.subr.bf16.mxu0 %v829
  %1826 = vmatpush1.bf16.msra.mxu0 %v828
  %1827 = vmatprep.subr.bf16.mxu0 %v827
  %1828 = vmatpush1.bf16.msra.mxu0 %v826
  %1829 = vmatprep.subr.bf16.mxu0 %v825
  %1830 = vmatpush1.bf16.msra.mxu0 %v824
  %1831 = vmatprep.subr.bf16.mxu0 0
  %1832 = vmatpush2.bf16.msra.mxu0 0
  %1833 = vmatprep.subr.bf16.mxu0 0
  %1834 = vmatpush2.bf16.msra.mxu0 0
  %1835 = vmatprep.subr.bf16.mxu0 0
  %1836 = vmatpush2.bf16.msra.mxu0 0
  %1837 = vmatprep.subr.bf16.mxu0 0
  %1838 = vmatpush2.bf16.msra.mxu0 0
  %1839 = vmatprep.subr.bf16.mxu0 0
  %1840 = vmatpush2.bf16.msra.mxu0 0
  %1841 = vmatprep.subr.bf16.mxu0 0
  %1842 = vmatpush2.bf16.msra.mxu0 0
  %1843 = vmatprep.subr.bf16.mxu0 0
  %1844 = vmatpush2.bf16.msra.mxu0 0
  %1845 = vmatprep.subr.bf16.mxu0 0
  %1846 = vmatpush2.bf16.msra.mxu0 0
  %1847 = vmatprep.mubr.bf16.mxu0 0
  %1848 = vmatmul.mubr.bf16.gmra.mxu0 %v1698
  %v1849 = vpop.f32.mrf.mxu0
  %v1850 = vadd.f32 0.0, %v1849
  %v1851 = vpop.f32.mrf.mxu0
  %v1852 = vadd.f32 0.0, %v1851
  %v1853 = vpop.f32.mrf.mxu0
  %v1854 = vpop.f32.mrf.mxu0
  %1855 = vdwg.mxu0
  %v1856 = vadd.f32 %v1813, %v1850
  %v1857 = vadd.f32 %v1814, %v1852
  %v1858 = vxor.u32 %v1856, 2147483648
  %v1859 = vxor.u32 %v1857, 2147483648
  %v1860 = vmul.f32 %v1858, 1.442695
  %v1861 = vpow.pop %v1860
  %v1862 = vmul.f32 %v1859, 1.442695
  %v1863 = vpow.pop %v1862
  %v1864 = vadd.f32 %v1861, 1.0
  %v1865 = vadd.f32 %v1863, 1.0
  %v1866 = vrcp.pop %v1864
  %v1867 = vmul.f32 1.0, %v1866
  %v1868 = vrcp.pop %v1865
  %v1869 = vmul.f32 1.0, %v1868
  %v1870 = vtanh.pop %v1857
  %v1871 = vmul.f32 %v1867, %v1690
  %v1872 = vmul.f32 %v1867, %v1870
  %1874 = vrot.lane.b32.xlu0 %v1872, 64
  %v1875 = vpop.permute.xlu0 %1874
  %v1877 = vadd.f32 %v1871, %v1875
  %v1878 = vtanh.pop %v1877
  %v1879 = vmul.f32 %v1869, %v1878
  %v1880 = vpack.c.bf16 %v1879, %v1879
  %1882 = vrot.lane.b32.xlu0 %v1880, 64
  %v1883 = vpop.permute.xlu0 %1882
  %v1885 = vsel %vm753, %v1883, 0
  %1887 = vmatprep.subr.bf16.mxu0 0
  %1888 = vmatpush1.bf16.msra.mxu0 0
  %1889 = vmatprep.subr.bf16.mxu0 0
  %1890 = vmatpush1.bf16.msra.mxu0 0
  %1891 = vmatprep.subr.bf16.mxu0 0
  %1892 = vmatpush1.bf16.msra.mxu0 0
  %1893 = vmatprep.subr.bf16.mxu0 0
  %1894 = vmatpush1.bf16.msra.mxu0 0
  %1895 = vmatprep.subr.bf16.mxu0 %v940
  %1896 = vmatpush1.bf16.msra.mxu0 %v939
  %1897 = vmatprep.subr.bf16.mxu0 %v938
  %1898 = vmatpush1.bf16.msra.mxu0 %v937
  %1899 = vmatprep.subr.bf16.mxu0 %v936
  %1900 = vmatpush1.bf16.msra.mxu0 %v935
  %1901 = vmatprep.subr.bf16.mxu0 %v934
  %1902 = vmatpush1.bf16.msra.mxu0 %v933
  %1903 = vmatprep.subr.bf16.mxu0 0
  %1904 = vmatpush2.bf16.msra.mxu0 0
  %1905 = vmatprep.subr.bf16.mxu0 0
  %1906 = vmatpush2.bf16.msra.mxu0 0
  %1907 = vmatprep.subr.bf16.mxu0 0
  %1908 = vmatpush2.bf16.msra.mxu0 0
  %1909 = vmatprep.subr.bf16.mxu0 0
  %1910 = vmatpush2.bf16.msra.mxu0 0
  %1911 = vmatprep.subr.bf16.mxu0 0
  %1912 = vmatpush2.bf16.msra.mxu0 0
  %1913 = vmatprep.subr.bf16.mxu0 0
  %1914 = vmatpush2.bf16.msra.mxu0 0
  %1915 = vmatprep.subr.bf16.mxu0 0
  %1916 = vmatpush2.bf16.msra.mxu0 0
  %1917 = vmatprep.subr.bf16.mxu0 0
  %1918 = vmatpush2.bf16.msra.mxu0 0
  %1919 = vmatprep.mubr.bf16.mxu0 0
  %1920 = vmatmul.mubr.bf16.gmra.mxu0 %v1885
  %v1921 = vpop.f32.mrf.mxu0
  %v1922 = vadd.f32 %v1807, %v1921
  %v1923 = vpop.f32.mrf.mxu0
  %v1924 = vadd.f32 %v1809, %v1923
  %v1925 = vpop.f32.mrf.mxu0
  %v1926 = vpop.f32.mrf.mxu0
  %1927 = vdwg.mxu0
  %v1928 = vadd.f32 %v1922, %v706
  %v1929 = vadd.f32 %v1924, %v710
  %v1930 = vxor.u32 %v1928, 2147483648
  %v1931 = vxor.u32 %v1929, 2147483648
  %v1932 = vmul.f32 %v1930, 1.442695
  %v1933 = vpow.pop %v1932
  %v1934 = vmul.f32 %v1931, 1.442695
  %v1935 = vpow.pop %v1934
  %v1936 = vadd.f32 %v1933, 1.0
  %v1937 = vadd.f32 %v1935, 1.0
  %v1938 = vrcp.pop %v1936
  %v1939 = vmul.f32 1.0, %v1938
  %v1940 = vrcp.pop %v1937
  %v1941 = vmul.f32 1.0, %v1940
  %v1942 = vtanh.pop %v1929
  %v1943 = vmul.f32 %v1939, %v1762
  %v1944 = vmul.f32 %v1939, %v1942
  %1946 = vrot.lane.b32.xlu0 %v1944, 64
  %v1947 = vpop.permute.xlu0 %1946
  %v1949 = vadd.f32 %v1943, %v1947
  %v1950 = vtanh.pop %v1949
  %v1951 = vmul.f32 %v1941, %v1950
  %v1952 = vpack.c.bf16 %v1951, %v1951
  %1954 = vrot.lane.b32.xlu0 %v1952, 64
  %v1955 = vpop.permute.xlu0 %1954
  %v1957 = vsel %vm753, %v1955, 0
  %1959 = vmatprep.subr.bf16.mxu0 0
  %1960 = vmatpush1.bf16.msra.mxu0 0
  %1961 = vmatprep.subr.bf16.mxu0 0
  %1962 = vmatpush1.bf16.msra.mxu0 0
  %1963 = vmatprep.subr.bf16.mxu0 0
  %1964 = vmatpush1.bf16.msra.mxu0 0
  %1965 = vmatprep.subr.bf16.mxu0 0
  %1966 = vmatpush1.bf16.msra.mxu0 0
  %1967 = vmatprep.subr.bf16.mxu0 %v744
  %1968 = vmatpush1.bf16.msra.mxu0 %v743
  %1969 = vmatprep.subr.bf16.mxu0 %v742
  %1970 = vmatpush1.bf16.msra.mxu0 %v741
  %1971 = vmatprep.subr.bf16.mxu0 %v740
  %1972 = vmatpush1.bf16.msra.mxu0 %v739
  %1973 = vmatprep.subr.bf16.mxu0 %v738
  %1974 = vmatpush1.bf16.msra.mxu0 %v737
  %1975 = vmatprep.subr.bf16.mxu0 0
  %1976 = vmatpush2.bf16.msra.mxu0 0
  %1977 = vmatprep.subr.bf16.mxu0 0
  %1978 = vmatpush2.bf16.msra.mxu0 0
  %1979 = vmatprep.subr.bf16.mxu0 0
  %1980 = vmatpush2.bf16.msra.mxu0 0
  %1981 = vmatprep.subr.bf16.mxu0 0
  %1982 = vmatpush2.bf16.msra.mxu0 0
  %1983 = vmatprep.subr.bf16.mxu0 0
  %1984 = vmatpush2.bf16.msra.mxu0 0
  %1985 = vmatprep.subr.bf16.mxu0 0
  %1986 = vmatpush2.bf16.msra.mxu0 0
  %1987 = vmatprep.subr.bf16.mxu0 0
  %1988 = vmatpush2.bf16.msra.mxu0 0
  %1989 = vmatprep.subr.bf16.mxu0 0
  %1990 = vmatpush2.bf16.msra.mxu0 0
  %1991 = vmatprep.mubr.bf16.mxu0 0
  %1992 = vmatmul.mubr.bf16.gmra.mxu0 %v1957
  %v1993 = vpop.f32.mrf.mxu0
  %v1994 = vadd.f32 0.0, %v1993
  %v1995 = vpop.f32.mrf.mxu0
  %v1996 = vadd.f32 0.0, %v1995
  %v1997 = vpop.f32.mrf.mxu0
  %v1998 = vpop.f32.mrf.mxu0
  %1999 = vdwg.mxu0
  %v2000 = vld [vmem:[#allocation2 + $0x60] sm:$0xff]
  %v2001 = vld [vmem:[#allocation2 + $0x68] sm:$0xff]
  %2002 = vmatprep.subr.bf16.mxu0 0
  %2003 = vmatpush1.bf16.msra.mxu0 0
  %2004 = vmatprep.subr.bf16.mxu0 0
  %2005 = vmatpush1.bf16.msra.mxu0 0
  %2006 = vmatprep.subr.bf16.mxu0 0
  %2007 = vmatpush1.bf16.msra.mxu0 0
  %2008 = vmatprep.subr.bf16.mxu0 0
  %2009 = vmatpush1.bf16.msra.mxu0 0
  %2010 = vmatprep.subr.bf16.mxu0 %v831
  %2011 = vmatpush1.bf16.msra.mxu0 %v830
  %2012 = vmatprep.subr.bf16.mxu0 %v829
  %2013 = vmatpush1.bf16.msra.mxu0 %v828
  %2014 = vmatprep.subr.bf16.mxu0 %v827
  %2015 = vmatpush1.bf16.msra.mxu0 %v826
  %2016 = vmatprep.subr.bf16.mxu0 %v825
  %2017 = vmatpush1.bf16.msra.mxu0 %v824
  %2018 = vmatprep.subr.bf16.mxu0 0
  %2019 = vmatpush2.bf16.msra.mxu0 0
  %2020 = vmatprep.subr.bf16.mxu0 0
  %2021 = vmatpush2.bf16.msra.mxu0 0
  %2022 = vmatprep.subr.bf16.mxu0 0
  %2023 = vmatpush2.bf16.msra.mxu0 0
  %2024 = vmatprep.subr.bf16.mxu0 0
  %2025 = vmatpush2.bf16.msra.mxu0 0
  %2026 = vmatprep.subr.bf16.mxu0 0
  %2027 = vmatpush2.bf16.msra.mxu0 0
  %2028 = vmatprep.subr.bf16.mxu0 0
  %2029 = vmatpush2.bf16.msra.mxu0 0
  %2030 = vmatprep.subr.bf16.mxu0 0
  %2031 = vmatpush2.bf16.msra.mxu0 0
  %2032 = vmatprep.subr.bf16.mxu0 0
  %2033 = vmatpush2.bf16.msra.mxu0 0
  %2034 = vmatprep.mubr.bf16.mxu0 0
  %2035 = vmatmul.mubr.bf16.gmra.mxu0 %v1885
  %v2036 = vpop.f32.mrf.mxu0
  %v2037 = vadd.f32 0.0, %v2036
  %v2038 = vpop.f32.mrf.mxu0
  %v2039 = vadd.f32 0.0, %v2038
  %v2040 = vpop.f32.mrf.mxu0
  %v2041 = vpop.f32.mrf.mxu0
  %2042 = vdwg.mxu0
  %v2043 = vadd.f32 %v2000, %v2037
  %v2044 = vadd.f32 %v2001, %v2039
  %v2045 = vxor.u32 %v2043, 2147483648
  %v2046 = vxor.u32 %v2044, 2147483648
  %v2047 = vmul.f32 %v2045, 1.442695
  %v2048 = vpow.pop %v2047
  %v2049 = vmul.f32 %v2046, 1.442695
  %v2050 = vpow.pop %v2049
  %v2051 = vadd.f32 %v2048, 1.0
  %v2052 = vadd.f32 %v2050, 1.0
  %v2053 = vrcp.pop %v2051
  %v2054 = vmul.f32 1.0, %v2053
  %v2055 = vrcp.pop %v2052
  %v2056 = vmul.f32 1.0, %v2055
  %v2057 = vtanh.pop %v2044
  %v2058 = vmul.f32 %v2054, %v1877
  %v2059 = vmul.f32 %v2054, %v2057
  %2061 = vrot.lane.b32.xlu0 %v2059, 64
  %v2062 = vpop.permute.xlu0 %2061
  %v2064 = vadd.f32 %v2058, %v2062
  %v2065 = vtanh.pop %v2064
  %v2066 = vmul.f32 %v2056, %v2065
  %v2067 = vpack.c.bf16 %v2066, %v2066
  %2069 = vrot.lane.b32.xlu0 %v2067, 64
  %v2070 = vpop.permute.xlu0 %2069
  %v2072 = vsel %vm753, %v2070, 0
  %2074 = vmatprep.subr.bf16.mxu0 0
  %2075 = vmatpush1.bf16.msra.mxu0 0
  %2076 = vmatprep.subr.bf16.mxu0 0
  %2077 = vmatpush1.bf16.msra.mxu0 0
  %2078 = vmatprep.subr.bf16.mxu0 0
  %2079 = vmatpush1.bf16.msra.mxu0 0
  %2080 = vmatprep.subr.bf16.mxu0 0
  %2081 = vmatpush1.bf16.msra.mxu0 0
  %2082 = vmatprep.subr.bf16.mxu0 %v940
  %2083 = vmatpush1.bf16.msra.mxu0 %v939
  %2084 = vmatprep.subr.bf16.mxu0 %v938
  %2085 = vmatpush1.bf16.msra.mxu0 %v937
  %2086 = vmatprep.subr.bf16.mxu0 %v936
  %2087 = vmatpush1.bf16.msra.mxu0 %v935
  %2088 = vmatprep.subr.bf16.mxu0 %v934
  %2089 = vmatpush1.bf16.msra.mxu0 %v933
  %2090 = vmatprep.subr.bf16.mxu0 0
  %2091 = vmatpush2.bf16.msra.mxu0 0
  %2092 = vmatprep.subr.bf16.mxu0 0
  %2093 = vmatpush2.bf16.msra.mxu0 0
  %2094 = vmatprep.subr.bf16.mxu0 0
  %2095 = vmatpush2.bf16.msra.mxu0 0
  %2096 = vmatprep.subr.bf16.mxu0 0
  %2097 = vmatpush2.bf16.msra.mxu0 0
  %2098 = vmatprep.subr.bf16.mxu0 0
  %2099 = vmatpush2.bf16.msra.mxu0 0
  %2100 = vmatprep.subr.bf16.mxu0 0
  %2101 = vmatpush2.bf16.msra.mxu0 0
  %2102 = vmatprep.subr.bf16.mxu0 0
  %2103 = vmatpush2.bf16.msra.mxu0 0
  %2104 = vmatprep.subr.bf16.mxu0 0
  %2105 = vmatpush2.bf16.msra.mxu0 0
  %2106 = vmatprep.mubr.bf16.mxu0 0
  %2107 = vmatmul.mubr.bf16.gmra.mxu0 %v2072
  %v2108 = vpop.f32.mrf.mxu0
  %v2109 = vadd.f32 %v1994, %v2108
  %v2110 = vpop.f32.mrf.mxu0
  %v2111 = vadd.f32 %v1996, %v2110
  %v2112 = vpop.f32.mrf.mxu0
  %v2113 = vpop.f32.mrf.mxu0
  %2114 = vdwg.mxu0
  %v2115 = vadd.f32 %v2109, %v706
  %v2116 = vadd.f32 %v2111, %v710
  %v2117 = vxor.u32 %v2115, 2147483648
  %v2118 = vxor.u32 %v2116, 2147483648
  %v2119 = vmul.f32 %v2117, 1.442695
  %v2120 = vpow.pop %v2119
  %v2121 = vmul.f32 %v2118, 1.442695
  %v2122 = vpow.pop %v2121
  %v2123 = vadd.f32 %v2120, 1.0
  %v2124 = vadd.f32 %v2122, 1.0
  %v2125 = vrcp.pop %v2123
  %v2126 = vmul.f32 1.0, %v2125
  %v2127 = vrcp.pop %v2124
  %v2128 = vmul.f32 1.0, %v2127
  %v2129 = vtanh.pop %v2116
  %v2130 = vmul.f32 %v2126, %v1949
  %v2131 = vmul.f32 %v2126, %v2129
  %2133 = vrot.lane.b32.xlu0 %v2131, 64
  %v2134 = vpop.permute.xlu0 %2133
  %v2136 = vadd.f32 %v2130, %v2134
  %v2137 = vtanh.pop %v2136
  %v2138 = vmul.f32 %v2128, %v2137
  %v2139 = vpack.c.bf16 %v2138, %v2138
  %2141 = vrot.lane.b32.xlu0 %v2139, 64
  %v2142 = vpop.permute.xlu0 %2141
  %v2144 = vsel %vm753, %v2142, 0
  %2146 = vmatprep.subr.bf16.mxu0 0
  %2147 = vmatpush1.bf16.msra.mxu0 0
  %2148 = vmatprep.subr.bf16.mxu0 0
  %2149 = vmatpush1.bf16.msra.mxu0 0
  %2150 = vmatprep.subr.bf16.mxu0 0
  %2151 = vmatpush1.bf16.msra.mxu0 0
  %2152 = vmatprep.subr.bf16.mxu0 0
  %2153 = vmatpush1.bf16.msra.mxu0 0
  %2154 = vmatprep.subr.bf16.mxu0 %v744
  %2155 = vmatpush1.bf16.msra.mxu0 %v743
  %2156 = vmatprep.subr.bf16.mxu0 %v742
  %2157 = vmatpush1.bf16.msra.mxu0 %v741
  %2158 = vmatprep.subr.bf16.mxu0 %v740
  %2159 = vmatpush1.bf16.msra.mxu0 %v739
  %2160 = vmatprep.subr.bf16.mxu0 %v738
  %2161 = vmatpush1.bf16.msra.mxu0 %v737
  %2162 = vmatprep.subr.bf16.mxu0 0
  %2163 = vmatpush2.bf16.msra.mxu0 0
  %2164 = vmatprep.subr.bf16.mxu0 0
  %2165 = vmatpush2.bf16.msra.mxu0 0
  %2166 = vmatprep.subr.bf16.mxu0 0
  %2167 = vmatpush2.bf16.msra.mxu0 0
  %2168 = vmatprep.subr.bf16.mxu0 0
  %2169 = vmatpush2.bf16.msra.mxu0 0
  %2170 = vmatprep.subr.bf16.mxu0 0
  %2171 = vmatpush2.bf16.msra.mxu0 0
  %2172 = vmatprep.subr.bf16.mxu0 0
  %2173 = vmatpush2.bf16.msra.mxu0 0
  %2174 = vmatprep.subr.bf16.mxu0 0
  %2175 = vmatpush2.bf16.msra.mxu0 0
  %2176 = vmatprep.subr.bf16.mxu0 0
  %2177 = vmatpush2.bf16.msra.mxu0 0
  %2178 = vmatprep.mubr.bf16.mxu0 0
  %2179 = vmatmul.mubr.bf16.gmra.mxu0 %v2144
  %v2180 = vpop.f32.mrf.mxu0
  %v2181 = vadd.f32 0.0, %v2180
  %v2182 = vpop.f32.mrf.mxu0
  %v2183 = vadd.f32 0.0, %v2182
  %v2184 = vpop.f32.mrf.mxu0
  %v2185 = vpop.f32.mrf.mxu0
  %2186 = vdwg.mxu0
  %v2187 = vld [vmem:[#allocation2 + $0x70] sm:$0xff]
  %v2188 = vld [vmem:[#allocation2 + $0x78] sm:$0xff]
  %2189 = vmatprep.subr.bf16.mxu0 0
  %2190 = vmatpush1.bf16.msra.mxu0 0
  %2191 = vmatprep.subr.bf16.mxu0 0
  %2192 = vmatpush1.bf16.msra.mxu0 0
  %2193 = vmatprep.subr.bf16.mxu0 0
  %2194 = vmatpush1.bf16.msra.mxu0 0
  %2195 = vmatprep.subr.bf16.mxu0 0
  %2196 = vmatpush1.bf16.msra.mxu0 0
  %2197 = vmatprep.subr.bf16.mxu0 %v831
  %2198 = vmatpush1.bf16.msra.mxu0 %v830
  %2199 = vmatprep.subr.bf16.mxu0 %v829
  %2200 = vmatpush1.bf16.msra.mxu0 %v828
  %2201 = vmatprep.subr.bf16.mxu0 %v827
  %2202 = vmatpush1.bf16.msra.mxu0 %v826
  %2203 = vmatprep.subr.bf16.mxu0 %v825
  %2204 = vmatpush1.bf16.msra.mxu0 %v824
  %2205 = vmatprep.subr.bf16.mxu0 0
  %2206 = vmatpush2.bf16.msra.mxu0 0
  %2207 = vmatprep.subr.bf16.mxu0 0
  %2208 = vmatpush2.bf16.msra.mxu0 0
  %2209 = vmatprep.subr.bf16.mxu0 0
  %2210 = vmatpush2.bf16.msra.mxu0 0
  %2211 = vmatprep.subr.bf16.mxu0 0
  %2212 = vmatpush2.bf16.msra.mxu0 0
  %2213 = vmatprep.subr.bf16.mxu0 0
  %2214 = vmatpush2.bf16.msra.mxu0 0
  %2215 = vmatprep.subr.bf16.mxu0 0
  %2216 = vmatpush2.bf16.msra.mxu0 0
  %2217 = vmatprep.subr.bf16.mxu0 0
  %2218 = vmatpush2.bf16.msra.mxu0 0
  %2219 = vmatprep.subr.bf16.mxu0 0
  %2220 = vmatpush2.bf16.msra.mxu0 0
  %2221 = vmatprep.mubr.bf16.mxu0 0
  %2222 = vmatmul.mubr.bf16.gmra.mxu0 %v2072
  %v2223 = vpop.f32.mrf.mxu0
  %v2224 = vadd.f32 0.0, %v2223
  %v2225 = vpop.f32.mrf.mxu0
  %v2226 = vadd.f32 0.0, %v2225
  %v2227 = vpop.f32.mrf.mxu0
  %v2228 = vpop.f32.mrf.mxu0
  %2229 = vdwg.mxu0
  %v2230 = vadd.f32 %v2187, %v2224
  %v2231 = vadd.f32 %v2188, %v2226
  %v2232 = vxor.u32 %v2230, 2147483648
  %v2233 = vxor.u32 %v2231, 2147483648
  %v2234 = vmul.f32 %v2232, 1.442695
  %v2235 = vpow.pop %v2234
  %v2236 = vmul.f32 %v2233, 1.442695
  %v2237 = vpow.pop %v2236
  %v2238 = vadd.f32 %v2235, 1.0
  %v2239 = vadd.f32 %v2237, 1.0
  %v2240 = vrcp.pop %v2238
  %v2241 = vmul.f32 1.0, %v2240
  %v2242 = vrcp.pop %v2239
  %v2243 = vmul.f32 1.0, %v2242
  %v2244 = vtanh.pop %v2231
  %v2245 = vmul.f32 %v2241, %v2064
  %v2246 = vmul.f32 %v2241, %v2244
  %2248 = vrot.lane.b32.xlu0 %v2246, 64
  %v2249 = vpop.permute.xlu0 %2248
  %v2251 = vadd.f32 %v2245, %v2249
  %v2252 = vtanh.pop %v2251
  %v2253 = vmul.f32 %v2243, %v2252
  %v2254 = vpack.c.bf16 %v2253, %v2253
  %2256 = vrot.lane.b32.xlu0 %v2254, 64
  %v2257 = vpop.permute.xlu0 %2256
  %v2259 = vsel %vm753, %v2257, 0
  %2261 = vmatprep.subr.bf16.mxu0 0
  %2262 = vmatpush1.bf16.msra.mxu0 0
  %2263 = vmatprep.subr.bf16.mxu0 0
  %2264 = vmatpush1.bf16.msra.mxu0 0
  %2265 = vmatprep.subr.bf16.mxu0 0
  %2266 = vmatpush1.bf16.msra.mxu0 0
  %2267 = vmatprep.subr.bf16.mxu0 0
  %2268 = vmatpush1.bf16.msra.mxu0 0
  %2269 = vmatprep.subr.bf16.mxu0 %v940
  %2270 = vmatpush1.bf16.msra.mxu0 %v939
  %2271 = vmatprep.subr.bf16.mxu0 %v938
  %2272 = vmatpush1.bf16.msra.mxu0 %v937
  %2273 = vmatprep.subr.bf16.mxu0 %v936
  %2274 = vmatpush1.bf16.msra.mxu0 %v935
  %2275 = vmatprep.subr.bf16.mxu0 %v934
  %2276 = vmatpush1.bf16.msra.mxu0 %v933
  %2277 = vmatprep.subr.bf16.mxu0 0
  %2278 = vmatpush2.bf16.msra.mxu0 0
  %2279 = vmatprep.subr.bf16.mxu0 0
  %2280 = vmatpush2.bf16.msra.mxu0 0
  %2281 = vmatprep.subr.bf16.mxu0 0
  %2282 = vmatpush2.bf16.msra.mxu0 0
  %2283 = vmatprep.subr.bf16.mxu0 0
  %2284 = vmatpush2.bf16.msra.mxu0 0
  %2285 = vmatprep.subr.bf16.mxu0 0
  %2286 = vmatpush2.bf16.msra.mxu0 0
  %2287 = vmatprep.subr.bf16.mxu0 0
  %2288 = vmatpush2.bf16.msra.mxu0 0
  %2289 = vmatprep.subr.bf16.mxu0 0
  %2290 = vmatpush2.bf16.msra.mxu0 0
  %2291 = vmatprep.subr.bf16.mxu0 0
  %2292 = vmatpush2.bf16.msra.mxu0 0
  %2293 = vmatprep.mubr.bf16.mxu0 0
  %2294 = vmatmul.mubr.bf16.gmra.mxu0 %v2259
  %v2295 = vpop.f32.mrf.mxu0
  %v2296 = vadd.f32 %v2181, %v2295
  %v2297 = vpop.f32.mrf.mxu0
  %v2298 = vadd.f32 %v2183, %v2297
  %v2299 = vpop.f32.mrf.mxu0
  %v2300 = vpop.f32.mrf.mxu0
  %2301 = vdwg.mxu0
  %v2302 = vadd.f32 %v2296, %v706
  %v2303 = vadd.f32 %v2298, %v710
  %v2304 = vxor.u32 %v2302, 2147483648
  %v2305 = vxor.u32 %v2303, 2147483648
  %v2306 = vmul.f32 %v2304, 1.442695
  %v2307 = vpow.pop %v2306
  %v2308 = vmul.f32 %v2305, 1.442695
  %v2309 = vpow.pop %v2308
  %v2310 = vadd.f32 %v2307, 1.0
  %v2311 = vadd.f32 %v2309, 1.0
  %v2312 = vrcp.pop %v2310
  %v2313 = vmul.f32 1.0, %v2312
  %v2314 = vrcp.pop %v2311
  %v2315 = vmul.f32 1.0, %v2314
  %v2316 = vtanh.pop %v2303
  %v2317 = vmul.f32 %v2313, %v2136
  %v2318 = vmul.f32 %v2313, %v2316
  %2320 = vrot.lane.b32.xlu0 %v2318, 64
  %v2321 = vpop.permute.xlu0 %2320
  %v2323 = vadd.f32 %v2317, %v2321
  %v2324 = vtanh.pop %v2323
  %v2325 = vmul.f32 %v2315, %v2324
  %v2326 = vld [vmem:[%s7] sm:$0xff]
  %v2327 = vld [vmem:[%s7 + $0x8] sm:$0xff]
  %v2328 = vld [vmem:[%s7 + $0x10] sm:$0xff]
  %v2329 = vld [vmem:[%s7 + $0x18] sm:$0xff]
  %v2330 = vld [vmem:[%s7 + $0x20] sm:$0xff]
  %v2331 = vld [vmem:[%s7 + $0x28] sm:$0xff]
  %v2332 = vld [vmem:[%s7 + $0x30] sm:$0xff]
  %v2333 = vld [vmem:[%s7 + $0x38] sm:$0xff]
  %v2334 = vld [vmem:[%s8] sm:$0x1]
  %v2336 = vlaneseq
  %v2337 = vshrl.u32 %v2336, 7
  %v2338 = vsub.s32 0, %v2337
  %v2339 = vrot.slane %v2334, %v2338
  %2342 = vrot.lane.b32.xlu0 %v2325, 64
  %v2343 = vpop.permute.xlu0 %2342
  %v2344 = vsel %vm753, %v2343, 0
  %2346 = vmatprep.subr.mxu0 0.0
  %2347 = vmatpush1.msra.mxu0 0.0
  %2348 = vmatprep.subr.mxu0 0.0
  %2349 = vmatpush1.msra.mxu0 0.0
  %2350 = vmatprep.subr.mxu0 0.0
  %2351 = vmatpush1.msra.mxu0 0.0
  %2352 = vmatprep.subr.mxu0 0.0
  %2353 = vmatpush1.msra.mxu0 0.0
  %2354 = vmatprep.subr.mxu0 0.0
  %2355 = vmatpush1.msra.mxu0 0.0
  %2356 = vmatprep.subr.mxu0 0.0
  %2357 = vmatpush1.msra.mxu0 0.0
  %2358 = vmatprep.subr.mxu0 0.0
  %2359 = vmatpush1.msra.mxu0 0.0
  %2360 = vmatprep.subr.mxu0 0.0
  %2361 = vmatpush1.msra.mxu0 0.0
  %2362 = vmatprep.subr.mxu0 0.0
  %2363 = vmatpush1.msra.mxu0 %v2333
  %2364 = vmatprep.subr.mxu0 0.0
  %2365 = vmatpush1.msra.mxu0 %v2332
  %2366 = vmatprep.subr.mxu0 0.0
  %2367 = vmatpush1.msra.mxu0 %v2331
  %2368 = vmatprep.subr.mxu0 0.0
  %2369 = vmatpush1.msra.mxu0 %v2330
  %2370 = vmatprep.subr.mxu0 0.0
  %2371 = vmatpush1.msra.mxu0 %v2329
  %2372 = vmatprep.subr.mxu0 0.0
  %2373 = vmatpush1.msra.mxu0 %v2328
  %2374 = vmatprep.subr.mxu0 0.0
  %2375 = vmatpush1.msra.mxu0 %v2327
  %2376 = vmatprep.subr.mxu0 0.0
  %2377 = vmatpush1.msra.mxu0 %v2326
  %2378 = vmatprep.subr.mxu0 0.0
  %2379 = vmatpush2.msra.mxu0 0.0
  %2380 = vmatprep.subr.mxu0 0.0
  %2381 = vmatpush2.msra.mxu0 0.0
  %2382 = vmatprep.subr.mxu0 0.0
  %2383 = vmatpush2.msra.mxu0 0.0
  %2384 = vmatprep.subr.mxu0 0.0
  %2385 = vmatpush2.msra.mxu0 0.0
  %2386 = vmatprep.subr.mxu0 0.0
  %2387 = vmatpush2.msra.mxu0 0.0
  %2388 = vmatprep.subr.mxu0 0.0
  %2389 = vmatpush2.msra.mxu0 0.0
  %2390 = vmatprep.subr.mxu0 0.0
  %2391 = vmatpush2.msra.mxu0 0.0
  %2392 = vmatprep.subr.mxu0 0.0
  %2393 = vmatpush2.msra.mxu0 0.0
  %2394 = vmatprep.subr.mxu0 0.0
  %2395 = vmatpush2.msra.mxu0 0.0
  %2396 = vmatprep.subr.mxu0 0.0
  %2397 = vmatpush2.msra.mxu0 0.0
  %2398 = vmatprep.subr.mxu0 0.0
  %2399 = vmatpush2.msra.mxu0 0.0
  %2400 = vmatprep.subr.mxu0 0.0
  %2401 = vmatpush2.msra.mxu0 0.0
  %2402 = vmatprep.subr.mxu0 0.0
  %2403 = vmatpush2.msra.mxu0 0.0
  %2404 = vmatprep.subr.mxu0 0.0
  %2405 = vmatpush2.msra.mxu0 0.0
  %2406 = vmatprep.subr.mxu0 0.0
  %2407 = vmatpush2.msra.mxu0 0.0
  %2408 = vmatprep.subr.mxu0 0.0
  %2409 = vmatpush2.msra.mxu0 0.0
  %2410 = vmatprep.mubr.f32.mxu0 0.0
  %2411 = vmatmul.mubr.f32.gmra.mxu0 %v2344
  %v2412 = vpop.f32.mrf.mxu0
  %v2413 = vadd.f32 %v2339, %v2412
  %v2414 = vpop.f32.mrf.mxu0
  %2415 = vdwg.mxu0
  %2416 = vst [vmem:[%s9] sm:$0xff] %v2413
  // Predicated region
  $region38: #{_rnn_forward_impl.1} parent=0 // pred_check
    _
  $region39: #{_rnn_forward_impl.1} parent=0 // pred_check_branch
    %2418 = sbr.rel (0) target = $region41
  $region40: #{_rnn_forward_impl.1} parent=0 // pred_region
    _
  $region41: #{_rnn_forward_impl.1} parent=0 // pred_fallthru
    _
  // Predicated region
  $region42: #{_rnn_forward_impl.1} parent=0 // pred_check
    _
  $region43: #{_rnn_forward_impl.1} parent=0 // pred_check_branch
    %2420 = sbr.rel (0) target = $region45
  $region44: #{_rnn_forward_impl.1} parent=0 // pred_region
    _
  $region45: #{_rnn_forward_impl.1} parent=0 // pred_fallthru
    _

</llo_original>
